<compile_context>
chip_gen: v6e
topology: v6e:2x2x1
jax: 0.10.0
libtpu: 0.0.40
codegen_flags: <defaults>
</compile_context>

<pallas_src>
import functools

import jax
import jax.numpy as jnp
import numpy as np
from jax.experimental import pallas as pl
from jax.experimental.pallas import tpu as pltpu


def _round_up(x: int, m: int) -> int:
    return (x + m - 1) // m * m


def _head_kernel(x_ref, w_ref, b_ref, o_ref, acc_ref, *, inv_hw: float):
    """Fused global-avg-pool -> fc -> sigmoid, accumulated over channel blocks.

    x_ref  : (b_tile, c_tile, HW)  feature block (native dtype), HW = full extent
    w_ref  : (c_tile, N_pad)       f32 fc weight block for this channel slice
    b_ref  : (1, N_pad)            f32 fc bias (resident across the grid)
    o_ref  : (b_tile, N_pad)       f32 sigmoid(fc(mean_hw(x)))
    acc_ref: (b_tile, N_pad)       f32 running logits accumulator (VMEM scratch)
    """
    c_step = pl.program_id(1)

    @pl.when(c_step == 0)
    def _():
        acc_ref[...] = jnp.zeros_like(acc_ref)

    # Spatial sum over the lane axis (VPU/XLU; far below DMA time), f32 accum.
    pooled_sum = jnp.sum(x_ref[...].astype(jnp.float32), axis=-1)   # (b_tile, c_tile)

    # Partial fc contribution of this channel slice (MXU, f32 accumulate).
    acc_ref[...] += jnp.dot(pooled_sum, w_ref[...].astype(jnp.float32),
                            preferred_element_type=jnp.float32)

    @pl.when(c_step == pl.num_programs(1) - 1)
    def _():
        # 1/(H*W) folded in once at the end (linear), then bias + sigmoid (EUP).
        o_ref[...] = jax.nn.sigmoid(acc_ref[...] * inv_hw + b_ref[...])


def efficientnet_head_forward(features, fc_weight, fc_bias,
                              *, input_vmem_budget_bytes: int = 20 * 1024 * 1024):
    """features : (B, C, H, W) backbone output (any float dtype), consumed as-is
       fc_weight: (N, C)       PyTorch nn.Linear weight layout
       fc_bias  : (N,)
       returns  : (B, N) f32 sigmoid probabilities
    """
    B, C, H, W = features.shape
    N = fc_weight.shape[0]
    HW = H * W

    # (B, C, H, W) -> (B, C, H*W): contiguous reshape, no extra HBM round trip.
    x = features.reshape(B, C, HW)

    # Batch tiling: no padding (and no streamed zero rows) for small batches.
    if B <= 8:
        b_tile, b_pad = B, B
    else:
        b_tile = 8
        b_pad = _round_up(B, 8)
        if b_pad != B:  # rare: only when B > 8 and not a multiple of 8
            x = jnp.pad(x, ((0, b_pad - B), (0, 0), (0, 0)))

    # Channel tile: largest power-of-two divisor of C whose double-buffered
    # input block fits the budget.  HW sits on the lane axis and is padded to
    # 128 lanes inside VMEM regardless of dtype.
    hw_lanes = _round_up(HW, 128)
    elem = x.dtype.itemsize
    c_tile = C
    while (c_tile > 8 and c_tile % 2 == 0
           and 2 * b_tile * c_tile * hw_lanes * elem > input_vmem_budget_bytes):
        c_tile //= 2
    if c_tile != C and c_tile % 8 != 0:   # (8,128) rule on the second-minor dim
        c_tile = C

    # Lane-dense output: N padded to a multiple of 128 -> full vst, no vst.msk.
    n_pad = _round_up(max(N, 128), 128)
    w = jnp.pad(fc_weight.T.astype(jnp.float32), ((0, 0), (0, n_pad - N)))
    b = jnp.pad(fc_bias.astype(jnp.float32), (0, n_pad - N)).reshape(1, n_pad)

    grid = (b_pad // b_tile, C // c_tile)
    kernel = functools.partial(_head_kernel, inv_hw=1.0 / float(HW))

    out = pl.pallas_call(
        kernel,
        out_shape=jax.ShapeDtypeStruct((b_pad, n_pad), jnp.float32),
        grid_spec=pltpu.PrefetchScalarGridSpec(
            num_scalar_prefetch=0,
            grid=grid,
            in_specs=[
                # Feature block: full HW extent on lanes, streamed from HBM once.
                pl.BlockSpec((b_tile, c_tile, HW), lambda i, c: (i, c, 0)),
                # fc weight: blocked along C (resident when C fits in one block).
                pl.BlockSpec((c_tile, n_pad), lambda i, c: (c, 0)),
                # fc bias: constant index_map -> fetched once.
                pl.BlockSpec((1, n_pad), lambda i, c: (0, 0)),
            ],
            out_specs=pl.BlockSpec((b_tile, n_pad), lambda i, c: (i, 0)),
            scratch_shapes=[pltpu.VMEM((b_tile, n_pad), jnp.float32)],
        ),
        compiler_params=pltpu.CompilerParams(
            # Batch axis shards across TensorCores; C is the reduction axis.
            dimension_semantics=("parallel", "arbitrary"),
            # Explicit scoped-VMEM limit: raises v5e's 16 MiB default, matches
            # the v6e/v7x default, and stays well inside v7x's 64 MiB physical.
            vmem_limit_bytes=32 * 1024 * 1024),
    )(x, w, b)

    return out[:B, :N]


if __name__ == "__main__":
    key = jax.random.PRNGKey(0)
    k1, k2, k3 = jax.random.split(key, 3)

    # Small shapes consistent with the module: backbone emits (B, 2048, H, W),
    # fc is Linear(2048, num_labels); RANZCR has 11 labels.
    B, C, H, W = 2, 2048, 7, 7
    num_labels = 11

    features = jax.random.normal(k1, (B, C, H, W), dtype=jnp.float32)
    fc_weight = jax.random.normal(k2, (num_labels, C), dtype=jnp.float32) / np.sqrt(C)
    fc_bias = 0.01 * jax.random.normal(k3, (num_labels,), dtype=jnp.float32)

    out = efficientnet_head_forward(features, fc_weight, fc_bias)
    out = jax.block_until_ready(out)

    # Pure-JAX reference of the same head (avgpool -> fc -> sigmoid).
    pooled_ref = jnp.mean(features, axis=(2, 3))
    ref = jax.nn.sigmoid(pooled_ref @ fc_weight.T + fc_bias)
    np.testing.assert_allclose(np.asarray(out), np.asarray(ref), rtol=1e-2, atol=1e-2)

    print("KERNEL_OK")
</pallas_src>

<mosaic_0001>
module attributes {stable_mosaic.version = 11 : i64} {
  func.func @_head_kernel(%arg0: i32, %arg1: i32, %arg2: memref<2x2048x49xf32, #tpu.memory_space<vmem>>, %arg3: memref<2048x128xf32, #tpu.memory_space<vmem>>, %arg4: memref<1x128xf32, #tpu.memory_space<vmem>>, %arg5: memref<2x128xf32, #tpu.memory_space<vmem>>, %arg6: memref<2x128xf32, #tpu.memory_space<vmem>>) attributes {dimension_semantics = [#tpu.dimension_semantics<parallel>, #tpu.dimension_semantics<arbitrary>], iteration_bounds = array<i64: 1, 1>, scalar_prefetch = 0 : i64, scratch_operands = 1 : i64, tpu.core_type = #tpu.core_type<tc>, window_params = [{transform_indices = @transform_0, window_bounds = array<i64: 2, 2048, 49>}, {transform_indices = @transform_1, window_bounds = array<i64: 2048, 128>}, {pipeline_mode = #tpu.pipeline_mode<synchronous>, transform_indices = @transform_2, window_bounds = array<i64: 1, 128>}, {transform_indices = @transform_3, window_bounds = array<i64: 2, 128>}]} {
    %c0_i32 = arith.constant 0 : i32
    %0 = arith.cmpi eq, %arg1, %c0_i32 : i32
    %1 = arith.extui %0 : i1 to i32
    %c0_i32_0 = arith.constant 0 : i32
    %2 = arith.cmpi ne, %1, %c0_i32_0 : i32
    scf.if %2 {
      %cst_12 = arith.constant 0.000000e+00 : f32
      %13 = vector.broadcast %cst_12 : f32 to vector<2x128xf32>
      %c0_13 = arith.constant 0 : index
      %c0_14 = arith.constant 0 : index
      %14 = vector.load %arg6[%c0_13, %c0_14] : memref<2x128xf32, #tpu.memory_space<vmem>>, vector<2x128xf32>
      tpu.vector_store %arg6[%c0_13, %c0_14], %13 {strides = array<i32>} : memref<2x128xf32, #tpu.memory_space<vmem>>, vector<2x128xf32>,
    } else {
    }
    %c0 = arith.constant 0 : index
    %c0_1 = arith.constant 0 : index
    %c0_2 = arith.constant 0 : index
    %3 = vector.load %arg2[%c0, %c0_1, %c0_2] : memref<2x2048x49xf32, #tpu.memory_space<vmem>>, vector<2x2048x49xf32>
    %cst = arith.constant dense<0.000000e+00> : vector<2x2048xf32>
    %4 = vector.multi_reduction <add>, %3, %cst [2] : vector<2x2048x49xf32> to vector<2x2048xf32>
    %c0_3 = arith.constant 0 : index
    %c0_4 = arith.constant 0 : index
    %5 = vector.load %arg6[%c0_3, %c0_4] : memref<2x128xf32, #tpu.memory_space<vmem>>, vector<2x128xf32>
    %c0_5 = arith.constant 0 : index
    %c0_6 = arith.constant 0 : index
    %6 = vector.load %arg3[%c0_5, %c0_6] : memref<2048x128xf32, #tpu.memory_space<vmem>>, vector<2048x128xf32>
    %cst_7 = arith.constant dense<0.000000e+00> : vector<2x128xf32>
    %7 = tpu.matmul %4, %6, %cst_7 {dimension_numbers = #tpu.dot_dimension_numbers<[1], [0], [0], [1], [0, 0, 1, 1], [], []>} : vector<2x2048xf32>, vector<2048x128xf32>, vector<2x128xf32> -> vector<2x128xf32>
    %8 = arith.addf %5, %7 : vector<2x128xf32>
    %c0_8 = arith.constant 0 : index
    %c0_9 = arith.constant 0 : index
    %9 = vector.load %arg6[%c0_8, %c0_9] : memref<2x128xf32, #tpu.memory_space<vmem>>, vector<2x128xf32>
    tpu.vector_store %arg6[%c0_8, %c0_9], %8 {strides = array<i32>} : memref<2x128xf32, #tpu.memory_space<vmem>>, vector<2x128xf32>,
    %c0_i32_10 = arith.constant 0 : i32
    %10 = arith.cmpi eq, %arg1, %c0_i32_10 : i32
    %11 = arith.extui %10 : i1 to i32
    %c0_i32_11 = arith.constant 0 : i32
    %12 = arith.cmpi ne, %11, %c0_i32_11 : i32
    scf.if %12 {
      %c0_12 = arith.constant 0 : index
      %c0_13 = arith.constant 0 : index
      %13 = vector.load %arg6[%c0_12, %c0_13] : memref<2x128xf32, #tpu.memory_space<vmem>>, vector<2x128xf32>
      %cst_14 = arith.constant 0.0204081628 : f32
      %14 = vector.broadcast %cst_14 : f32 to vector<2x128xf32>
      %15 = arith.mulf %13, %14 : vector<2x128xf32>
      %c0_15 = arith.constant 0 : index
      %c0_16 = arith.constant 0 : index
      %16 = vector.load %arg4[%c0_15, %c0_16] : memref<1x128xf32, #tpu.memory_space<vmem>>, vector<1x128xf32>
      %17 = vector.broadcast %16 : vector<1x128xf32> to vector<2x128xf32>
      %18 = arith.addf %15, %17 : vector<2x128xf32>
      %19 = arith.negf %18 : vector<2x128xf32>
      %20 = math.exp %19 : vector<2x128xf32>
      %cst_17 = arith.constant 1.000000e+00 : f32
      %21 = vector.broadcast %cst_17 : f32 to vector<2x128xf32>
      %22 = arith.addf %21, %20 : vector<2x128xf32>
      %23 = arith.divf %21, %22 : vector<2x128xf32>
      %c0_18 = arith.constant 0 : index
      %c0_19 = arith.constant 0 : index
      %24 = vector.load %arg5[%c0_18, %c0_19] : memref<2x128xf32, #tpu.memory_space<vmem>>, vector<2x128xf32>
      tpu.vector_store %arg5[%c0_18, %c0_19], %23 {strides = array<i32>} : memref<2x128xf32, #tpu.memory_space<vmem>>, vector<2x128xf32>,
    } else {
    }
    return
  }
  func.func @transform_0(%arg0: i32, %arg1: i32) -> (i32, i32, i32) {
    %c0_i32 = arith.constant 0 : i32
    %c0_i32_0 = arith.constant 0 : i32
    return %arg0, %arg1, %c0_i32 : i32, i32, i32
  }
  func.func @transform_1(%arg0: i32, %arg1: i32) -> (i32, i32) {
    %c0_i32 = arith.constant 0 : i32
    %c0_i32_0 = arith.constant 0 : i32
    return %arg1, %c0_i32 : i32, i32
  }
  func.func @transform_2(%arg0: i32, %arg1: i32) -> (i32, i32) {
    %c0_i32 = arith.constant 0 : i32
    %c0_i32_0 = arith.constant 0 : i32
    %c0_i32_1 = arith.constant 0 : i32
    return %c0_i32, %c0_i32_0 : i32, i32
  }
  func.func @transform_3(%arg0: i32, %arg1: i32) -> (i32, i32) {
    %c0_i32 = arith.constant 0 : i32
    %c0_i32_0 = arith.constant 0 : i32
    return %arg0, %c0_i32 : i32, i32
  }
}

</mosaic_0001>

<llo_original>
// kernel: tpu_custom_call.1
$region0: #{tpu_custom_call.1}
  #allocation0 [shape = 'u32[]', space=smem, size = 0x4, offset = 0x4, fixed_abs, tag = 'smem constant byte address 0x4 - core index']
  #allocation1 [shape = 'u32[144,128]{1,0:T(1,128)}', space=vmem, size = 0x12000, scoped, tag = 'internal scratch']
  #allocation2 [shape = 'f32[2,128]{1,0:T(2,128)}', space=vmem, size = 0x400, scoped, tag = 'scratch operand']
  %s0 = inlined_call_operand.vmem [shape: f32[2,2048,49], index: 0, kind: input, shape index: {}]
  %s1 = inlined_call_operand.vmem [shape: f32[2048,128], index: 1, kind: input, shape index: {}]
  %s2 = inlined_call_operand.vmem [shape: f32[1,128], index: 2, kind: input, shape index: {}]
  %s3 = inlined_call_operand.hbm [shape: f32[2,128], index: 3, kind: output, shape index: {}]
  %s4 = sld [smem:[#allocation0]]
  $region30: #{tpu_custom_call.1} parent=0
    _
  %s6 = ssub.s32 1, %s4
  %s7 = scalar_select 0, %s6, %s4
  $region1: #{tpu_custom_call.1} parent=0
    #allocation3 [shape = 'u8[1024]{0}', space=vmem, size = 0x400, scoped, tag = 'output window, operand 0, single buffered']
    #allocation4 [shape = 's32[1]{0}', space=sflag, size = 0x4, scoped, tag = 'scoped memory for tpu_custom_call.1']
    %8 = vsyncpa [#allocation4], 0
    // Predicated region
    $region2: #{tpu_custom_call.1} parent=1 // pred_check
      _
    $region3: #{tpu_custom_call.1} parent=1 // pred_check_branch
      %10 = sbr.rel (0) target = $region5
    $region4: #{tpu_custom_call.1} parent=1 // pred_region
      _
    $region5: #{tpu_custom_call.1} parent=1 // pred_fallthru
      _
    // Predicated region
    $region6: #{tpu_custom_call.1} parent=1 // pred_check
      _
    $region7: #{tpu_custom_call.1} parent=1 // pred_check_branch
      %12 = sbr.rel (0) target = $region9
    $region8: #{tpu_custom_call.1} parent=1 // pred_region
      _
    $region9: #{tpu_custom_call.1} parent=1 // pred_fallthru
      _
    // Predicated region
    $region10: #{tpu_custom_call.1} parent=1 // pred_check
      _
    $region11: #{tpu_custom_call.1} parent=1 // pred_check_branch
      %14 = sbr.rel (0) target = $region13
    $region12: #{tpu_custom_call.1} parent=1 // pred_region
      _
    $region13: #{tpu_custom_call.1} parent=1 // pred_fallthru
      _
    %p15 = scmp.eq.s32.totalorder 0, 0
    // Predicated region
    $region14: #{tpu_custom_call.1} parent=1 // pred_check
      %p16 = pneg %p15
    $region15: #{tpu_custom_call.1} parent=1 // pred_check_branch
      %18 = sbr.rel (%p16) target = $region17
    $region16: #{tpu_custom_call.1} parent=1 // pred_region
      %19 = vst [vmem:[#allocation2] sm:$0x3] 0.0
    $region17: #{tpu_custom_call.1} parent=1 // pred_fallthru
      _
    %v20 = vld [vmem:[%s0] sm:$0xff]
    %v21 = vld [vmem:[%s0 + $0x8] sm:$0xff]
    %v22 = vld [vmem:[%s0 + $0x10] sm:$0xff]
    %v23 = vld [vmem:[%s0 + $0x18] sm:$0xff]
    %v24 = vld [vmem:[%s0 + $0x20] sm:$0xff]
    %v25 = vld [vmem:[%s0 + $0x28] sm:$0xff]
    %v26 = vld [vmem:[%s0 + $0x30] sm:$0xff]
    %v27 = vld [vmem:[%s0 + $0x38] sm:$0xff]
    %v28 = vld [vmem:[%s0 + $0x40] sm:$0xff]
    %v29 = vld [vmem:[%s0 + $0x48] sm:$0xff]
    %v30 = vld [vmem:[%s0 + $0x50] sm:$0xff]
    %v31 = vld [vmem:[%s0 + $0x58] sm:$0xff]
    %v32 = vld [vmem:[%s0 + $0x60] sm:$0xff]
    %v33 = vld [vmem:[%s0 + $0x68] sm:$0xff]
    %v34 = vld [vmem:[%s0 + $0x70] sm:$0xff]
    %v35 = vld [vmem:[%s0 + $0x78] sm:$0xff]
    %v36 = vld [vmem:[%s0 + $0x80] sm:$0xff]
    %v37 = vld [vmem:[%s0 + $0x88] sm:$0xff]
    %v38 = vld [vmem:[%s0 + $0x90] sm:$0xff]
    %v39 = vld [vmem:[%s0 + $0x98] sm:$0xff]
    %v40 = vld [vmem:[%s0 + $0xa0] sm:$0xff]
    %v41 = vld [vmem:[%s0 + $0xa8] sm:$0xff]
    %v42 = vld [vmem:[%s0 + $0xb0] sm:$0xff]
    %v43 = vld [vmem:[%s0 + $0xb8] sm:$0xff]
    %v44 = vld [vmem:[%s0 + $0xc0] sm:$0xff]
    %v45 = vld [vmem:[%s0 + $0xc8] sm:$0xff]
    %v46 = vld [vmem:[%s0 + $0xd0] sm:$0xff]
    %v47 = vld [vmem:[%s0 + $0xd8] sm:$0xff]
    %v48 = vld [vmem:[%s0 + $0xe0] sm:$0xff]
    %v49 = vld [vmem:[%s0 + $0xe8] sm:$0xff]
    %v50 = vld [vmem:[%s0 + $0xf0] sm:$0xff]
    %v51 = vld [vmem:[%s0 + $0xf8] sm:$0xff]
    %v52 = vld [vmem:[%s0 + $0x100] sm:$0xff]
    %v53 = vld [vmem:[%s0 + $0x108] sm:$0xff]
    %v54 = vld [vmem:[%s0 + $0x110] sm:$0xff]
    %v55 = vld [vmem:[%s0 + $0x118] sm:$0xff]
    %v56 = vld [vmem:[%s0 + $0x120] sm:$0xff]
    %v57 = vld [vmem:[%s0 + $0x128] sm:$0xff]
    %v58 = vld [vmem:[%s0 + $0x130] sm:$0xff]
    %v59 = vld [vmem:[%s0 + $0x138] sm:$0xff]
    %v60 = vld [vmem:[%s0 + $0x140] sm:$0xff]
    %v61 = vld [vmem:[%s0 + $0x148] sm:$0xff]
    %v62 = vld [vmem:[%s0 + $0x150] sm:$0xff]
    %v63 = vld [vmem:[%s0 + $0x158] sm:$0xff]
    %v64 = vld [vmem:[%s0 + $0x160] sm:$0xff]
    %v65 = vld [vmem:[%s0 + $0x168] sm:$0xff]
    %v66 = vld [vmem:[%s0 + $0x170] sm:$0xff]
    %v67 = vld [vmem:[%s0 + $0x178] sm:$0xff]
    %v68 = vld [vmem:[%s0 + $0x180] sm:$0xff]
    %v69 = vld [vmem:[%s0 + $0x188] sm:$0xff]
    %v70 = vld [vmem:[%s0 + $0x190] sm:$0xff]
    %v71 = vld [vmem:[%s0 + $0x198] sm:$0xff]
    %v72 = vld [vmem:[%s0 + $0x1a0] sm:$0xff]
    %v73 = vld [vmem:[%s0 + $0x1a8] sm:$0xff]
    %v74 = vld [vmem:[%s0 + $0x1b0] sm:$0xff]
    %v75 = vld [vmem:[%s0 + $0x1b8] sm:$0xff]
    %v76 = vld [vmem:[%s0 + $0x1c0] sm:$0xff]
    %v77 = vld [vmem:[%s0 + $0x1c8] sm:$0xff]
    %v78 = vld [vmem:[%s0 + $0x1d0] sm:$0xff]
    %v79 = vld [vmem:[%s0 + $0x1d8] sm:$0xff]
    %v80 = vld [vmem:[%s0 + $0x1e0] sm:$0xff]
    %v81 = vld [vmem:[%s0 + $0x1e8] sm:$0xff]
    %v82 = vld [vmem:[%s0 + $0x1f0] sm:$0xff]
    %v83 = vld [vmem:[%s0 + $0x1f8] sm:$0xff]
    %v84 = vld [vmem:[%s0 + $0x200] sm:$0xff]
    %v85 = vld [vmem:[%s0 + $0x208] sm:$0xff]
    %v86 = vld [vmem:[%s0 + $0x210] sm:$0xff]
    %v87 = vld [vmem:[%s0 + $0x218] sm:$0xff]
    %v88 = vld [vmem:[%s0 + $0x220] sm:$0xff]
    %v89 = vld [vmem:[%s0 + $0x228] sm:$0xff]
    %v90 = vld [vmem:[%s0 + $0x230] sm:$0xff]
    %v91 = vld [vmem:[%s0 + $0x238] sm:$0xff]
    %v92 = vld [vmem:[%s0 + $0x240] sm:$0xff]
    %v93 = vld [vmem:[%s0 + $0x248] sm:$0xff]
    %v94 = vld [vmem:[%s0 + $0x250] sm:$0xff]
    %v95 = vld [vmem:[%s0 + $0x258] sm:$0xff]
    %v96 = vld [vmem:[%s0 + $0x260] sm:$0xff]
    %v97 = vld [vmem:[%s0 + $0x268] sm:$0xff]
    %v98 = vld [vmem:[%s0 + $0x270] sm:$0xff]
    %v99 = vld [vmem:[%s0 + $0x278] sm:$0xff]
    %v100 = vld [vmem:[%s0 + $0x280] sm:$0xff]
    %v101 = vld [vmem:[%s0 + $0x288] sm:$0xff]
    %v102 = vld [vmem:[%s0 + $0x290] sm:$0xff]
    %v103 = vld [vmem:[%s0 + $0x298] sm:$0xff]
    %v104 = vld [vmem:[%s0 + $0x2a0] sm:$0xff]
    %v105 = vld [vmem:[%s0 + $0x2a8] sm:$0xff]
    %v106 = vld [vmem:[%s0 + $0x2b0] sm:$0xff]
    %v107 = vld [vmem:[%s0 + $0x2b8] sm:$0xff]
    %v108 = vld [vmem:[%s0 + $0x2c0] sm:$0xff]
    %v109 = vld [vmem:[%s0 + $0x2c8] sm:$0xff]
    %v110 = vld [vmem:[%s0 + $0x2d0] sm:$0xff]
    %v111 = vld [vmem:[%s0 + $0x2d8] sm:$0xff]
    %v112 = vld [vmem:[%s0 + $0x2e0] sm:$0xff]
    %v113 = vld [vmem:[%s0 + $0x2e8] sm:$0xff]
    %v114 = vld [vmem:[%s0 + $0x2f0] sm:$0xff]
    %v115 = vld [vmem:[%s0 + $0x2f8] sm:$0xff]
    %v116 = vld [vmem:[%s0 + $0x300] sm:$0xff]
    %v117 = vld [vmem:[%s0 + $0x308] sm:$0xff]
    %v118 = vld [vmem:[%s0 + $0x310] sm:$0xff]
    %v119 = vld [vmem:[%s0 + $0x318] sm:$0xff]
    %v120 = vld [vmem:[%s0 + $0x320] sm:$0xff]
    %v121 = vld [vmem:[%s0 + $0x328] sm:$0xff]
    %v122 = vld [vmem:[%s0 + $0x330] sm:$0xff]
    %v123 = vld [vmem:[%s0 + $0x338] sm:$0xff]
    %v124 = vld [vmem:[%s0 + $0x340] sm:$0xff]
    %v125 = vld [vmem:[%s0 + $0x348] sm:$0xff]
    %v126 = vld [vmem:[%s0 + $0x350] sm:$0xff]
    %v127 = vld [vmem:[%s0 + $0x358] sm:$0xff]
    %v128 = vld [vmem:[%s0 + $0x360] sm:$0xff]
    %v129 = vld [vmem:[%s0 + $0x368] sm:$0xff]
    %v130 = vld [vmem:[%s0 + $0x370] sm:$0xff]
    %v131 = vld [vmem:[%s0 + $0x378] sm:$0xff]
    %v132 = vld [vmem:[%s0 + $0x380] sm:$0xff]
    %v133 = vld [vmem:[%s0 + $0x388] sm:$0xff]
    %v134 = vld [vmem:[%s0 + $0x390] sm:$0xff]
    %v135 = vld [vmem:[%s0 + $0x398] sm:$0xff]
    %v136 = vld [vmem:[%s0 + $0x3a0] sm:$0xff]
    %v137 = vld [vmem:[%s0 + $0x3a8] sm:$0xff]
    %v138 = vld [vmem:[%s0 + $0x3b0] sm:$0xff]
    %v139 = vld [vmem:[%s0 + $0x3b8] sm:$0xff]
    %v140 = vld [vmem:[%s0 + $0x3c0] sm:$0xff]
    %v141 = vld [vmem:[%s0 + $0x3c8] sm:$0xff]
    %v142 = vld [vmem:[%s0 + $0x3d0] sm:$0xff]
    %v143 = vld [vmem:[%s0 + $0x3d8] sm:$0xff]
    %v144 = vld [vmem:[%s0 + $0x3e0] sm:$0xff]
    %v145 = vld [vmem:[%s0 + $0x3e8] sm:$0xff]
    %v146 = vld [vmem:[%s0 + $0x3f0] sm:$0xff]
    %v147 = vld [vmem:[%s0 + $0x3f8] sm:$0xff]
    %v148 = vld [vmem:[%s0 + $0x400] sm:$0xff]
    %v149 = vld [vmem:[%s0 + $0x408] sm:$0xff]
    %v150 = vld [vmem:[%s0 + $0x410] sm:$0xff]
    %v151 = vld [vmem:[%s0 + $0x418] sm:$0xff]
    %v152 = vld [vmem:[%s0 + $0x420] sm:$0xff]
    %v153 = vld [vmem:[%s0 + $0x428] sm:$0xff]
    %v154 = vld [vmem:[%s0 + $0x430] sm:$0xff]
    %v155 = vld [vmem:[%s0 + $0x438] sm:$0xff]
    %v156 = vld [vmem:[%s0 + $0x440] sm:$0xff]
    %v157 = vld [vmem:[%s0 + $0x448] sm:$0xff]
    %v158 = vld [vmem:[%s0 + $0x450] sm:$0xff]
    %v159 = vld [vmem:[%s0 + $0x458] sm:$0xff]
    %v160 = vld [vmem:[%s0 + $0x460] sm:$0xff]
    %v161 = vld [vmem:[%s0 + $0x468] sm:$0xff]
    %v162 = vld [vmem:[%s0 + $0x470] sm:$0xff]
    %v163 = vld [vmem:[%s0 + $0x478] sm:$0xff]
    %v164 = vld [vmem:[%s0 + $0x480] sm:$0xff]
    %v165 = vld [vmem:[%s0 + $0x488] sm:$0xff]
    %v166 = vld [vmem:[%s0 + $0x490] sm:$0xff]
    %v167 = vld [vmem:[%s0 + $0x498] sm:$0xff]
    %v168 = vld [vmem:[%s0 + $0x4a0] sm:$0xff]
    %v169 = vld [vmem:[%s0 + $0x4a8] sm:$0xff]
    %v170 = vld [vmem:[%s0 + $0x4b0] sm:$0xff]
    %v171 = vld [vmem:[%s0 + $0x4b8] sm:$0xff]
    %v172 = vld [vmem:[%s0 + $0x4c0] sm:$0xff]
    %v173 = vld [vmem:[%s0 + $0x4c8] sm:$0xff]
    %v174 = vld [vmem:[%s0 + $0x4d0] sm:$0xff]
    %v175 = vld [vmem:[%s0 + $0x4d8] sm:$0xff]
    %v176 = vld [vmem:[%s0 + $0x4e0] sm:$0xff]
    %v177 = vld [vmem:[%s0 + $0x4e8] sm:$0xff]
    %v178 = vld [vmem:[%s0 + $0x4f0] sm:$0xff]
    %v179 = vld [vmem:[%s0 + $0x4f8] sm:$0xff]
    %v180 = vld [vmem:[%s0 + $0x500] sm:$0xff]
    %v181 = vld [vmem:[%s0 + $0x508] sm:$0xff]
    %v182 = vld [vmem:[%s0 + $0x510] sm:$0xff]
    %v183 = vld [vmem:[%s0 + $0x518] sm:$0xff]
    %v184 = vld [vmem:[%s0 + $0x520] sm:$0xff]
    %v185 = vld [vmem:[%s0 + $0x528] sm:$0xff]
    %v186 = vld [vmem:[%s0 + $0x530] sm:$0xff]
    %v187 = vld [vmem:[%s0 + $0x538] sm:$0xff]
    %v188 = vld [vmem:[%s0 + $0x540] sm:$0xff]
    %v189 = vld [vmem:[%s0 + $0x548] sm:$0xff]
    %v190 = vld [vmem:[%s0 + $0x550] sm:$0xff]
    %v191 = vld [vmem:[%s0 + $0x558] sm:$0xff]
    %v192 = vld [vmem:[%s0 + $0x560] sm:$0xff]
    %v193 = vld [vmem:[%s0 + $0x568] sm:$0xff]
    %v194 = vld [vmem:[%s0 + $0x570] sm:$0xff]
    %v195 = vld [vmem:[%s0 + $0x578] sm:$0xff]
    %v196 = vld [vmem:[%s0 + $0x580] sm:$0xff]
    %v197 = vld [vmem:[%s0 + $0x588] sm:$0xff]
    %v198 = vld [vmem:[%s0 + $0x590] sm:$0xff]
    %v199 = vld [vmem:[%s0 + $0x598] sm:$0xff]
    %v200 = vld [vmem:[%s0 + $0x5a0] sm:$0xff]
    %v201 = vld [vmem:[%s0 + $0x5a8] sm:$0xff]
    %v202 = vld [vmem:[%s0 + $0x5b0] sm:$0xff]
    %v203 = vld [vmem:[%s0 + $0x5b8] sm:$0xff]
    %v204 = vld [vmem:[%s0 + $0x5c0] sm:$0xff]
    %v205 = vld [vmem:[%s0 + $0x5c8] sm:$0xff]
    %v206 = vld [vmem:[%s0 + $0x5d0] sm:$0xff]
    %v207 = vld [vmem:[%s0 + $0x5d8] sm:$0xff]
    %v208 = vld [vmem:[%s0 + $0x5e0] sm:$0xff]
    %v209 = vld [vmem:[%s0 + $0x5e8] sm:$0xff]
    %v210 = vld [vmem:[%s0 + $0x5f0] sm:$0xff]
    %v211 = vld [vmem:[%s0 + $0x5f8] sm:$0xff]
    %v212 = vld [vmem:[%s0 + $0x600] sm:$0xff]
    %v213 = vld [vmem:[%s0 + $0x608] sm:$0xff]
    %v214 = vld [vmem:[%s0 + $0x610] sm:$0xff]
    %v215 = vld [vmem:[%s0 + $0x618] sm:$0xff]
    %v216 = vld [vmem:[%s0 + $0x620] sm:$0xff]
    %v217 = vld [vmem:[%s0 + $0x628] sm:$0xff]
    %v218 = vld [vmem:[%s0 + $0x630] sm:$0xff]
    %v219 = vld [vmem:[%s0 + $0x638] sm:$0xff]
    %v220 = vld [vmem:[%s0 + $0x640] sm:$0xff]
    %v221 = vld [vmem:[%s0 + $0x648] sm:$0xff]
    %v222 = vld [vmem:[%s0 + $0x650] sm:$0xff]
    %v223 = vld [vmem:[%s0 + $0x658] sm:$0xff]
    %v224 = vld [vmem:[%s0 + $0x660] sm:$0xff]
    %v225 = vld [vmem:[%s0 + $0x668] sm:$0xff]
    %v226 = vld [vmem:[%s0 + $0x670] sm:$0xff]
    %v227 = vld [vmem:[%s0 + $0x678] sm:$0xff]
    %v228 = vld [vmem:[%s0 + $0x680] sm:$0xff]
    %v229 = vld [vmem:[%s0 + $0x688] sm:$0xff]
    %v230 = vld [vmem:[%s0 + $0x690] sm:$0xff]
    %v231 = vld [vmem:[%s0 + $0x698] sm:$0xff]
    %v232 = vld [vmem:[%s0 + $0x6a0] sm:$0xff]
    %v233 = vld [vmem:[%s0 + $0x6a8] sm:$0xff]
    %v234 = vld [vmem:[%s0 + $0x6b0] sm:$0xff]
    %v235 = vld [vmem:[%s0 + $0x6b8] sm:$0xff]
    %v236 = vld [vmem:[%s0 + $0x6c0] sm:$0xff]
    %v237 = vld [vmem:[%s0 + $0x6c8] sm:$0xff]
    %v238 = vld [vmem:[%s0 + $0x6d0] sm:$0xff]
    %v239 = vld [vmem:[%s0 + $0x6d8] sm:$0xff]
    %v240 = vld [vmem:[%s0 + $0x6e0] sm:$0xff]
    %v241 = vld [vmem:[%s0 + $0x6e8] sm:$0xff]
    %v242 = vld [vmem:[%s0 + $0x6f0] sm:$0xff]
    %v243 = vld [vmem:[%s0 + $0x6f8] sm:$0xff]
    %v244 = vld [vmem:[%s0 + $0x700] sm:$0xff]
    %v245 = vld [vmem:[%s0 + $0x708] sm:$0xff]
    %v246 = vld [vmem:[%s0 + $0x710] sm:$0xff]
    %v247 = vld [vmem:[%s0 + $0x718] sm:$0xff]
    %v248 = vld [vmem:[%s0 + $0x720] sm:$0xff]
    %v249 = vld [vmem:[%s0 + $0x728] sm:$0xff]
    %v250 = vld [vmem:[%s0 + $0x730] sm:$0xff]
    %v251 = vld [vmem:[%s0 + $0x738] sm:$0xff]
    %v252 = vld [vmem:[%s0 + $0x740] sm:$0xff]
    %v253 = vld [vmem:[%s0 + $0x748] sm:$0xff]
    %v254 = vld [vmem:[%s0 + $0x750] sm:$0xff]
    %v255 = vld [vmem:[%s0 + $0x758] sm:$0xff]
    %v256 = vld [vmem:[%s0 + $0x760] sm:$0xff]
    %v257 = vld [vmem:[%s0 + $0x768] sm:$0xff]
    %v258 = vld [vmem:[%s0 + $0x770] sm:$0xff]
    %v259 = vld [vmem:[%s0 + $0x778] sm:$0xff]
    %v260 = vld [vmem:[%s0 + $0x780] sm:$0xff]
    %v261 = vld [vmem:[%s0 + $0x788] sm:$0xff]
    %v262 = vld [vmem:[%s0 + $0x790] sm:$0xff]
    %v263 = vld [vmem:[%s0 + $0x798] sm:$0xff]
    %v264 = vld [vmem:[%s0 + $0x7a0] sm:$0xff]
    %v265 = vld [vmem:[%s0 + $0x7a8] sm:$0xff]
    %v266 = vld [vmem:[%s0 + $0x7b0] sm:$0xff]
    %v267 = vld [vmem:[%s0 + $0x7b8] sm:$0xff]
    %v268 = vld [vmem:[%s0 + $0x7c0] sm:$0xff]
    %v269 = vld [vmem:[%s0 + $0x7c8] sm:$0xff]
    %v270 = vld [vmem:[%s0 + $0x7d0] sm:$0xff]
    %v271 = vld [vmem:[%s0 + $0x7d8] sm:$0xff]
    %v272 = vld [vmem:[%s0 + $0x7e0] sm:$0xff]
    %v273 = vld [vmem:[%s0 + $0x7e8] sm:$0xff]
    %v274 = vld [vmem:[%s0 + $0x7f0] sm:$0xff]
    %v275 = vld [vmem:[%s0 + $0x7f8] sm:$0xff]
    %v276 = vld [vmem:[%s0 + $0x800] sm:$0xff]
    %v277 = vld [vmem:[%s0 + $0x808] sm:$0xff]
    %v278 = vld [vmem:[%s0 + $0x810] sm:$0xff]
    %v279 = vld [vmem:[%s0 + $0x818] sm:$0xff]
    %v280 = vld [vmem:[%s0 + $0x820] sm:$0xff]
    %v281 = vld [vmem:[%s0 + $0x828] sm:$0xff]
    %v282 = vld [vmem:[%s0 + $0x830] sm:$0xff]
    %v283 = vld [vmem:[%s0 + $0x838] sm:$0xff]
    %v284 = vld [vmem:[%s0 + $0x840] sm:$0xff]
    %v285 = vld [vmem:[%s0 + $0x848] sm:$0xff]
    %v286 = vld [vmem:[%s0 + $0x850] sm:$0xff]
    %v287 = vld [vmem:[%s0 + $0x858] sm:$0xff]
    %v288 = vld [vmem:[%s0 + $0x860] sm:$0xff]
    %v289 = vld [vmem:[%s0 + $0x868] sm:$0xff]
    %v290 = vld [vmem:[%s0 + $0x870] sm:$0xff]
    %v291 = vld [vmem:[%s0 + $0x878] sm:$0xff]
    %v292 = vld [vmem:[%s0 + $0x880] sm:$0xff]
    %v293 = vld [vmem:[%s0 + $0x888] sm:$0xff]
    %v294 = vld [vmem:[%s0 + $0x890] sm:$0xff]
    %v295 = vld [vmem:[%s0 + $0x898] sm:$0xff]
    %v296 = vld [vmem:[%s0 + $0x8a0] sm:$0xff]
    %v297 = vld [vmem:[%s0 + $0x8a8] sm:$0xff]
    %v298 = vld [vmem:[%s0 + $0x8b0] sm:$0xff]
    %v299 = vld [vmem:[%s0 + $0x8b8] sm:$0xff]
    %v300 = vld [vmem:[%s0 + $0x8c0] sm:$0xff]
    %v301 = vld [vmem:[%s0 + $0x8c8] sm:$0xff]
    %v302 = vld [vmem:[%s0 + $0x8d0] sm:$0xff]
    %v303 = vld [vmem:[%s0 + $0x8d8] sm:$0xff]
    %v304 = vld [vmem:[%s0 + $0x8e0] sm:$0xff]
    %v305 = vld [vmem:[%s0 + $0x8e8] sm:$0xff]
    %v306 = vld [vmem:[%s0 + $0x8f0] sm:$0xff]
    %v307 = vld [vmem:[%s0 + $0x8f8] sm:$0xff]
    %v308 = vld [vmem:[%s0 + $0x900] sm:$0xff]
    %v309 = vld [vmem:[%s0 + $0x908] sm:$0xff]
    %v310 = vld [vmem:[%s0 + $0x910] sm:$0xff]
    %v311 = vld [vmem:[%s0 + $0x918] sm:$0xff]
    %v312 = vld [vmem:[%s0 + $0x920] sm:$0xff]
    %v313 = vld [vmem:[%s0 + $0x928] sm:$0xff]
    %v314 = vld [vmem:[%s0 + $0x930] sm:$0xff]
    %v315 = vld [vmem:[%s0 + $0x938] sm:$0xff]
    %v316 = vld [vmem:[%s0 + $0x940] sm:$0xff]
    %v317 = vld [vmem:[%s0 + $0x948] sm:$0xff]
    %v318 = vld [vmem:[%s0 + $0x950] sm:$0xff]
    %v319 = vld [vmem:[%s0 + $0x958] sm:$0xff]
    %v320 = vld [vmem:[%s0 + $0x960] sm:$0xff]
    %v321 = vld [vmem:[%s0 + $0x968] sm:$0xff]
    %v322 = vld [vmem:[%s0 + $0x970] sm:$0xff]
    %v323 = vld [vmem:[%s0 + $0x978] sm:$0xff]
    %v324 = vld [vmem:[%s0 + $0x980] sm:$0xff]
    %v325 = vld [vmem:[%s0 + $0x988] sm:$0xff]
    %v326 = vld [vmem:[%s0 + $0x990] sm:$0xff]
    %v327 = vld [vmem:[%s0 + $0x998] sm:$0xff]
    %v328 = vld [vmem:[%s0 + $0x9a0] sm:$0xff]
    %v329 = vld [vmem:[%s0 + $0x9a8] sm:$0xff]
    %v330 = vld [vmem:[%s0 + $0x9b0] sm:$0xff]
    %v331 = vld [vmem:[%s0 + $0x9b8] sm:$0xff]
    %v332 = vld [vmem:[%s0 + $0x9c0] sm:$0xff]
    %v333 = vld [vmem:[%s0 + $0x9c8] sm:$0xff]
    %v334 = vld [vmem:[%s0 + $0x9d0] sm:$0xff]
    %v335 = vld [vmem:[%s0 + $0x9d8] sm:$0xff]
    %v336 = vld [vmem:[%s0 + $0x9e0] sm:$0xff]
    %v337 = vld [vmem:[%s0 + $0x9e8] sm:$0xff]
    %v338 = vld [vmem:[%s0 + $0x9f0] sm:$0xff]
    %v339 = vld [vmem:[%s0 + $0x9f8] sm:$0xff]
    %v340 = vld [vmem:[%s0 + $0xa00] sm:$0xff]
    %v341 = vld [vmem:[%s0 + $0xa08] sm:$0xff]
    %v342 = vld [vmem:[%s0 + $0xa10] sm:$0xff]
    %v343 = vld [vmem:[%s0 + $0xa18] sm:$0xff]
    %v344 = vld [vmem:[%s0 + $0xa20] sm:$0xff]
    %v345 = vld [vmem:[%s0 + $0xa28] sm:$0xff]
    %v346 = vld [vmem:[%s0 + $0xa30] sm:$0xff]
    %v347 = vld [vmem:[%s0 + $0xa38] sm:$0xff]
    %v348 = vld [vmem:[%s0 + $0xa40] sm:$0xff]
    %v349 = vld [vmem:[%s0 + $0xa48] sm:$0xff]
    %v350 = vld [vmem:[%s0 + $0xa50] sm:$0xff]
    %v351 = vld [vmem:[%s0 + $0xa58] sm:$0xff]
    %v352 = vld [vmem:[%s0 + $0xa60] sm:$0xff]
    %v353 = vld [vmem:[%s0 + $0xa68] sm:$0xff]
    %v354 = vld [vmem:[%s0 + $0xa70] sm:$0xff]
    %v355 = vld [vmem:[%s0 + $0xa78] sm:$0xff]
    %v356 = vld [vmem:[%s0 + $0xa80] sm:$0xff]
    %v357 = vld [vmem:[%s0 + $0xa88] sm:$0xff]
    %v358 = vld [vmem:[%s0 + $0xa90] sm:$0xff]
    %v359 = vld [vmem:[%s0 + $0xa98] sm:$0xff]
    %v360 = vld [vmem:[%s0 + $0xaa0] sm:$0xff]
    %v361 = vld [vmem:[%s0 + $0xaa8] sm:$0xff]
    %v362 = vld [vmem:[%s0 + $0xab0] sm:$0xff]
    %v363 = vld [vmem:[%s0 + $0xab8] sm:$0xff]
    %v364 = vld [vmem:[%s0 + $0xac0] sm:$0xff]
    %v365 = vld [vmem:[%s0 + $0xac8] sm:$0xff]
    %v366 = vld [vmem:[%s0 + $0xad0] sm:$0xff]
    %v367 = vld [vmem:[%s0 + $0xad8] sm:$0xff]
    %v368 = vld [vmem:[%s0 + $0xae0] sm:$0xff]
    %v369 = vld [vmem:[%s0 + $0xae8] sm:$0xff]
    %v370 = vld [vmem:[%s0 + $0xaf0] sm:$0xff]
    %v371 = vld [vmem:[%s0 + $0xaf8] sm:$0xff]
    %v372 = vld [vmem:[%s0 + $0xb00] sm:$0xff]
    %v373 = vld [vmem:[%s0 + $0xb08] sm:$0xff]
    %v374 = vld [vmem:[%s0 + $0xb10] sm:$0xff]
    %v375 = vld [vmem:[%s0 + $0xb18] sm:$0xff]
    %v376 = vld [vmem:[%s0 + $0xb20] sm:$0xff]
    %v377 = vld [vmem:[%s0 + $0xb28] sm:$0xff]
    %v378 = vld [vmem:[%s0 + $0xb30] sm:$0xff]
    %v379 = vld [vmem:[%s0 + $0xb38] sm:$0xff]
    %v380 = vld [vmem:[%s0 + $0xb40] sm:$0xff]
    %v381 = vld [vmem:[%s0 + $0xb48] sm:$0xff]
    %v382 = vld [vmem:[%s0 + $0xb50] sm:$0xff]
    %v383 = vld [vmem:[%s0 + $0xb58] sm:$0xff]
    %v384 = vld [vmem:[%s0 + $0xb60] sm:$0xff]
    %v385 = vld [vmem:[%s0 + $0xb68] sm:$0xff]
    %v386 = vld [vmem:[%s0 + $0xb70] sm:$0xff]
    %v387 = vld [vmem:[%s0 + $0xb78] sm:$0xff]
    %v388 = vld [vmem:[%s0 + $0xb80] sm:$0xff]
    %v389 = vld [vmem:[%s0 + $0xb88] sm:$0xff]
    %v390 = vld [vmem:[%s0 + $0xb90] sm:$0xff]
    %v391 = vld [vmem:[%s0 + $0xb98] sm:$0xff]
    %v392 = vld [vmem:[%s0 + $0xba0] sm:$0xff]
    %v393 = vld [vmem:[%s0 + $0xba8] sm:$0xff]
    %v394 = vld [vmem:[%s0 + $0xbb0] sm:$0xff]
    %v395 = vld [vmem:[%s0 + $0xbb8] sm:$0xff]
    %v396 = vld [vmem:[%s0 + $0xbc0] sm:$0xff]
    %v397 = vld [vmem:[%s0 + $0xbc8] sm:$0xff]
    %v398 = vld [vmem:[%s0 + $0xbd0] sm:$0xff]
    %v399 = vld [vmem:[%s0 + $0xbd8] sm:$0xff]
    %v400 = vld [vmem:[%s0 + $0xbe0] sm:$0xff]
    %v401 = vld [vmem:[%s0 + $0xbe8] sm:$0xff]
    %v402 = vld [vmem:[%s0 + $0xbf0] sm:$0xff]
    %v403 = vld [vmem:[%s0 + $0xbf8] sm:$0xff]
    %v404 = vld [vmem:[%s0 + $0xc00] sm:$0xff]
    %v405 = vld [vmem:[%s0 + $0xc08] sm:$0xff]
    %v406 = vld [vmem:[%s0 + $0xc10] sm:$0xff]
    %v407 = vld [vmem:[%s0 + $0xc18] sm:$0xff]
    %v408 = vld [vmem:[%s0 + $0xc20] sm:$0xff]
    %v409 = vld [vmem:[%s0 + $0xc28] sm:$0xff]
    %v410 = vld [vmem:[%s0 + $0xc30] sm:$0xff]
    %v411 = vld [vmem:[%s0 + $0xc38] sm:$0xff]
    %v412 = vld [vmem:[%s0 + $0xc40] sm:$0xff]
    %v413 = vld [vmem:[%s0 + $0xc48] sm:$0xff]
    %v414 = vld [vmem:[%s0 + $0xc50] sm:$0xff]
    %v415 = vld [vmem:[%s0 + $0xc58] sm:$0xff]
    %v416 = vld [vmem:[%s0 + $0xc60] sm:$0xff]
    %v417 = vld [vmem:[%s0 + $0xc68] sm:$0xff]
    %v418 = vld [vmem:[%s0 + $0xc70] sm:$0xff]
    %v419 = vld [vmem:[%s0 + $0xc78] sm:$0xff]
    %v420 = vld [vmem:[%s0 + $0xc80] sm:$0xff]
    %v421 = vld [vmem:[%s0 + $0xc88] sm:$0xff]
    %v422 = vld [vmem:[%s0 + $0xc90] sm:$0xff]
    %v423 = vld [vmem:[%s0 + $0xc98] sm:$0xff]
    %v424 = vld [vmem:[%s0 + $0xca0] sm:$0xff]
    %v425 = vld [vmem:[%s0 + $0xca8] sm:$0xff]
    %v426 = vld [vmem:[%s0 + $0xcb0] sm:$0xff]
    %v427 = vld [vmem:[%s0 + $0xcb8] sm:$0xff]
    %v428 = vld [vmem:[%s0 + $0xcc0] sm:$0xff]
    %v429 = vld [vmem:[%s0 + $0xcc8] sm:$0xff]
    %v430 = vld [vmem:[%s0 + $0xcd0] sm:$0xff]
    %v431 = vld [vmem:[%s0 + $0xcd8] sm:$0xff]
    %v432 = vld [vmem:[%s0 + $0xce0] sm:$0xff]
    %v433 = vld [vmem:[%s0 + $0xce8] sm:$0xff]
    %v434 = vld [vmem:[%s0 + $0xcf0] sm:$0xff]
    %v435 = vld [vmem:[%s0 + $0xcf8] sm:$0xff]
    %v436 = vld [vmem:[%s0 + $0xd00] sm:$0xff]
    %v437 = vld [vmem:[%s0 + $0xd08] sm:$0xff]
    %v438 = vld [vmem:[%s0 + $0xd10] sm:$0xff]
    %v439 = vld [vmem:[%s0 + $0xd18] sm:$0xff]
    %v440 = vld [vmem:[%s0 + $0xd20] sm:$0xff]
    %v441 = vld [vmem:[%s0 + $0xd28] sm:$0xff]
    %v442 = vld [vmem:[%s0 + $0xd30] sm:$0xff]
    %v443 = vld [vmem:[%s0 + $0xd38] sm:$0xff]
    %v444 = vld [vmem:[%s0 + $0xd40] sm:$0xff]
    %v445 = vld [vmem:[%s0 + $0xd48] sm:$0xff]
    %v446 = vld [vmem:[%s0 + $0xd50] sm:$0xff]
    %v447 = vld [vmem:[%s0 + $0xd58] sm:$0xff]
    %v448 = vld [vmem:[%s0 + $0xd60] sm:$0xff]
    %v449 = vld [vmem:[%s0 + $0xd68] sm:$0xff]
    %v450 = vld [vmem:[%s0 + $0xd70] sm:$0xff]
    %v451 = vld [vmem:[%s0 + $0xd78] sm:$0xff]
    %v452 = vld [vmem:[%s0 + $0xd80] sm:$0xff]
    %v453 = vld [vmem:[%s0 + $0xd88] sm:$0xff]
    %v454 = vld [vmem:[%s0 + $0xd90] sm:$0xff]
    %v455 = vld [vmem:[%s0 + $0xd98] sm:$0xff]
    %v456 = vld [vmem:[%s0 + $0xda0] sm:$0xff]
    %v457 = vld [vmem:[%s0 + $0xda8] sm:$0xff]
    %v458 = vld [vmem:[%s0 + $0xdb0] sm:$0xff]
    %v459 = vld [vmem:[%s0 + $0xdb8] sm:$0xff]
    %v460 = vld [vmem:[%s0 + $0xdc0] sm:$0xff]
    %v461 = vld [vmem:[%s0 + $0xdc8] sm:$0xff]
    %v462 = vld [vmem:[%s0 + $0xdd0] sm:$0xff]
    %v463 = vld [vmem:[%s0 + $0xdd8] sm:$0xff]
    %v464 = vld [vmem:[%s0 + $0xde0] sm:$0xff]
    %v465 = vld [vmem:[%s0 + $0xde8] sm:$0xff]
    %v466 = vld [vmem:[%s0 + $0xdf0] sm:$0xff]
    %v467 = vld [vmem:[%s0 + $0xdf8] sm:$0xff]
    %v468 = vld [vmem:[%s0 + $0xe00] sm:$0xff]
    %v469 = vld [vmem:[%s0 + $0xe08] sm:$0xff]
    %v470 = vld [vmem:[%s0 + $0xe10] sm:$0xff]
    %v471 = vld [vmem:[%s0 + $0xe18] sm:$0xff]
    %v472 = vld [vmem:[%s0 + $0xe20] sm:$0xff]
    %v473 = vld [vmem:[%s0 + $0xe28] sm:$0xff]
    %v474 = vld [vmem:[%s0 + $0xe30] sm:$0xff]
    %v475 = vld [vmem:[%s0 + $0xe38] sm:$0xff]
    %v476 = vld [vmem:[%s0 + $0xe40] sm:$0xff]
    %v477 = vld [vmem:[%s0 + $0xe48] sm:$0xff]
    %v478 = vld [vmem:[%s0 + $0xe50] sm:$0xff]
    %v479 = vld [vmem:[%s0 + $0xe58] sm:$0xff]
    %v480 = vld [vmem:[%s0 + $0xe60] sm:$0xff]
    %v481 = vld [vmem:[%s0 + $0xe68] sm:$0xff]
    %v482 = vld [vmem:[%s0 + $0xe70] sm:$0xff]
    %v483 = vld [vmem:[%s0 + $0xe78] sm:$0xff]
    %v484 = vld [vmem:[%s0 + $0xe80] sm:$0xff]
    %v485 = vld [vmem:[%s0 + $0xe88] sm:$0xff]
    %v486 = vld [vmem:[%s0 + $0xe90] sm:$0xff]
    %v487 = vld [vmem:[%s0 + $0xe98] sm:$0xff]
    %v488 = vld [vmem:[%s0 + $0xea0] sm:$0xff]
    %v489 = vld [vmem:[%s0 + $0xea8] sm:$0xff]
    %v490 = vld [vmem:[%s0 + $0xeb0] sm:$0xff]
    %v491 = vld [vmem:[%s0 + $0xeb8] sm:$0xff]
    %v492 = vld [vmem:[%s0 + $0xec0] sm:$0xff]
    %v493 = vld [vmem:[%s0 + $0xec8] sm:$0xff]
    %v494 = vld [vmem:[%s0 + $0xed0] sm:$0xff]
    %v495 = vld [vmem:[%s0 + $0xed8] sm:$0xff]
    %v496 = vld [vmem:[%s0 + $0xee0] sm:$0xff]
    %v497 = vld [vmem:[%s0 + $0xee8] sm:$0xff]
    %v498 = vld [vmem:[%s0 + $0xef0] sm:$0xff]
    %v499 = vld [vmem:[%s0 + $0xef8] sm:$0xff]
    %v500 = vld [vmem:[%s0 + $0xf00] sm:$0xff]
    %v501 = vld [vmem:[%s0 + $0xf08] sm:$0xff]
    %v502 = vld [vmem:[%s0 + $0xf10] sm:$0xff]
    %v503 = vld [vmem:[%s0 + $0xf18] sm:$0xff]
    %v504 = vld [vmem:[%s0 + $0xf20] sm:$0xff]
    %v505 = vld [vmem:[%s0 + $0xf28] sm:$0xff]
    %v506 = vld [vmem:[%s0 + $0xf30] sm:$0xff]
    %v507 = vld [vmem:[%s0 + $0xf38] sm:$0xff]
    %v508 = vld [vmem:[%s0 + $0xf40] sm:$0xff]
    %v509 = vld [vmem:[%s0 + $0xf48] sm:$0xff]
    %v510 = vld [vmem:[%s0 + $0xf50] sm:$0xff]
    %v511 = vld [vmem:[%s0 + $0xf58] sm:$0xff]
    %v512 = vld [vmem:[%s0 + $0xf60] sm:$0xff]
    %v513 = vld [vmem:[%s0 + $0xf68] sm:$0xff]
    %v514 = vld [vmem:[%s0 + $0xf70] sm:$0xff]
    %v515 = vld [vmem:[%s0 + $0xf78] sm:$0xff]
    %v516 = vld [vmem:[%s0 + $0xf80] sm:$0xff]
    %v517 = vld [vmem:[%s0 + $0xf88] sm:$0xff]
    %v518 = vld [vmem:[%s0 + $0xf90] sm:$0xff]
    %v519 = vld [vmem:[%s0 + $0xf98] sm:$0xff]
    %v520 = vld [vmem:[%s0 + $0xfa0] sm:$0xff]
    %v521 = vld [vmem:[%s0 + $0xfa8] sm:$0xff]
    %v522 = vld [vmem:[%s0 + $0xfb0] sm:$0xff]
    %v523 = vld [vmem:[%s0 + $0xfb8] sm:$0xff]
    %v524 = vld [vmem:[%s0 + $0xfc0] sm:$0xff]
    %v525 = vld [vmem:[%s0 + $0xfc8] sm:$0xff]
    %v526 = vld [vmem:[%s0 + $0xfd0] sm:$0xff]
    %v527 = vld [vmem:[%s0 + $0xfd8] sm:$0xff]
    %v528 = vld [vmem:[%s0 + $0xfe0] sm:$0xff]
    %v529 = vld [vmem:[%s0 + $0xfe8] sm:$0xff]
    %v530 = vld [vmem:[%s0 + $0xff0] sm:$0xff]
    %v531 = vld [vmem:[%s0 + $0xff8] sm:$0xff]
    %vm532 = vcmask 400384
    %v533 = vsel %vm532, %v20, 0.0
    %534 = vadd.xlane.f32.xlu0 %v533
    %v535 = vpop.xlane.xlu0 %534
    %v536 = vsel %vm532, %v21, 0.0
    %537 = vadd.xlane.f32.xlu0 %v536
    %v538 = vpop.xlane.xlu0 %537
    %v539 = vsel %vm532, %v22, 0.0
    %540 = vadd.xlane.f32.xlu0 %v539
    %v541 = vpop.xlane.xlu0 %540
    %v542 = vsel %vm532, %v23, 0.0
    %543 = vadd.xlane.f32.xlu0 %v542
    %v544 = vpop.xlane.xlu0 %543
    %v545 = vsel %vm532, %v24, 0.0
    %546 = vadd.xlane.f32.xlu0 %v545
    %v547 = vpop.xlane.xlu0 %546
    %v548 = vsel %vm532, %v25, 0.0
    %549 = vadd.xlane.f32.xlu0 %v548
    %v550 = vpop.xlane.xlu0 %549
    %v551 = vsel %vm532, %v26, 0.0
    %552 = vadd.xlane.f32.xlu0 %v551
    %v553 = vpop.xlane.xlu0 %552
    %v554 = vsel %vm532, %v27, 0.0
    %555 = vadd.xlane.f32.xlu0 %v554
    %v556 = vpop.xlane.xlu0 %555
    %v557 = vsel %vm532, %v28, 0.0
    %558 = vadd.xlane.f32.xlu0 %v557
    %v559 = vpop.xlane.xlu0 %558
    %v560 = vsel %vm532, %v29, 0.0
    %561 = vadd.xlane.f32.xlu0 %v560
    %v562 = vpop.xlane.xlu0 %561
    %v563 = vsel %vm532, %v30, 0.0
    %564 = vadd.xlane.f32.xlu0 %v563
    %v565 = vpop.xlane.xlu0 %564
    %v566 = vsel %vm532, %v31, 0.0
    %567 = vadd.xlane.f32.xlu0 %v566
    %v568 = vpop.xlane.xlu0 %567
    %v569 = vsel %vm532, %v32, 0.0
    %570 = vadd.xlane.f32.xlu0 %v569
    %v571 = vpop.xlane.xlu0 %570
    %v572 = vsel %vm532, %v33, 0.0
    %573 = vadd.xlane.f32.xlu0 %v572
    %v574 = vpop.xlane.xlu0 %573
    %v575 = vsel %vm532, %v34, 0.0
    %576 = vadd.xlane.f32.xlu0 %v575
    %v577 = vpop.xlane.xlu0 %576
    %v578 = vsel %vm532, %v35, 0.0
    %579 = vadd.xlane.f32.xlu0 %v578
    %v580 = vpop.xlane.xlu0 %579
    %v581 = vsel %vm532, %v36, 0.0
    %582 = vadd.xlane.f32.xlu0 %v581
    %v583 = vpop.xlane.xlu0 %582
    %v584 = vsel %vm532, %v37, 0.0
    %585 = vadd.xlane.f32.xlu0 %v584
    %v586 = vpop.xlane.xlu0 %585
    %v587 = vsel %vm532, %v38, 0.0
    %588 = vadd.xlane.f32.xlu0 %v587
    %v589 = vpop.xlane.xlu0 %588
    %v590 = vsel %vm532, %v39, 0.0
    %591 = vadd.xlane.f32.xlu0 %v590
    %v592 = vpop.xlane.xlu0 %591
    %v593 = vsel %vm532, %v40, 0.0
    %594 = vadd.xlane.f32.xlu0 %v593
    %v595 = vpop.xlane.xlu0 %594
    %v596 = vsel %vm532, %v41, 0.0
    %597 = vadd.xlane.f32.xlu0 %v596
    %v598 = vpop.xlane.xlu0 %597
    %v599 = vsel %vm532, %v42, 0.0
    %600 = vadd.xlane.f32.xlu0 %v599
    %v601 = vpop.xlane.xlu0 %600
    %v602 = vsel %vm532, %v43, 0.0
    %603 = vadd.xlane.f32.xlu0 %v602
    %v604 = vpop.xlane.xlu0 %603
    %v605 = vsel %vm532, %v44, 0.0
    %606 = vadd.xlane.f32.xlu0 %v605
    %v607 = vpop.xlane.xlu0 %606
    %v608 = vsel %vm532, %v45, 0.0
    %609 = vadd.xlane.f32.xlu0 %v608
    %v610 = vpop.xlane.xlu0 %609
    %v611 = vsel %vm532, %v46, 0.0
    %612 = vadd.xlane.f32.xlu0 %v611
    %v613 = vpop.xlane.xlu0 %612
    %v614 = vsel %vm532, %v47, 0.0
    %615 = vadd.xlane.f32.xlu0 %v614
    %v616 = vpop.xlane.xlu0 %615
    %v617 = vsel %vm532, %v48, 0.0
    %618 = vadd.xlane.f32.xlu0 %v617
    %v619 = vpop.xlane.xlu0 %618
    %v620 = vsel %vm532, %v49, 0.0
    %621 = vadd.xlane.f32.xlu0 %v620
    %v622 = vpop.xlane.xlu0 %621
    %v623 = vsel %vm532, %v50, 0.0
    %624 = vadd.xlane.f32.xlu0 %v623
    %v625 = vpop.xlane.xlu0 %624
    %v626 = vsel %vm532, %v51, 0.0
    %627 = vadd.xlane.f32.xlu0 %v626
    %v628 = vpop.xlane.xlu0 %627
    %v629 = vsel %vm532, %v52, 0.0
    %630 = vadd.xlane.f32.xlu0 %v629
    %v631 = vpop.xlane.xlu0 %630
    %v632 = vsel %vm532, %v53, 0.0
    %633 = vadd.xlane.f32.xlu0 %v632
    %v634 = vpop.xlane.xlu0 %633
    %v635 = vsel %vm532, %v54, 0.0
    %636 = vadd.xlane.f32.xlu0 %v635
    %v637 = vpop.xlane.xlu0 %636
    %v638 = vsel %vm532, %v55, 0.0
    %639 = vadd.xlane.f32.xlu0 %v638
    %v640 = vpop.xlane.xlu0 %639
    %v641 = vsel %vm532, %v56, 0.0
    %642 = vadd.xlane.f32.xlu0 %v641
    %v643 = vpop.xlane.xlu0 %642
    %v644 = vsel %vm532, %v57, 0.0
    %645 = vadd.xlane.f32.xlu0 %v644
    %v646 = vpop.xlane.xlu0 %645
    %v647 = vsel %vm532, %v58, 0.0
    %648 = vadd.xlane.f32.xlu0 %v647
    %v649 = vpop.xlane.xlu0 %648
    %v650 = vsel %vm532, %v59, 0.0
    %651 = vadd.xlane.f32.xlu0 %v650
    %v652 = vpop.xlane.xlu0 %651
    %v653 = vsel %vm532, %v60, 0.0
    %654 = vadd.xlane.f32.xlu0 %v653
    %v655 = vpop.xlane.xlu0 %654
    %v656 = vsel %vm532, %v61, 0.0
    %657 = vadd.xlane.f32.xlu0 %v656
    %v658 = vpop.xlane.xlu0 %657
    %v659 = vsel %vm532, %v62, 0.0
    %660 = vadd.xlane.f32.xlu0 %v659
    %v661 = vpop.xlane.xlu0 %660
    %v662 = vsel %vm532, %v63, 0.0
    %663 = vadd.xlane.f32.xlu0 %v662
    %v664 = vpop.xlane.xlu0 %663
    %v665 = vsel %vm532, %v64, 0.0
    %666 = vadd.xlane.f32.xlu0 %v665
    %v667 = vpop.xlane.xlu0 %666
    %v668 = vsel %vm532, %v65, 0.0
    %669 = vadd.xlane.f32.xlu0 %v668
    %v670 = vpop.xlane.xlu0 %669
    %v671 = vsel %vm532, %v66, 0.0
    %672 = vadd.xlane.f32.xlu0 %v671
    %v673 = vpop.xlane.xlu0 %672
    %v674 = vsel %vm532, %v67, 0.0
    %675 = vadd.xlane.f32.xlu0 %v674
    %v676 = vpop.xlane.xlu0 %675
    %v677 = vsel %vm532, %v68, 0.0
    %678 = vadd.xlane.f32.xlu0 %v677
    %v679 = vpop.xlane.xlu0 %678
    %v680 = vsel %vm532, %v69, 0.0
    %681 = vadd.xlane.f32.xlu0 %v680
    %v682 = vpop.xlane.xlu0 %681
    %v683 = vsel %vm532, %v70, 0.0
    %684 = vadd.xlane.f32.xlu0 %v683
    %v685 = vpop.xlane.xlu0 %684
    %v686 = vsel %vm532, %v71, 0.0
    %687 = vadd.xlane.f32.xlu0 %v686
    %v688 = vpop.xlane.xlu0 %687
    %v689 = vsel %vm532, %v72, 0.0
    %690 = vadd.xlane.f32.xlu0 %v689
    %v691 = vpop.xlane.xlu0 %690
    %v692 = vsel %vm532, %v73, 0.0
    %693 = vadd.xlane.f32.xlu0 %v692
    %v694 = vpop.xlane.xlu0 %693
    %v695 = vsel %vm532, %v74, 0.0
    %696 = vadd.xlane.f32.xlu0 %v695
    %v697 = vpop.xlane.xlu0 %696
    %v698 = vsel %vm532, %v75, 0.0
    %699 = vadd.xlane.f32.xlu0 %v698
    %v700 = vpop.xlane.xlu0 %699
    %v701 = vsel %vm532, %v76, 0.0
    %702 = vadd.xlane.f32.xlu0 %v701
    %v703 = vpop.xlane.xlu0 %702
    %v704 = vsel %vm532, %v77, 0.0
    %705 = vadd.xlane.f32.xlu0 %v704
    %v706 = vpop.xlane.xlu0 %705
    %v707 = vsel %vm532, %v78, 0.0
    %708 = vadd.xlane.f32.xlu0 %v707
    %v709 = vpop.xlane.xlu0 %708
    %v710 = vsel %vm532, %v79, 0.0
    %711 = vadd.xlane.f32.xlu0 %v710
    %v712 = vpop.xlane.xlu0 %711
    %v713 = vsel %vm532, %v80, 0.0
    %714 = vadd.xlane.f32.xlu0 %v713
    %v715 = vpop.xlane.xlu0 %714
    %v716 = vsel %vm532, %v81, 0.0
    %717 = vadd.xlane.f32.xlu0 %v716
    %v718 = vpop.xlane.xlu0 %717
    %v719 = vsel %vm532, %v82, 0.0
    %720 = vadd.xlane.f32.xlu0 %v719
    %v721 = vpop.xlane.xlu0 %720
    %v722 = vsel %vm532, %v83, 0.0
    %723 = vadd.xlane.f32.xlu0 %v722
    %v724 = vpop.xlane.xlu0 %723
    %v725 = vsel %vm532, %v84, 0.0
    %726 = vadd.xlane.f32.xlu0 %v725
    %v727 = vpop.xlane.xlu0 %726
    %v728 = vsel %vm532, %v85, 0.0
    %729 = vadd.xlane.f32.xlu0 %v728
    %v730 = vpop.xlane.xlu0 %729
    %v731 = vsel %vm532, %v86, 0.0
    %732 = vadd.xlane.f32.xlu0 %v731
    %v733 = vpop.xlane.xlu0 %732
    %v734 = vsel %vm532, %v87, 0.0
    %735 = vadd.xlane.f32.xlu0 %v734
    %v736 = vpop.xlane.xlu0 %735
    %v737 = vsel %vm532, %v88, 0.0
    %738 = vadd.xlane.f32.xlu0 %v737
    %v739 = vpop.xlane.xlu0 %738
    %v740 = vsel %vm532, %v89, 0.0
    %741 = vadd.xlane.f32.xlu0 %v740
    %v742 = vpop.xlane.xlu0 %741
    %v743 = vsel %vm532, %v90, 0.0
    %744 = vadd.xlane.f32.xlu0 %v743
    %v745 = vpop.xlane.xlu0 %744
    %v746 = vsel %vm532, %v91, 0.0
    %747 = vadd.xlane.f32.xlu0 %v746
    %v748 = vpop.xlane.xlu0 %747
    %v749 = vsel %vm532, %v92, 0.0
    %750 = vadd.xlane.f32.xlu0 %v749
    %v751 = vpop.xlane.xlu0 %750
    %v752 = vsel %vm532, %v93, 0.0
    %753 = vadd.xlane.f32.xlu0 %v752
    %v754 = vpop.xlane.xlu0 %753
    %v755 = vsel %vm532, %v94, 0.0
    %756 = vadd.xlane.f32.xlu0 %v755
    %v757 = vpop.xlane.xlu0 %756
    %v758 = vsel %vm532, %v95, 0.0
    %759 = vadd.xlane.f32.xlu0 %v758
    %v760 = vpop.xlane.xlu0 %759
    %v761 = vsel %vm532, %v96, 0.0
    %762 = vadd.xlane.f32.xlu0 %v761
    %v763 = vpop.xlane.xlu0 %762
    %v764 = vsel %vm532, %v97, 0.0
    %765 = vadd.xlane.f32.xlu0 %v764
    %v766 = vpop.xlane.xlu0 %765
    %v767 = vsel %vm532, %v98, 0.0
    %768 = vadd.xlane.f32.xlu0 %v767
    %v769 = vpop.xlane.xlu0 %768
    %v770 = vsel %vm532, %v99, 0.0
    %771 = vadd.xlane.f32.xlu0 %v770
    %v772 = vpop.xlane.xlu0 %771
    %v773 = vsel %vm532, %v100, 0.0
    %774 = vadd.xlane.f32.xlu0 %v773
    %v775 = vpop.xlane.xlu0 %774
    %v776 = vsel %vm532, %v101, 0.0
    %777 = vadd.xlane.f32.xlu0 %v776
    %v778 = vpop.xlane.xlu0 %777
    %v779 = vsel %vm532, %v102, 0.0
    %780 = vadd.xlane.f32.xlu0 %v779
    %v781 = vpop.xlane.xlu0 %780
    %v782 = vsel %vm532, %v103, 0.0
    %783 = vadd.xlane.f32.xlu0 %v782
    %v784 = vpop.xlane.xlu0 %783
    %v785 = vsel %vm532, %v104, 0.0
    %786 = vadd.xlane.f32.xlu0 %v785
    %v787 = vpop.xlane.xlu0 %786
    %v788 = vsel %vm532, %v105, 0.0
    %789 = vadd.xlane.f32.xlu0 %v788
    %v790 = vpop.xlane.xlu0 %789
    %v791 = vsel %vm532, %v106, 0.0
    %792 = vadd.xlane.f32.xlu0 %v791
    %v793 = vpop.xlane.xlu0 %792
    %v794 = vsel %vm532, %v107, 0.0
    %795 = vadd.xlane.f32.xlu0 %v794
    %v796 = vpop.xlane.xlu0 %795
    %v797 = vsel %vm532, %v108, 0.0
    %798 = vadd.xlane.f32.xlu0 %v797
    %v799 = vpop.xlane.xlu0 %798
    %v800 = vsel %vm532, %v109, 0.0
    %801 = vadd.xlane.f32.xlu0 %v800
    %v802 = vpop.xlane.xlu0 %801
    %v803 = vsel %vm532, %v110, 0.0
    %804 = vadd.xlane.f32.xlu0 %v803
    %v805 = vpop.xlane.xlu0 %804
    %v806 = vsel %vm532, %v111, 0.0
    %807 = vadd.xlane.f32.xlu0 %v806
    %v808 = vpop.xlane.xlu0 %807
    %v809 = vsel %vm532, %v112, 0.0
    %810 = vadd.xlane.f32.xlu0 %v809
    %v811 = vpop.xlane.xlu0 %810
    %v812 = vsel %vm532, %v113, 0.0
    %813 = vadd.xlane.f32.xlu0 %v812
    %v814 = vpop.xlane.xlu0 %813
    %v815 = vsel %vm532, %v114, 0.0
    %816 = vadd.xlane.f32.xlu0 %v815
    %v817 = vpop.xlane.xlu0 %816
    %v818 = vsel %vm532, %v115, 0.0
    %819 = vadd.xlane.f32.xlu0 %v818
    %v820 = vpop.xlane.xlu0 %819
    %v821 = vsel %vm532, %v116, 0.0
    %822 = vadd.xlane.f32.xlu0 %v821
    %v823 = vpop.xlane.xlu0 %822
    %v824 = vsel %vm532, %v117, 0.0
    %825 = vadd.xlane.f32.xlu0 %v824
    %v826 = vpop.xlane.xlu0 %825
    %v827 = vsel %vm532, %v118, 0.0
    %828 = vadd.xlane.f32.xlu0 %v827
    %v829 = vpop.xlane.xlu0 %828
    %v830 = vsel %vm532, %v119, 0.0
    %831 = vadd.xlane.f32.xlu0 %v830
    %v832 = vpop.xlane.xlu0 %831
    %v833 = vsel %vm532, %v120, 0.0
    %834 = vadd.xlane.f32.xlu0 %v833
    %v835 = vpop.xlane.xlu0 %834
    %v836 = vsel %vm532, %v121, 0.0
    %837 = vadd.xlane.f32.xlu0 %v836
    %v838 = vpop.xlane.xlu0 %837
    %v839 = vsel %vm532, %v122, 0.0
    %840 = vadd.xlane.f32.xlu0 %v839
    %v841 = vpop.xlane.xlu0 %840
    %v842 = vsel %vm532, %v123, 0.0
    %843 = vadd.xlane.f32.xlu0 %v842
    %v844 = vpop.xlane.xlu0 %843
    %v845 = vsel %vm532, %v124, 0.0
    %846 = vadd.xlane.f32.xlu0 %v845
    %v847 = vpop.xlane.xlu0 %846
    %v848 = vsel %vm532, %v125, 0.0
    %849 = vadd.xlane.f32.xlu0 %v848
    %v850 = vpop.xlane.xlu0 %849
    %v851 = vsel %vm532, %v126, 0.0
    %852 = vadd.xlane.f32.xlu0 %v851
    %v853 = vpop.xlane.xlu0 %852
    %v854 = vsel %vm532, %v127, 0.0
    %855 = vadd.xlane.f32.xlu0 %v854
    %v856 = vpop.xlane.xlu0 %855
    %v857 = vsel %vm532, %v128, 0.0
    %858 = vadd.xlane.f32.xlu0 %v857
    %v859 = vpop.xlane.xlu0 %858
    %v860 = vsel %vm532, %v129, 0.0
    %861 = vadd.xlane.f32.xlu0 %v860
    %v862 = vpop.xlane.xlu0 %861
    %v863 = vsel %vm532, %v130, 0.0
    %864 = vadd.xlane.f32.xlu0 %v863
    %v865 = vpop.xlane.xlu0 %864
    %v866 = vsel %vm532, %v131, 0.0
    %867 = vadd.xlane.f32.xlu0 %v866
    %v868 = vpop.xlane.xlu0 %867
    %v869 = vsel %vm532, %v132, 0.0
    %870 = vadd.xlane.f32.xlu0 %v869
    %v871 = vpop.xlane.xlu0 %870
    %v872 = vsel %vm532, %v133, 0.0
    %873 = vadd.xlane.f32.xlu0 %v872
    %v874 = vpop.xlane.xlu0 %873
    %v875 = vsel %vm532, %v134, 0.0
    %876 = vadd.xlane.f32.xlu0 %v875
    %v877 = vpop.xlane.xlu0 %876
    %v878 = vsel %vm532, %v135, 0.0
    %879 = vadd.xlane.f32.xlu0 %v878
    %v880 = vpop.xlane.xlu0 %879
    %v881 = vsel %vm532, %v136, 0.0
    %882 = vadd.xlane.f32.xlu0 %v881
    %v883 = vpop.xlane.xlu0 %882
    %v884 = vsel %vm532, %v137, 0.0
    %885 = vadd.xlane.f32.xlu0 %v884
    %v886 = vpop.xlane.xlu0 %885
    %v887 = vsel %vm532, %v138, 0.0
    %888 = vadd.xlane.f32.xlu0 %v887
    %v889 = vpop.xlane.xlu0 %888
    %v890 = vsel %vm532, %v139, 0.0
    %891 = vadd.xlane.f32.xlu0 %v890
    %v892 = vpop.xlane.xlu0 %891
    %v893 = vsel %vm532, %v140, 0.0
    %894 = vadd.xlane.f32.xlu0 %v893
    %v895 = vpop.xlane.xlu0 %894
    %v896 = vsel %vm532, %v141, 0.0
    %897 = vadd.xlane.f32.xlu0 %v896
    %v898 = vpop.xlane.xlu0 %897
    %v899 = vsel %vm532, %v142, 0.0
    %900 = vadd.xlane.f32.xlu0 %v899
    %v901 = vpop.xlane.xlu0 %900
    %v902 = vsel %vm532, %v143, 0.0
    %903 = vadd.xlane.f32.xlu0 %v902
    %v904 = vpop.xlane.xlu0 %903
    %v905 = vsel %vm532, %v144, 0.0
    %906 = vadd.xlane.f32.xlu0 %v905
    %v907 = vpop.xlane.xlu0 %906
    %v908 = vsel %vm532, %v145, 0.0
    %909 = vadd.xlane.f32.xlu0 %v908
    %v910 = vpop.xlane.xlu0 %909
    %v911 = vsel %vm532, %v146, 0.0
    %912 = vadd.xlane.f32.xlu0 %v911
    %v913 = vpop.xlane.xlu0 %912
    %v914 = vsel %vm532, %v147, 0.0
    %915 = vadd.xlane.f32.xlu0 %v914
    %v916 = vpop.xlane.xlu0 %915
    %v917 = vsel %vm532, %v148, 0.0
    %918 = vadd.xlane.f32.xlu0 %v917
    %v919 = vpop.xlane.xlu0 %918
    %v920 = vsel %vm532, %v149, 0.0
    %921 = vadd.xlane.f32.xlu0 %v920
    %v922 = vpop.xlane.xlu0 %921
    %v923 = vsel %vm532, %v150, 0.0
    %924 = vadd.xlane.f32.xlu0 %v923
    %v925 = vpop.xlane.xlu0 %924
    %v926 = vsel %vm532, %v151, 0.0
    %927 = vadd.xlane.f32.xlu0 %v926
    %v928 = vpop.xlane.xlu0 %927
    %v929 = vsel %vm532, %v152, 0.0
    %930 = vadd.xlane.f32.xlu0 %v929
    %v931 = vpop.xlane.xlu0 %930
    %v932 = vsel %vm532, %v153, 0.0
    %933 = vadd.xlane.f32.xlu0 %v932
    %v934 = vpop.xlane.xlu0 %933
    %v935 = vsel %vm532, %v154, 0.0
    %936 = vadd.xlane.f32.xlu0 %v935
    %v937 = vpop.xlane.xlu0 %936
    %v938 = vsel %vm532, %v155, 0.0
    %939 = vadd.xlane.f32.xlu0 %v938
    %v940 = vpop.xlane.xlu0 %939
    %v941 = vsel %vm532, %v156, 0.0
    %942 = vadd.xlane.f32.xlu0 %v941
    %v943 = vpop.xlane.xlu0 %942
    %v944 = vsel %vm532, %v157, 0.0
    %945 = vadd.xlane.f32.xlu0 %v944
    %v946 = vpop.xlane.xlu0 %945
    %v947 = vsel %vm532, %v158, 0.0
    %948 = vadd.xlane.f32.xlu0 %v947
    %v949 = vpop.xlane.xlu0 %948
    %v950 = vsel %vm532, %v159, 0.0
    %951 = vadd.xlane.f32.xlu0 %v950
    %v952 = vpop.xlane.xlu0 %951
    %v953 = vsel %vm532, %v160, 0.0
    %954 = vadd.xlane.f32.xlu0 %v953
    %v955 = vpop.xlane.xlu0 %954
    %v956 = vsel %vm532, %v161, 0.0
    %957 = vadd.xlane.f32.xlu0 %v956
    %v958 = vpop.xlane.xlu0 %957
    %v959 = vsel %vm532, %v162, 0.0
    %960 = vadd.xlane.f32.xlu0 %v959
    %v961 = vpop.xlane.xlu0 %960
    %v962 = vsel %vm532, %v163, 0.0
    %963 = vadd.xlane.f32.xlu0 %v962
    %v964 = vpop.xlane.xlu0 %963
    %v965 = vsel %vm532, %v164, 0.0
    %966 = vadd.xlane.f32.xlu0 %v965
    %v967 = vpop.xlane.xlu0 %966
    %v968 = vsel %vm532, %v165, 0.0
    %969 = vadd.xlane.f32.xlu0 %v968
    %v970 = vpop.xlane.xlu0 %969
    %v971 = vsel %vm532, %v166, 0.0
    %972 = vadd.xlane.f32.xlu0 %v971
    %v973 = vpop.xlane.xlu0 %972
    %v974 = vsel %vm532, %v167, 0.0
    %975 = vadd.xlane.f32.xlu0 %v974
    %v976 = vpop.xlane.xlu0 %975
    %v977 = vsel %vm532, %v168, 0.0
    %978 = vadd.xlane.f32.xlu0 %v977
    %v979 = vpop.xlane.xlu0 %978
    %v980 = vsel %vm532, %v169, 0.0
    %981 = vadd.xlane.f32.xlu0 %v980
    %v982 = vpop.xlane.xlu0 %981
    %v983 = vsel %vm532, %v170, 0.0
    %984 = vadd.xlane.f32.xlu0 %v983
    %v985 = vpop.xlane.xlu0 %984
    %v986 = vsel %vm532, %v171, 0.0
    %987 = vadd.xlane.f32.xlu0 %v986
    %v988 = vpop.xlane.xlu0 %987
    %v989 = vsel %vm532, %v172, 0.0
    %990 = vadd.xlane.f32.xlu0 %v989
    %v991 = vpop.xlane.xlu0 %990
    %v992 = vsel %vm532, %v173, 0.0
    %993 = vadd.xlane.f32.xlu0 %v992
    %v994 = vpop.xlane.xlu0 %993
    %v995 = vsel %vm532, %v174, 0.0
    %996 = vadd.xlane.f32.xlu0 %v995
    %v997 = vpop.xlane.xlu0 %996
    %v998 = vsel %vm532, %v175, 0.0
    %999 = vadd.xlane.f32.xlu0 %v998
    %v1000 = vpop.xlane.xlu0 %999
    %v1001 = vsel %vm532, %v176, 0.0
    %1002 = vadd.xlane.f32.xlu0 %v1001
    %v1003 = vpop.xlane.xlu0 %1002
    %v1004 = vsel %vm532, %v177, 0.0
    %1005 = vadd.xlane.f32.xlu0 %v1004
    %v1006 = vpop.xlane.xlu0 %1005
    %v1007 = vsel %vm532, %v178, 0.0
    %1008 = vadd.xlane.f32.xlu0 %v1007
    %v1009 = vpop.xlane.xlu0 %1008
    %v1010 = vsel %vm532, %v179, 0.0
    %1011 = vadd.xlane.f32.xlu0 %v1010
    %v1012 = vpop.xlane.xlu0 %1011
    %v1013 = vsel %vm532, %v180, 0.0
    %1014 = vadd.xlane.f32.xlu0 %v1013
    %v1015 = vpop.xlane.xlu0 %1014
    %v1016 = vsel %vm532, %v181, 0.0
    %1017 = vadd.xlane.f32.xlu0 %v1016
    %v1018 = vpop.xlane.xlu0 %1017
    %v1019 = vsel %vm532, %v182, 0.0
    %1020 = vadd.xlane.f32.xlu0 %v1019
    %v1021 = vpop.xlane.xlu0 %1020
    %v1022 = vsel %vm532, %v183, 0.0
    %1023 = vadd.xlane.f32.xlu0 %v1022
    %v1024 = vpop.xlane.xlu0 %1023
    %v1025 = vsel %vm532, %v184, 0.0
    %1026 = vadd.xlane.f32.xlu0 %v1025
    %v1027 = vpop.xlane.xlu0 %1026
    %v1028 = vsel %vm532, %v185, 0.0
    %1029 = vadd.xlane.f32.xlu0 %v1028
    %v1030 = vpop.xlane.xlu0 %1029
    %v1031 = vsel %vm532, %v186, 0.0
    %1032 = vadd.xlane.f32.xlu0 %v1031
    %v1033 = vpop.xlane.xlu0 %1032
    %v1034 = vsel %vm532, %v187, 0.0
    %1035 = vadd.xlane.f32.xlu0 %v1034
    %v1036 = vpop.xlane.xlu0 %1035
    %v1037 = vsel %vm532, %v188, 0.0
    %1038 = vadd.xlane.f32.xlu0 %v1037
    %v1039 = vpop.xlane.xlu0 %1038
    %v1040 = vsel %vm532, %v189, 0.0
    %1041 = vadd.xlane.f32.xlu0 %v1040
    %v1042 = vpop.xlane.xlu0 %1041
    %v1043 = vsel %vm532, %v190, 0.0
    %1044 = vadd.xlane.f32.xlu0 %v1043
    %v1045 = vpop.xlane.xlu0 %1044
    %v1046 = vsel %vm532, %v191, 0.0
    %1047 = vadd.xlane.f32.xlu0 %v1046
    %v1048 = vpop.xlane.xlu0 %1047
    %v1049 = vsel %vm532, %v192, 0.0
    %1050 = vadd.xlane.f32.xlu0 %v1049
    %v1051 = vpop.xlane.xlu0 %1050
    %v1052 = vsel %vm532, %v193, 0.0
    %1053 = vadd.xlane.f32.xlu0 %v1052
    %v1054 = vpop.xlane.xlu0 %1053
    %v1055 = vsel %vm532, %v194, 0.0
    %1056 = vadd.xlane.f32.xlu0 %v1055
    %v1057 = vpop.xlane.xlu0 %1056
    %v1058 = vsel %vm532, %v195, 0.0
    %1059 = vadd.xlane.f32.xlu0 %v1058
    %v1060 = vpop.xlane.xlu0 %1059
    %v1061 = vsel %vm532, %v196, 0.0
    %1062 = vadd.xlane.f32.xlu0 %v1061
    %v1063 = vpop.xlane.xlu0 %1062
    %v1064 = vsel %vm532, %v197, 0.0
    %1065 = vadd.xlane.f32.xlu0 %v1064
    %v1066 = vpop.xlane.xlu0 %1065
    %v1067 = vsel %vm532, %v198, 0.0
    %1068 = vadd.xlane.f32.xlu0 %v1067
    %v1069 = vpop.xlane.xlu0 %1068
    %v1070 = vsel %vm532, %v199, 0.0
    %1071 = vadd.xlane.f32.xlu0 %v1070
    %v1072 = vpop.xlane.xlu0 %1071
    %v1073 = vsel %vm532, %v200, 0.0
    %1074 = vadd.xlane.f32.xlu0 %v1073
    %v1075 = vpop.xlane.xlu0 %1074
    %v1076 = vsel %vm532, %v201, 0.0
    %1077 = vadd.xlane.f32.xlu0 %v1076
    %v1078 = vpop.xlane.xlu0 %1077
    %v1079 = vsel %vm532, %v202, 0.0
    %1080 = vadd.xlane.f32.xlu0 %v1079
    %v1081 = vpop.xlane.xlu0 %1080
    %v1082 = vsel %vm532, %v203, 0.0
    %1083 = vadd.xlane.f32.xlu0 %v1082
    %v1084 = vpop.xlane.xlu0 %1083
    %v1085 = vsel %vm532, %v204, 0.0
    %1086 = vadd.xlane.f32.xlu0 %v1085
    %v1087 = vpop.xlane.xlu0 %1086
    %v1088 = vsel %vm532, %v205, 0.0
    %1089 = vadd.xlane.f32.xlu0 %v1088
    %v1090 = vpop.xlane.xlu0 %1089
    %v1091 = vsel %vm532, %v206, 0.0
    %1092 = vadd.xlane.f32.xlu0 %v1091
    %v1093 = vpop.xlane.xlu0 %1092
    %v1094 = vsel %vm532, %v207, 0.0
    %1095 = vadd.xlane.f32.xlu0 %v1094
    %v1096 = vpop.xlane.xlu0 %1095
    %v1097 = vsel %vm532, %v208, 0.0
    %1098 = vadd.xlane.f32.xlu0 %v1097
    %v1099 = vpop.xlane.xlu0 %1098
    %v1100 = vsel %vm532, %v209, 0.0
    %1101 = vadd.xlane.f32.xlu0 %v1100
    %v1102 = vpop.xlane.xlu0 %1101
    %v1103 = vsel %vm532, %v210, 0.0
    %1104 = vadd.xlane.f32.xlu0 %v1103
    %v1105 = vpop.xlane.xlu0 %1104
    %v1106 = vsel %vm532, %v211, 0.0
    %1107 = vadd.xlane.f32.xlu0 %v1106
    %v1108 = vpop.xlane.xlu0 %1107
    %v1109 = vsel %vm532, %v212, 0.0
    %1110 = vadd.xlane.f32.xlu0 %v1109
    %v1111 = vpop.xlane.xlu0 %1110
    %v1112 = vsel %vm532, %v213, 0.0
    %1113 = vadd.xlane.f32.xlu0 %v1112
    %v1114 = vpop.xlane.xlu0 %1113
    %v1115 = vsel %vm532, %v214, 0.0
    %1116 = vadd.xlane.f32.xlu0 %v1115
    %v1117 = vpop.xlane.xlu0 %1116
    %v1118 = vsel %vm532, %v215, 0.0
    %1119 = vadd.xlane.f32.xlu0 %v1118
    %v1120 = vpop.xlane.xlu0 %1119
    %v1121 = vsel %vm532, %v216, 0.0
    %1122 = vadd.xlane.f32.xlu0 %v1121
    %v1123 = vpop.xlane.xlu0 %1122
    %v1124 = vsel %vm532, %v217, 0.0
    %1125 = vadd.xlane.f32.xlu0 %v1124
    %v1126 = vpop.xlane.xlu0 %1125
    %v1127 = vsel %vm532, %v218, 0.0
    %1128 = vadd.xlane.f32.xlu0 %v1127
    %v1129 = vpop.xlane.xlu0 %1128
    %v1130 = vsel %vm532, %v219, 0.0
    %1131 = vadd.xlane.f32.xlu0 %v1130
    %v1132 = vpop.xlane.xlu0 %1131
    %v1133 = vsel %vm532, %v220, 0.0
    %1134 = vadd.xlane.f32.xlu0 %v1133
    %v1135 = vpop.xlane.xlu0 %1134
    %v1136 = vsel %vm532, %v221, 0.0
    %1137 = vadd.xlane.f32.xlu0 %v1136
    %v1138 = vpop.xlane.xlu0 %1137
    %v1139 = vsel %vm532, %v222, 0.0
    %1140 = vadd.xlane.f32.xlu0 %v1139
    %v1141 = vpop.xlane.xlu0 %1140
    %v1142 = vsel %vm532, %v223, 0.0
    %1143 = vadd.xlane.f32.xlu0 %v1142
    %v1144 = vpop.xlane.xlu0 %1143
    %v1145 = vsel %vm532, %v224, 0.0
    %1146 = vadd.xlane.f32.xlu0 %v1145
    %v1147 = vpop.xlane.xlu0 %1146
    %v1148 = vsel %vm532, %v225, 0.0
    %1149 = vadd.xlane.f32.xlu0 %v1148
    %v1150 = vpop.xlane.xlu0 %1149
    %v1151 = vsel %vm532, %v226, 0.0
    %1152 = vadd.xlane.f32.xlu0 %v1151
    %v1153 = vpop.xlane.xlu0 %1152
    %v1154 = vsel %vm532, %v227, 0.0
    %1155 = vadd.xlane.f32.xlu0 %v1154
    %v1156 = vpop.xlane.xlu0 %1155
    %v1157 = vsel %vm532, %v228, 0.0
    %1158 = vadd.xlane.f32.xlu0 %v1157
    %v1159 = vpop.xlane.xlu0 %1158
    %v1160 = vsel %vm532, %v229, 0.0
    %1161 = vadd.xlane.f32.xlu0 %v1160
    %v1162 = vpop.xlane.xlu0 %1161
    %v1163 = vsel %vm532, %v230, 0.0
    %1164 = vadd.xlane.f32.xlu0 %v1163
    %v1165 = vpop.xlane.xlu0 %1164
    %v1166 = vsel %vm532, %v231, 0.0
    %1167 = vadd.xlane.f32.xlu0 %v1166
    %v1168 = vpop.xlane.xlu0 %1167
    %v1169 = vsel %vm532, %v232, 0.0
    %1170 = vadd.xlane.f32.xlu0 %v1169
    %v1171 = vpop.xlane.xlu0 %1170
    %v1172 = vsel %vm532, %v233, 0.0
    %1173 = vadd.xlane.f32.xlu0 %v1172
    %v1174 = vpop.xlane.xlu0 %1173
    %v1175 = vsel %vm532, %v234, 0.0
    %1176 = vadd.xlane.f32.xlu0 %v1175
    %v1177 = vpop.xlane.xlu0 %1176
    %v1178 = vsel %vm532, %v235, 0.0
    %1179 = vadd.xlane.f32.xlu0 %v1178
    %v1180 = vpop.xlane.xlu0 %1179
    %v1181 = vsel %vm532, %v236, 0.0
    %1182 = vadd.xlane.f32.xlu0 %v1181
    %v1183 = vpop.xlane.xlu0 %1182
    %v1184 = vsel %vm532, %v237, 0.0
    %1185 = vadd.xlane.f32.xlu0 %v1184
    %v1186 = vpop.xlane.xlu0 %1185
    %v1187 = vsel %vm532, %v238, 0.0
    %1188 = vadd.xlane.f32.xlu0 %v1187
    %v1189 = vpop.xlane.xlu0 %1188
    %v1190 = vsel %vm532, %v239, 0.0
    %1191 = vadd.xlane.f32.xlu0 %v1190
    %v1192 = vpop.xlane.xlu0 %1191
    %v1193 = vsel %vm532, %v240, 0.0
    %1194 = vadd.xlane.f32.xlu0 %v1193
    %v1195 = vpop.xlane.xlu0 %1194
    %v1196 = vsel %vm532, %v241, 0.0
    %1197 = vadd.xlane.f32.xlu0 %v1196
    %v1198 = vpop.xlane.xlu0 %1197
    %v1199 = vsel %vm532, %v242, 0.0
    %1200 = vadd.xlane.f32.xlu0 %v1199
    %v1201 = vpop.xlane.xlu0 %1200
    %v1202 = vsel %vm532, %v243, 0.0
    %1203 = vadd.xlane.f32.xlu0 %v1202
    %v1204 = vpop.xlane.xlu0 %1203
    %v1205 = vsel %vm532, %v244, 0.0
    %1206 = vadd.xlane.f32.xlu0 %v1205
    %v1207 = vpop.xlane.xlu0 %1206
    %v1208 = vsel %vm532, %v245, 0.0
    %1209 = vadd.xlane.f32.xlu0 %v1208
    %v1210 = vpop.xlane.xlu0 %1209
    %v1211 = vsel %vm532, %v246, 0.0
    %1212 = vadd.xlane.f32.xlu0 %v1211
    %v1213 = vpop.xlane.xlu0 %1212
    %v1214 = vsel %vm532, %v247, 0.0
    %1215 = vadd.xlane.f32.xlu0 %v1214
    %v1216 = vpop.xlane.xlu0 %1215
    %v1217 = vsel %vm532, %v248, 0.0
    %1218 = vadd.xlane.f32.xlu0 %v1217
    %v1219 = vpop.xlane.xlu0 %1218
    %v1220 = vsel %vm532, %v249, 0.0
    %1221 = vadd.xlane.f32.xlu0 %v1220
    %v1222 = vpop.xlane.xlu0 %1221
    %v1223 = vsel %vm532, %v250, 0.0
    %1224 = vadd.xlane.f32.xlu0 %v1223
    %v1225 = vpop.xlane.xlu0 %1224
    %v1226 = vsel %vm532, %v251, 0.0
    %1227 = vadd.xlane.f32.xlu0 %v1226
    %v1228 = vpop.xlane.xlu0 %1227
    %v1229 = vsel %vm532, %v252, 0.0
    %1230 = vadd.xlane.f32.xlu0 %v1229
    %v1231 = vpop.xlane.xlu0 %1230
    %v1232 = vsel %vm532, %v253, 0.0
    %1233 = vadd.xlane.f32.xlu0 %v1232
    %v1234 = vpop.xlane.xlu0 %1233
    %v1235 = vsel %vm532, %v254, 0.0
    %1236 = vadd.xlane.f32.xlu0 %v1235
    %v1237 = vpop.xlane.xlu0 %1236
    %v1238 = vsel %vm532, %v255, 0.0
    %1239 = vadd.xlane.f32.xlu0 %v1238
    %v1240 = vpop.xlane.xlu0 %1239
    %v1241 = vsel %vm532, %v256, 0.0
    %1242 = vadd.xlane.f32.xlu0 %v1241
    %v1243 = vpop.xlane.xlu0 %1242
    %v1244 = vsel %vm532, %v257, 0.0
    %1245 = vadd.xlane.f32.xlu0 %v1244
    %v1246 = vpop.xlane.xlu0 %1245
    %v1247 = vsel %vm532, %v258, 0.0
    %1248 = vadd.xlane.f32.xlu0 %v1247
    %v1249 = vpop.xlane.xlu0 %1248
    %v1250 = vsel %vm532, %v259, 0.0
    %1251 = vadd.xlane.f32.xlu0 %v1250
    %v1252 = vpop.xlane.xlu0 %1251
    %v1253 = vsel %vm532, %v260, 0.0
    %1254 = vadd.xlane.f32.xlu0 %v1253
    %v1255 = vpop.xlane.xlu0 %1254
    %v1256 = vsel %vm532, %v261, 0.0
    %1257 = vadd.xlane.f32.xlu0 %v1256
    %v1258 = vpop.xlane.xlu0 %1257
    %v1259 = vsel %vm532, %v262, 0.0
    %1260 = vadd.xlane.f32.xlu0 %v1259
    %v1261 = vpop.xlane.xlu0 %1260
    %v1262 = vsel %vm532, %v263, 0.0
    %1263 = vadd.xlane.f32.xlu0 %v1262
    %v1264 = vpop.xlane.xlu0 %1263
    %v1265 = vsel %vm532, %v264, 0.0
    %1266 = vadd.xlane.f32.xlu0 %v1265
    %v1267 = vpop.xlane.xlu0 %1266
    %v1268 = vsel %vm532, %v265, 0.0
    %1269 = vadd.xlane.f32.xlu0 %v1268
    %v1270 = vpop.xlane.xlu0 %1269
    %v1271 = vsel %vm532, %v266, 0.0
    %1272 = vadd.xlane.f32.xlu0 %v1271
    %v1273 = vpop.xlane.xlu0 %1272
    %v1274 = vsel %vm532, %v267, 0.0
    %1275 = vadd.xlane.f32.xlu0 %v1274
    %v1276 = vpop.xlane.xlu0 %1275
    %v1277 = vsel %vm532, %v268, 0.0
    %1278 = vadd.xlane.f32.xlu0 %v1277
    %v1279 = vpop.xlane.xlu0 %1278
    %v1280 = vsel %vm532, %v269, 0.0
    %1281 = vadd.xlane.f32.xlu0 %v1280
    %v1282 = vpop.xlane.xlu0 %1281
    %v1283 = vsel %vm532, %v270, 0.0
    %1284 = vadd.xlane.f32.xlu0 %v1283
    %v1285 = vpop.xlane.xlu0 %1284
    %v1286 = vsel %vm532, %v271, 0.0
    %1287 = vadd.xlane.f32.xlu0 %v1286
    %v1288 = vpop.xlane.xlu0 %1287
    %v1289 = vsel %vm532, %v272, 0.0
    %1290 = vadd.xlane.f32.xlu0 %v1289
    %v1291 = vpop.xlane.xlu0 %1290
    %v1292 = vsel %vm532, %v273, 0.0
    %1293 = vadd.xlane.f32.xlu0 %v1292
    %v1294 = vpop.xlane.xlu0 %1293
    %v1295 = vsel %vm532, %v274, 0.0
    %1296 = vadd.xlane.f32.xlu0 %v1295
    %v1297 = vpop.xlane.xlu0 %1296
    %v1298 = vsel %vm532, %v275, 0.0
    %1299 = vadd.xlane.f32.xlu0 %v1298
    %v1300 = vpop.xlane.xlu0 %1299
    %v1301 = vsel %vm532, %v276, 0.0
    %1302 = vadd.xlane.f32.xlu0 %v1301
    %v1303 = vpop.xlane.xlu0 %1302
    %v1304 = vsel %vm532, %v277, 0.0
    %1305 = vadd.xlane.f32.xlu0 %v1304
    %v1306 = vpop.xlane.xlu0 %1305
    %v1307 = vsel %vm532, %v278, 0.0
    %1308 = vadd.xlane.f32.xlu0 %v1307
    %v1309 = vpop.xlane.xlu0 %1308
    %v1310 = vsel %vm532, %v279, 0.0
    %1311 = vadd.xlane.f32.xlu0 %v1310
    %v1312 = vpop.xlane.xlu0 %1311
    %v1313 = vsel %vm532, %v280, 0.0
    %1314 = vadd.xlane.f32.xlu0 %v1313
    %v1315 = vpop.xlane.xlu0 %1314
    %v1316 = vsel %vm532, %v281, 0.0
    %1317 = vadd.xlane.f32.xlu0 %v1316
    %v1318 = vpop.xlane.xlu0 %1317
    %v1319 = vsel %vm532, %v282, 0.0
    %1320 = vadd.xlane.f32.xlu0 %v1319
    %v1321 = vpop.xlane.xlu0 %1320
    %v1322 = vsel %vm532, %v283, 0.0
    %1323 = vadd.xlane.f32.xlu0 %v1322
    %v1324 = vpop.xlane.xlu0 %1323
    %v1325 = vsel %vm532, %v284, 0.0
    %1326 = vadd.xlane.f32.xlu0 %v1325
    %v1327 = vpop.xlane.xlu0 %1326
    %v1328 = vsel %vm532, %v285, 0.0
    %1329 = vadd.xlane.f32.xlu0 %v1328
    %v1330 = vpop.xlane.xlu0 %1329
    %v1331 = vsel %vm532, %v286, 0.0
    %1332 = vadd.xlane.f32.xlu0 %v1331
    %v1333 = vpop.xlane.xlu0 %1332
    %v1334 = vsel %vm532, %v287, 0.0
    %1335 = vadd.xlane.f32.xlu0 %v1334
    %v1336 = vpop.xlane.xlu0 %1335
    %v1337 = vsel %vm532, %v288, 0.0
    %1338 = vadd.xlane.f32.xlu0 %v1337
    %v1339 = vpop.xlane.xlu0 %1338
    %v1340 = vsel %vm532, %v289, 0.0
    %1341 = vadd.xlane.f32.xlu0 %v1340
    %v1342 = vpop.xlane.xlu0 %1341
    %v1343 = vsel %vm532, %v290, 0.0
    %1344 = vadd.xlane.f32.xlu0 %v1343
    %v1345 = vpop.xlane.xlu0 %1344
    %v1346 = vsel %vm532, %v291, 0.0
    %1347 = vadd.xlane.f32.xlu0 %v1346
    %v1348 = vpop.xlane.xlu0 %1347
    %v1349 = vsel %vm532, %v292, 0.0
    %1350 = vadd.xlane.f32.xlu0 %v1349
    %v1351 = vpop.xlane.xlu0 %1350
    %v1352 = vsel %vm532, %v293, 0.0
    %1353 = vadd.xlane.f32.xlu0 %v1352
    %v1354 = vpop.xlane.xlu0 %1353
    %v1355 = vsel %vm532, %v294, 0.0
    %1356 = vadd.xlane.f32.xlu0 %v1355
    %v1357 = vpop.xlane.xlu0 %1356
    %v1358 = vsel %vm532, %v295, 0.0
    %1359 = vadd.xlane.f32.xlu0 %v1358
    %v1360 = vpop.xlane.xlu0 %1359
    %v1361 = vsel %vm532, %v296, 0.0
    %1362 = vadd.xlane.f32.xlu0 %v1361
    %v1363 = vpop.xlane.xlu0 %1362
    %v1364 = vsel %vm532, %v297, 0.0
    %1365 = vadd.xlane.f32.xlu0 %v1364
    %v1366 = vpop.xlane.xlu0 %1365
    %v1367 = vsel %vm532, %v298, 0.0
    %1368 = vadd.xlane.f32.xlu0 %v1367
    %v1369 = vpop.xlane.xlu0 %1368
    %v1370 = vsel %vm532, %v299, 0.0
    %1371 = vadd.xlane.f32.xlu0 %v1370
    %v1372 = vpop.xlane.xlu0 %1371
    %v1373 = vsel %vm532, %v300, 0.0
    %1374 = vadd.xlane.f32.xlu0 %v1373
    %v1375 = vpop.xlane.xlu0 %1374
    %v1376 = vsel %vm532, %v301, 0.0
    %1377 = vadd.xlane.f32.xlu0 %v1376
    %v1378 = vpop.xlane.xlu0 %1377
    %v1379 = vsel %vm532, %v302, 0.0
    %1380 = vadd.xlane.f32.xlu0 %v1379
    %v1381 = vpop.xlane.xlu0 %1380
    %v1382 = vsel %vm532, %v303, 0.0
    %1383 = vadd.xlane.f32.xlu0 %v1382
    %v1384 = vpop.xlane.xlu0 %1383
    %v1385 = vsel %vm532, %v304, 0.0
    %1386 = vadd.xlane.f32.xlu0 %v1385
    %v1387 = vpop.xlane.xlu0 %1386
    %v1388 = vsel %vm532, %v305, 0.0
    %1389 = vadd.xlane.f32.xlu0 %v1388
    %v1390 = vpop.xlane.xlu0 %1389
    %v1391 = vsel %vm532, %v306, 0.0
    %1392 = vadd.xlane.f32.xlu0 %v1391
    %v1393 = vpop.xlane.xlu0 %1392
    %v1394 = vsel %vm532, %v307, 0.0
    %1395 = vadd.xlane.f32.xlu0 %v1394
    %v1396 = vpop.xlane.xlu0 %1395
    %v1397 = vsel %vm532, %v308, 0.0
    %1398 = vadd.xlane.f32.xlu0 %v1397
    %v1399 = vpop.xlane.xlu0 %1398
    %v1400 = vsel %vm532, %v309, 0.0
    %1401 = vadd.xlane.f32.xlu0 %v1400
    %v1402 = vpop.xlane.xlu0 %1401
    %v1403 = vsel %vm532, %v310, 0.0
    %1404 = vadd.xlane.f32.xlu0 %v1403
    %v1405 = vpop.xlane.xlu0 %1404
    %v1406 = vsel %vm532, %v311, 0.0
    %1407 = vadd.xlane.f32.xlu0 %v1406
    %v1408 = vpop.xlane.xlu0 %1407
    %v1409 = vsel %vm532, %v312, 0.0
    %1410 = vadd.xlane.f32.xlu0 %v1409
    %v1411 = vpop.xlane.xlu0 %1410
    %v1412 = vsel %vm532, %v313, 0.0
    %1413 = vadd.xlane.f32.xlu0 %v1412
    %v1414 = vpop.xlane.xlu0 %1413
    %v1415 = vsel %vm532, %v314, 0.0
    %1416 = vadd.xlane.f32.xlu0 %v1415
    %v1417 = vpop.xlane.xlu0 %1416
    %v1418 = vsel %vm532, %v315, 0.0
    %1419 = vadd.xlane.f32.xlu0 %v1418
    %v1420 = vpop.xlane.xlu0 %1419
    %v1421 = vsel %vm532, %v316, 0.0
    %1422 = vadd.xlane.f32.xlu0 %v1421
    %v1423 = vpop.xlane.xlu0 %1422
    %v1424 = vsel %vm532, %v317, 0.0
    %1425 = vadd.xlane.f32.xlu0 %v1424
    %v1426 = vpop.xlane.xlu0 %1425
    %v1427 = vsel %vm532, %v318, 0.0
    %1428 = vadd.xlane.f32.xlu0 %v1427
    %v1429 = vpop.xlane.xlu0 %1428
    %v1430 = vsel %vm532, %v319, 0.0
    %1431 = vadd.xlane.f32.xlu0 %v1430
    %v1432 = vpop.xlane.xlu0 %1431
    %v1433 = vsel %vm532, %v320, 0.0
    %1434 = vadd.xlane.f32.xlu0 %v1433
    %v1435 = vpop.xlane.xlu0 %1434
    %v1436 = vsel %vm532, %v321, 0.0
    %1437 = vadd.xlane.f32.xlu0 %v1436
    %v1438 = vpop.xlane.xlu0 %1437
    %v1439 = vsel %vm532, %v322, 0.0
    %1440 = vadd.xlane.f32.xlu0 %v1439
    %v1441 = vpop.xlane.xlu0 %1440
    %v1442 = vsel %vm532, %v323, 0.0
    %1443 = vadd.xlane.f32.xlu0 %v1442
    %v1444 = vpop.xlane.xlu0 %1443
    %v1445 = vsel %vm532, %v324, 0.0
    %1446 = vadd.xlane.f32.xlu0 %v1445
    %v1447 = vpop.xlane.xlu0 %1446
    %v1448 = vsel %vm532, %v325, 0.0
    %1449 = vadd.xlane.f32.xlu0 %v1448
    %v1450 = vpop.xlane.xlu0 %1449
    %v1451 = vsel %vm532, %v326, 0.0
    %1452 = vadd.xlane.f32.xlu0 %v1451
    %v1453 = vpop.xlane.xlu0 %1452
    %v1454 = vsel %vm532, %v327, 0.0
    %1455 = vadd.xlane.f32.xlu0 %v1454
    %v1456 = vpop.xlane.xlu0 %1455
    %v1457 = vsel %vm532, %v328, 0.0
    %1458 = vadd.xlane.f32.xlu0 %v1457
    %v1459 = vpop.xlane.xlu0 %1458
    %v1460 = vsel %vm532, %v329, 0.0
    %1461 = vadd.xlane.f32.xlu0 %v1460
    %v1462 = vpop.xlane.xlu0 %1461
    %v1463 = vsel %vm532, %v330, 0.0
    %1464 = vadd.xlane.f32.xlu0 %v1463
    %v1465 = vpop.xlane.xlu0 %1464
    %v1466 = vsel %vm532, %v331, 0.0
    %1467 = vadd.xlane.f32.xlu0 %v1466
    %v1468 = vpop.xlane.xlu0 %1467
    %v1469 = vsel %vm532, %v332, 0.0
    %1470 = vadd.xlane.f32.xlu0 %v1469
    %v1471 = vpop.xlane.xlu0 %1470
    %v1472 = vsel %vm532, %v333, 0.0
    %1473 = vadd.xlane.f32.xlu0 %v1472
    %v1474 = vpop.xlane.xlu0 %1473
    %v1475 = vsel %vm532, %v334, 0.0
    %1476 = vadd.xlane.f32.xlu0 %v1475
    %v1477 = vpop.xlane.xlu0 %1476
    %v1478 = vsel %vm532, %v335, 0.0
    %1479 = vadd.xlane.f32.xlu0 %v1478
    %v1480 = vpop.xlane.xlu0 %1479
    %v1481 = vsel %vm532, %v336, 0.0
    %1482 = vadd.xlane.f32.xlu0 %v1481
    %v1483 = vpop.xlane.xlu0 %1482
    %v1484 = vsel %vm532, %v337, 0.0
    %1485 = vadd.xlane.f32.xlu0 %v1484
    %v1486 = vpop.xlane.xlu0 %1485
    %v1487 = vsel %vm532, %v338, 0.0
    %1488 = vadd.xlane.f32.xlu0 %v1487
    %v1489 = vpop.xlane.xlu0 %1488
    %v1490 = vsel %vm532, %v339, 0.0
    %1491 = vadd.xlane.f32.xlu0 %v1490
    %v1492 = vpop.xlane.xlu0 %1491
    %v1493 = vsel %vm532, %v340, 0.0
    %1494 = vadd.xlane.f32.xlu0 %v1493
    %v1495 = vpop.xlane.xlu0 %1494
    %v1496 = vsel %vm532, %v341, 0.0
    %1497 = vadd.xlane.f32.xlu0 %v1496
    %v1498 = vpop.xlane.xlu0 %1497
    %v1499 = vsel %vm532, %v342, 0.0
    %1500 = vadd.xlane.f32.xlu0 %v1499
    %v1501 = vpop.xlane.xlu0 %1500
    %v1502 = vsel %vm532, %v343, 0.0
    %1503 = vadd.xlane.f32.xlu0 %v1502
    %v1504 = vpop.xlane.xlu0 %1503
    %v1505 = vsel %vm532, %v344, 0.0
    %1506 = vadd.xlane.f32.xlu0 %v1505
    %v1507 = vpop.xlane.xlu0 %1506
    %v1508 = vsel %vm532, %v345, 0.0
    %1509 = vadd.xlane.f32.xlu0 %v1508
    %v1510 = vpop.xlane.xlu0 %1509
    %v1511 = vsel %vm532, %v346, 0.0
    %1512 = vadd.xlane.f32.xlu0 %v1511
    %v1513 = vpop.xlane.xlu0 %1512
    %v1514 = vsel %vm532, %v347, 0.0
    %1515 = vadd.xlane.f32.xlu0 %v1514
    %v1516 = vpop.xlane.xlu0 %1515
    %v1517 = vsel %vm532, %v348, 0.0
    %1518 = vadd.xlane.f32.xlu0 %v1517
    %v1519 = vpop.xlane.xlu0 %1518
    %v1520 = vsel %vm532, %v349, 0.0
    %1521 = vadd.xlane.f32.xlu0 %v1520
    %v1522 = vpop.xlane.xlu0 %1521
    %v1523 = vsel %vm532, %v350, 0.0
    %1524 = vadd.xlane.f32.xlu0 %v1523
    %v1525 = vpop.xlane.xlu0 %1524
    %v1526 = vsel %vm532, %v351, 0.0
    %1527 = vadd.xlane.f32.xlu0 %v1526
    %v1528 = vpop.xlane.xlu0 %1527
    %v1529 = vsel %vm532, %v352, 0.0
    %1530 = vadd.xlane.f32.xlu0 %v1529
    %v1531 = vpop.xlane.xlu0 %1530
    %v1532 = vsel %vm532, %v353, 0.0
    %1533 = vadd.xlane.f32.xlu0 %v1532
    %v1534 = vpop.xlane.xlu0 %1533
    %v1535 = vsel %vm532, %v354, 0.0
    %1536 = vadd.xlane.f32.xlu0 %v1535
    %v1537 = vpop.xlane.xlu0 %1536
    %v1538 = vsel %vm532, %v355, 0.0
    %1539 = vadd.xlane.f32.xlu0 %v1538
    %v1540 = vpop.xlane.xlu0 %1539
    %v1541 = vsel %vm532, %v356, 0.0
    %1542 = vadd.xlane.f32.xlu0 %v1541
    %v1543 = vpop.xlane.xlu0 %1542
    %v1544 = vsel %vm532, %v357, 0.0
    %1545 = vadd.xlane.f32.xlu0 %v1544
    %v1546 = vpop.xlane.xlu0 %1545
    %v1547 = vsel %vm532, %v358, 0.0
    %1548 = vadd.xlane.f32.xlu0 %v1547
    %v1549 = vpop.xlane.xlu0 %1548
    %v1550 = vsel %vm532, %v359, 0.0
    %1551 = vadd.xlane.f32.xlu0 %v1550
    %v1552 = vpop.xlane.xlu0 %1551
    %v1553 = vsel %vm532, %v360, 0.0
    %1554 = vadd.xlane.f32.xlu0 %v1553
    %v1555 = vpop.xlane.xlu0 %1554
    %v1556 = vsel %vm532, %v361, 0.0
    %1557 = vadd.xlane.f32.xlu0 %v1556
    %v1558 = vpop.xlane.xlu0 %1557
    %v1559 = vsel %vm532, %v362, 0.0
    %1560 = vadd.xlane.f32.xlu0 %v1559
    %v1561 = vpop.xlane.xlu0 %1560
    %v1562 = vsel %vm532, %v363, 0.0
    %1563 = vadd.xlane.f32.xlu0 %v1562
    %v1564 = vpop.xlane.xlu0 %1563
    %v1565 = vsel %vm532, %v364, 0.0
    %1566 = vadd.xlane.f32.xlu0 %v1565
    %v1567 = vpop.xlane.xlu0 %1566
    %v1568 = vsel %vm532, %v365, 0.0
    %1569 = vadd.xlane.f32.xlu0 %v1568
    %v1570 = vpop.xlane.xlu0 %1569
    %v1571 = vsel %vm532, %v366, 0.0
    %1572 = vadd.xlane.f32.xlu0 %v1571
    %v1573 = vpop.xlane.xlu0 %1572
    %v1574 = vsel %vm532, %v367, 0.0
    %1575 = vadd.xlane.f32.xlu0 %v1574
    %v1576 = vpop.xlane.xlu0 %1575
    %v1577 = vsel %vm532, %v368, 0.0
    %1578 = vadd.xlane.f32.xlu0 %v1577
    %v1579 = vpop.xlane.xlu0 %1578
    %v1580 = vsel %vm532, %v369, 0.0
    %1581 = vadd.xlane.f32.xlu0 %v1580
    %v1582 = vpop.xlane.xlu0 %1581
    %v1583 = vsel %vm532, %v370, 0.0
    %1584 = vadd.xlane.f32.xlu0 %v1583
    %v1585 = vpop.xlane.xlu0 %1584
    %v1586 = vsel %vm532, %v371, 0.0
    %1587 = vadd.xlane.f32.xlu0 %v1586
    %v1588 = vpop.xlane.xlu0 %1587
    %v1589 = vsel %vm532, %v372, 0.0
    %1590 = vadd.xlane.f32.xlu0 %v1589
    %v1591 = vpop.xlane.xlu0 %1590
    %v1592 = vsel %vm532, %v373, 0.0
    %1593 = vadd.xlane.f32.xlu0 %v1592
    %v1594 = vpop.xlane.xlu0 %1593
    %v1595 = vsel %vm532, %v374, 0.0
    %1596 = vadd.xlane.f32.xlu0 %v1595
    %v1597 = vpop.xlane.xlu0 %1596
    %v1598 = vsel %vm532, %v375, 0.0
    %1599 = vadd.xlane.f32.xlu0 %v1598
    %v1600 = vpop.xlane.xlu0 %1599
    %v1601 = vsel %vm532, %v376, 0.0
    %1602 = vadd.xlane.f32.xlu0 %v1601
    %v1603 = vpop.xlane.xlu0 %1602
    %v1604 = vsel %vm532, %v377, 0.0
    %1605 = vadd.xlane.f32.xlu0 %v1604
    %v1606 = vpop.xlane.xlu0 %1605
    %v1607 = vsel %vm532, %v378, 0.0
    %1608 = vadd.xlane.f32.xlu0 %v1607
    %v1609 = vpop.xlane.xlu0 %1608
    %v1610 = vsel %vm532, %v379, 0.0
    %1611 = vadd.xlane.f32.xlu0 %v1610
    %v1612 = vpop.xlane.xlu0 %1611
    %v1613 = vsel %vm532, %v380, 0.0
    %1614 = vadd.xlane.f32.xlu0 %v1613
    %v1615 = vpop.xlane.xlu0 %1614
    %v1616 = vsel %vm532, %v381, 0.0
    %1617 = vadd.xlane.f32.xlu0 %v1616
    %v1618 = vpop.xlane.xlu0 %1617
    %v1619 = vsel %vm532, %v382, 0.0
    %1620 = vadd.xlane.f32.xlu0 %v1619
    %v1621 = vpop.xlane.xlu0 %1620
    %v1622 = vsel %vm532, %v383, 0.0
    %1623 = vadd.xlane.f32.xlu0 %v1622
    %v1624 = vpop.xlane.xlu0 %1623
    %v1625 = vsel %vm532, %v384, 0.0
    %1626 = vadd.xlane.f32.xlu0 %v1625
    %v1627 = vpop.xlane.xlu0 %1626
    %v1628 = vsel %vm532, %v385, 0.0
    %1629 = vadd.xlane.f32.xlu0 %v1628
    %v1630 = vpop.xlane.xlu0 %1629
    %v1631 = vsel %vm532, %v386, 0.0
    %1632 = vadd.xlane.f32.xlu0 %v1631
    %v1633 = vpop.xlane.xlu0 %1632
    %v1634 = vsel %vm532, %v387, 0.0
    %1635 = vadd.xlane.f32.xlu0 %v1634
    %v1636 = vpop.xlane.xlu0 %1635
    %v1637 = vsel %vm532, %v388, 0.0
    %1638 = vadd.xlane.f32.xlu0 %v1637
    %v1639 = vpop.xlane.xlu0 %1638
    %v1640 = vsel %vm532, %v389, 0.0
    %1641 = vadd.xlane.f32.xlu0 %v1640
    %v1642 = vpop.xlane.xlu0 %1641
    %v1643 = vsel %vm532, %v390, 0.0
    %1644 = vadd.xlane.f32.xlu0 %v1643
    %v1645 = vpop.xlane.xlu0 %1644
    %v1646 = vsel %vm532, %v391, 0.0
    %1647 = vadd.xlane.f32.xlu0 %v1646
    %v1648 = vpop.xlane.xlu0 %1647
    %v1649 = vsel %vm532, %v392, 0.0
    %1650 = vadd.xlane.f32.xlu0 %v1649
    %v1651 = vpop.xlane.xlu0 %1650
    %v1652 = vsel %vm532, %v393, 0.0
    %1653 = vadd.xlane.f32.xlu0 %v1652
    %v1654 = vpop.xlane.xlu0 %1653
    %v1655 = vsel %vm532, %v394, 0.0
    %1656 = vadd.xlane.f32.xlu0 %v1655
    %v1657 = vpop.xlane.xlu0 %1656
    %v1658 = vsel %vm532, %v395, 0.0
    %1659 = vadd.xlane.f32.xlu0 %v1658
    %v1660 = vpop.xlane.xlu0 %1659
    %v1661 = vsel %vm532, %v396, 0.0
    %1662 = vadd.xlane.f32.xlu0 %v1661
    %v1663 = vpop.xlane.xlu0 %1662
    %v1664 = vsel %vm532, %v397, 0.0
    %1665 = vadd.xlane.f32.xlu0 %v1664
    %v1666 = vpop.xlane.xlu0 %1665
    %v1667 = vsel %vm532, %v398, 0.0
    %1668 = vadd.xlane.f32.xlu0 %v1667
    %v1669 = vpop.xlane.xlu0 %1668
    %v1670 = vsel %vm532, %v399, 0.0
    %1671 = vadd.xlane.f32.xlu0 %v1670
    %v1672 = vpop.xlane.xlu0 %1671
    %v1673 = vsel %vm532, %v400, 0.0
    %1674 = vadd.xlane.f32.xlu0 %v1673
    %v1675 = vpop.xlane.xlu0 %1674
    %v1676 = vsel %vm532, %v401, 0.0
    %1677 = vadd.xlane.f32.xlu0 %v1676
    %v1678 = vpop.xlane.xlu0 %1677
    %v1679 = vsel %vm532, %v402, 0.0
    %1680 = vadd.xlane.f32.xlu0 %v1679
    %v1681 = vpop.xlane.xlu0 %1680
    %v1682 = vsel %vm532, %v403, 0.0
    %1683 = vadd.xlane.f32.xlu0 %v1682
    %v1684 = vpop.xlane.xlu0 %1683
    %v1685 = vsel %vm532, %v404, 0.0
    %1686 = vadd.xlane.f32.xlu0 %v1685
    %v1687 = vpop.xlane.xlu0 %1686
    %v1688 = vsel %vm532, %v405, 0.0
    %1689 = vadd.xlane.f32.xlu0 %v1688
    %v1690 = vpop.xlane.xlu0 %1689
    %v1691 = vsel %vm532, %v406, 0.0
    %1692 = vadd.xlane.f32.xlu0 %v1691
    %v1693 = vpop.xlane.xlu0 %1692
    %v1694 = vsel %vm532, %v407, 0.0
    %1695 = vadd.xlane.f32.xlu0 %v1694
    %v1696 = vpop.xlane.xlu0 %1695
    %v1697 = vsel %vm532, %v408, 0.0
    %1698 = vadd.xlane.f32.xlu0 %v1697
    %v1699 = vpop.xlane.xlu0 %1698
    %v1700 = vsel %vm532, %v409, 0.0
    %1701 = vadd.xlane.f32.xlu0 %v1700
    %v1702 = vpop.xlane.xlu0 %1701
    %v1703 = vsel %vm532, %v410, 0.0
    %1704 = vadd.xlane.f32.xlu0 %v1703
    %v1705 = vpop.xlane.xlu0 %1704
    %v1706 = vsel %vm532, %v411, 0.0
    %1707 = vadd.xlane.f32.xlu0 %v1706
    %v1708 = vpop.xlane.xlu0 %1707
    %v1709 = vsel %vm532, %v412, 0.0
    %1710 = vadd.xlane.f32.xlu0 %v1709
    %v1711 = vpop.xlane.xlu0 %1710
    %v1712 = vsel %vm532, %v413, 0.0
    %1713 = vadd.xlane.f32.xlu0 %v1712
    %v1714 = vpop.xlane.xlu0 %1713
    %v1715 = vsel %vm532, %v414, 0.0
    %1716 = vadd.xlane.f32.xlu0 %v1715
    %v1717 = vpop.xlane.xlu0 %1716
    %v1718 = vsel %vm532, %v415, 0.0
    %1719 = vadd.xlane.f32.xlu0 %v1718
    %v1720 = vpop.xlane.xlu0 %1719
    %v1721 = vsel %vm532, %v416, 0.0
    %1722 = vadd.xlane.f32.xlu0 %v1721
    %v1723 = vpop.xlane.xlu0 %1722
    %v1724 = vsel %vm532, %v417, 0.0
    %1725 = vadd.xlane.f32.xlu0 %v1724
    %v1726 = vpop.xlane.xlu0 %1725
    %v1727 = vsel %vm532, %v418, 0.0
    %1728 = vadd.xlane.f32.xlu0 %v1727
    %v1729 = vpop.xlane.xlu0 %1728
    %v1730 = vsel %vm532, %v419, 0.0
    %1731 = vadd.xlane.f32.xlu0 %v1730
    %v1732 = vpop.xlane.xlu0 %1731
    %v1733 = vsel %vm532, %v420, 0.0
    %1734 = vadd.xlane.f32.xlu0 %v1733
    %v1735 = vpop.xlane.xlu0 %1734
    %v1736 = vsel %vm532, %v421, 0.0
    %1737 = vadd.xlane.f32.xlu0 %v1736
    %v1738 = vpop.xlane.xlu0 %1737
    %v1739 = vsel %vm532, %v422, 0.0
    %1740 = vadd.xlane.f32.xlu0 %v1739
    %v1741 = vpop.xlane.xlu0 %1740
    %v1742 = vsel %vm532, %v423, 0.0
    %1743 = vadd.xlane.f32.xlu0 %v1742
    %v1744 = vpop.xlane.xlu0 %1743
    %v1745 = vsel %vm532, %v424, 0.0
    %1746 = vadd.xlane.f32.xlu0 %v1745
    %v1747 = vpop.xlane.xlu0 %1746
    %v1748 = vsel %vm532, %v425, 0.0
    %1749 = vadd.xlane.f32.xlu0 %v1748
    %v1750 = vpop.xlane.xlu0 %1749
    %v1751 = vsel %vm532, %v426, 0.0
    %1752 = vadd.xlane.f32.xlu0 %v1751
    %v1753 = vpop.xlane.xlu0 %1752
    %v1754 = vsel %vm532, %v427, 0.0
    %1755 = vadd.xlane.f32.xlu0 %v1754
    %v1756 = vpop.xlane.xlu0 %1755
    %v1757 = vsel %vm532, %v428, 0.0
    %1758 = vadd.xlane.f32.xlu0 %v1757
    %v1759 = vpop.xlane.xlu0 %1758
    %v1760 = vsel %vm532, %v429, 0.0
    %1761 = vadd.xlane.f32.xlu0 %v1760
    %v1762 = vpop.xlane.xlu0 %1761
    %v1763 = vsel %vm532, %v430, 0.0
    %1764 = vadd.xlane.f32.xlu0 %v1763
    %v1765 = vpop.xlane.xlu0 %1764
    %v1766 = vsel %vm532, %v431, 0.0
    %1767 = vadd.xlane.f32.xlu0 %v1766
    %v1768 = vpop.xlane.xlu0 %1767
    %v1769 = vsel %vm532, %v432, 0.0
    %1770 = vadd.xlane.f32.xlu0 %v1769
    %v1771 = vpop.xlane.xlu0 %1770
    %v1772 = vsel %vm532, %v433, 0.0
    %1773 = vadd.xlane.f32.xlu0 %v1772
    %v1774 = vpop.xlane.xlu0 %1773
    %v1775 = vsel %vm532, %v434, 0.0
    %1776 = vadd.xlane.f32.xlu0 %v1775
    %v1777 = vpop.xlane.xlu0 %1776
    %v1778 = vsel %vm532, %v435, 0.0
    %1779 = vadd.xlane.f32.xlu0 %v1778
    %v1780 = vpop.xlane.xlu0 %1779
    %v1781 = vsel %vm532, %v436, 0.0
    %1782 = vadd.xlane.f32.xlu0 %v1781
    %v1783 = vpop.xlane.xlu0 %1782
    %v1784 = vsel %vm532, %v437, 0.0
    %1785 = vadd.xlane.f32.xlu0 %v1784
    %v1786 = vpop.xlane.xlu0 %1785
    %v1787 = vsel %vm532, %v438, 0.0
    %1788 = vadd.xlane.f32.xlu0 %v1787
    %v1789 = vpop.xlane.xlu0 %1788
    %v1790 = vsel %vm532, %v439, 0.0
    %1791 = vadd.xlane.f32.xlu0 %v1790
    %v1792 = vpop.xlane.xlu0 %1791
    %v1793 = vsel %vm532, %v440, 0.0
    %1794 = vadd.xlane.f32.xlu0 %v1793
    %v1795 = vpop.xlane.xlu0 %1794
    %v1796 = vsel %vm532, %v441, 0.0
    %1797 = vadd.xlane.f32.xlu0 %v1796
    %v1798 = vpop.xlane.xlu0 %1797
    %v1799 = vsel %vm532, %v442, 0.0
    %1800 = vadd.xlane.f32.xlu0 %v1799
    %v1801 = vpop.xlane.xlu0 %1800
    %v1802 = vsel %vm532, %v443, 0.0
    %1803 = vadd.xlane.f32.xlu0 %v1802
    %v1804 = vpop.xlane.xlu0 %1803
    %v1805 = vsel %vm532, %v444, 0.0
    %1806 = vadd.xlane.f32.xlu0 %v1805
    %v1807 = vpop.xlane.xlu0 %1806
    %v1808 = vsel %vm532, %v445, 0.0
    %1809 = vadd.xlane.f32.xlu0 %v1808
    %v1810 = vpop.xlane.xlu0 %1809
    %v1811 = vsel %vm532, %v446, 0.0
    %1812 = vadd.xlane.f32.xlu0 %v1811
    %v1813 = vpop.xlane.xlu0 %1812
    %v1814 = vsel %vm532, %v447, 0.0
    %1815 = vadd.xlane.f32.xlu0 %v1814
    %v1816 = vpop.xlane.xlu0 %1815
    %v1817 = vsel %vm532, %v448, 0.0
    %1818 = vadd.xlane.f32.xlu0 %v1817
    %v1819 = vpop.xlane.xlu0 %1818
    %v1820 = vsel %vm532, %v449, 0.0
    %1821 = vadd.xlane.f32.xlu0 %v1820
    %v1822 = vpop.xlane.xlu0 %1821
    %v1823 = vsel %vm532, %v450, 0.0
    %1824 = vadd.xlane.f32.xlu0 %v1823
    %v1825 = vpop.xlane.xlu0 %1824
    %v1826 = vsel %vm532, %v451, 0.0
    %1827 = vadd.xlane.f32.xlu0 %v1826
    %v1828 = vpop.xlane.xlu0 %1827
    %v1829 = vsel %vm532, %v452, 0.0
    %1830 = vadd.xlane.f32.xlu0 %v1829
    %v1831 = vpop.xlane.xlu0 %1830
    %v1832 = vsel %vm532, %v453, 0.0
    %1833 = vadd.xlane.f32.xlu0 %v1832
    %v1834 = vpop.xlane.xlu0 %1833
    %v1835 = vsel %vm532, %v454, 0.0
    %1836 = vadd.xlane.f32.xlu0 %v1835
    %v1837 = vpop.xlane.xlu0 %1836
    %v1838 = vsel %vm532, %v455, 0.0
    %1839 = vadd.xlane.f32.xlu0 %v1838
    %v1840 = vpop.xlane.xlu0 %1839
    %v1841 = vsel %vm532, %v456, 0.0
    %1842 = vadd.xlane.f32.xlu0 %v1841
    %v1843 = vpop.xlane.xlu0 %1842
    %v1844 = vsel %vm532, %v457, 0.0
    %1845 = vadd.xlane.f32.xlu0 %v1844
    %v1846 = vpop.xlane.xlu0 %1845
    %v1847 = vsel %vm532, %v458, 0.0
    %1848 = vadd.xlane.f32.xlu0 %v1847
    %v1849 = vpop.xlane.xlu0 %1848
    %v1850 = vsel %vm532, %v459, 0.0
    %1851 = vadd.xlane.f32.xlu0 %v1850
    %v1852 = vpop.xlane.xlu0 %1851
    %v1853 = vsel %vm532, %v460, 0.0
    %1854 = vadd.xlane.f32.xlu0 %v1853
    %v1855 = vpop.xlane.xlu0 %1854
    %v1856 = vsel %vm532, %v461, 0.0
    %1857 = vadd.xlane.f32.xlu0 %v1856
    %v1858 = vpop.xlane.xlu0 %1857
    %v1859 = vsel %vm532, %v462, 0.0
    %1860 = vadd.xlane.f32.xlu0 %v1859
    %v1861 = vpop.xlane.xlu0 %1860
    %v1862 = vsel %vm532, %v463, 0.0
    %1863 = vadd.xlane.f32.xlu0 %v1862
    %v1864 = vpop.xlane.xlu0 %1863
    %v1865 = vsel %vm532, %v464, 0.0
    %1866 = vadd.xlane.f32.xlu0 %v1865
    %v1867 = vpop.xlane.xlu0 %1866
    %v1868 = vsel %vm532, %v465, 0.0
    %1869 = vadd.xlane.f32.xlu0 %v1868
    %v1870 = vpop.xlane.xlu0 %1869
    %v1871 = vsel %vm532, %v466, 0.0
    %1872 = vadd.xlane.f32.xlu0 %v1871
    %v1873 = vpop.xlane.xlu0 %1872
    %v1874 = vsel %vm532, %v467, 0.0
    %1875 = vadd.xlane.f32.xlu0 %v1874
    %v1876 = vpop.xlane.xlu0 %1875
    %v1877 = vsel %vm532, %v468, 0.0
    %1878 = vadd.xlane.f32.xlu0 %v1877
    %v1879 = vpop.xlane.xlu0 %1878
    %v1880 = vsel %vm532, %v469, 0.0
    %1881 = vadd.xlane.f32.xlu0 %v1880
    %v1882 = vpop.xlane.xlu0 %1881
    %v1883 = vsel %vm532, %v470, 0.0
    %1884 = vadd.xlane.f32.xlu0 %v1883
    %v1885 = vpop.xlane.xlu0 %1884
    %v1886 = vsel %vm532, %v471, 0.0
    %1887 = vadd.xlane.f32.xlu0 %v1886
    %v1888 = vpop.xlane.xlu0 %1887
    %v1889 = vsel %vm532, %v472, 0.0
    %1890 = vadd.xlane.f32.xlu0 %v1889
    %v1891 = vpop.xlane.xlu0 %1890
    %v1892 = vsel %vm532, %v473, 0.0
    %1893 = vadd.xlane.f32.xlu0 %v1892
    %v1894 = vpop.xlane.xlu0 %1893
    %v1895 = vsel %vm532, %v474, 0.0
    %1896 = vadd.xlane.f32.xlu0 %v1895
    %v1897 = vpop.xlane.xlu0 %1896
    %v1898 = vsel %vm532, %v475, 0.0
    %1899 = vadd.xlane.f32.xlu0 %v1898
    %v1900 = vpop.xlane.xlu0 %1899
    %v1901 = vsel %vm532, %v476, 0.0
    %1902 = vadd.xlane.f32.xlu0 %v1901
    %v1903 = vpop.xlane.xlu0 %1902
    %v1904 = vsel %vm532, %v477, 0.0
    %1905 = vadd.xlane.f32.xlu0 %v1904
    %v1906 = vpop.xlane.xlu0 %1905
    %v1907 = vsel %vm532, %v478, 0.0
    %1908 = vadd.xlane.f32.xlu0 %v1907
    %v1909 = vpop.xlane.xlu0 %1908
    %v1910 = vsel %vm532, %v479, 0.0
    %1911 = vadd.xlane.f32.xlu0 %v1910
    %v1912 = vpop.xlane.xlu0 %1911
    %v1913 = vsel %vm532, %v480, 0.0
    %1914 = vadd.xlane.f32.xlu0 %v1913
    %v1915 = vpop.xlane.xlu0 %1914
    %v1916 = vsel %vm532, %v481, 0.0
    %1917 = vadd.xlane.f32.xlu0 %v1916
    %v1918 = vpop.xlane.xlu0 %1917
    %v1919 = vsel %vm532, %v482, 0.0
    %1920 = vadd.xlane.f32.xlu0 %v1919
    %v1921 = vpop.xlane.xlu0 %1920
    %v1922 = vsel %vm532, %v483, 0.0
    %1923 = vadd.xlane.f32.xlu0 %v1922
    %v1924 = vpop.xlane.xlu0 %1923
    %v1925 = vsel %vm532, %v484, 0.0
    %1926 = vadd.xlane.f32.xlu0 %v1925
    %v1927 = vpop.xlane.xlu0 %1926
    %v1928 = vsel %vm532, %v485, 0.0
    %1929 = vadd.xlane.f32.xlu0 %v1928
    %v1930 = vpop.xlane.xlu0 %1929
    %v1931 = vsel %vm532, %v486, 0.0
    %1932 = vadd.xlane.f32.xlu0 %v1931
    %v1933 = vpop.xlane.xlu0 %1932
    %v1934 = vsel %vm532, %v487, 0.0
    %1935 = vadd.xlane.f32.xlu0 %v1934
    %v1936 = vpop.xlane.xlu0 %1935
    %v1937 = vsel %vm532, %v488, 0.0
    %1938 = vadd.xlane.f32.xlu0 %v1937
    %v1939 = vpop.xlane.xlu0 %1938
    %v1940 = vsel %vm532, %v489, 0.0
    %1941 = vadd.xlane.f32.xlu0 %v1940
    %v1942 = vpop.xlane.xlu0 %1941
    %v1943 = vsel %vm532, %v490, 0.0
    %1944 = vadd.xlane.f32.xlu0 %v1943
    %v1945 = vpop.xlane.xlu0 %1944
    %v1946 = vsel %vm532, %v491, 0.0
    %1947 = vadd.xlane.f32.xlu0 %v1946
    %v1948 = vpop.xlane.xlu0 %1947
    %v1949 = vsel %vm532, %v492, 0.0
    %1950 = vadd.xlane.f32.xlu0 %v1949
    %v1951 = vpop.xlane.xlu0 %1950
    %v1952 = vsel %vm532, %v493, 0.0
    %1953 = vadd.xlane.f32.xlu0 %v1952
    %v1954 = vpop.xlane.xlu0 %1953
    %v1955 = vsel %vm532, %v494, 0.0
    %1956 = vadd.xlane.f32.xlu0 %v1955
    %v1957 = vpop.xlane.xlu0 %1956
    %v1958 = vsel %vm532, %v495, 0.0
    %1959 = vadd.xlane.f32.xlu0 %v1958
    %v1960 = vpop.xlane.xlu0 %1959
    %v1961 = vsel %vm532, %v496, 0.0
    %1962 = vadd.xlane.f32.xlu0 %v1961
    %v1963 = vpop.xlane.xlu0 %1962
    %v1964 = vsel %vm532, %v497, 0.0
    %1965 = vadd.xlane.f32.xlu0 %v1964
    %v1966 = vpop.xlane.xlu0 %1965
    %v1967 = vsel %vm532, %v498, 0.0
    %1968 = vadd.xlane.f32.xlu0 %v1967
    %v1969 = vpop.xlane.xlu0 %1968
    %v1970 = vsel %vm532, %v499, 0.0
    %1971 = vadd.xlane.f32.xlu0 %v1970
    %v1972 = vpop.xlane.xlu0 %1971
    %v1973 = vsel %vm532, %v500, 0.0
    %1974 = vadd.xlane.f32.xlu0 %v1973
    %v1975 = vpop.xlane.xlu0 %1974
    %v1976 = vsel %vm532, %v501, 0.0
    %1977 = vadd.xlane.f32.xlu0 %v1976
    %v1978 = vpop.xlane.xlu0 %1977
    %v1979 = vsel %vm532, %v502, 0.0
    %1980 = vadd.xlane.f32.xlu0 %v1979
    %v1981 = vpop.xlane.xlu0 %1980
    %v1982 = vsel %vm532, %v503, 0.0
    %1983 = vadd.xlane.f32.xlu0 %v1982
    %v1984 = vpop.xlane.xlu0 %1983
    %v1985 = vsel %vm532, %v504, 0.0
    %1986 = vadd.xlane.f32.xlu0 %v1985
    %v1987 = vpop.xlane.xlu0 %1986
    %v1988 = vsel %vm532, %v505, 0.0
    %1989 = vadd.xlane.f32.xlu0 %v1988
    %v1990 = vpop.xlane.xlu0 %1989
    %v1991 = vsel %vm532, %v506, 0.0
    %1992 = vadd.xlane.f32.xlu0 %v1991
    %v1993 = vpop.xlane.xlu0 %1992
    %v1994 = vsel %vm532, %v507, 0.0
    %1995 = vadd.xlane.f32.xlu0 %v1994
    %v1996 = vpop.xlane.xlu0 %1995
    %v1997 = vsel %vm532, %v508, 0.0
    %1998 = vadd.xlane.f32.xlu0 %v1997
    %v1999 = vpop.xlane.xlu0 %1998
    %v2000 = vsel %vm532, %v509, 0.0
    %2001 = vadd.xlane.f32.xlu0 %v2000
    %v2002 = vpop.xlane.xlu0 %2001
    %v2003 = vsel %vm532, %v510, 0.0
    %2004 = vadd.xlane.f32.xlu0 %v2003
    %v2005 = vpop.xlane.xlu0 %2004
    %v2006 = vsel %vm532, %v511, 0.0
    %2007 = vadd.xlane.f32.xlu0 %v2006
    %v2008 = vpop.xlane.xlu0 %2007
    %v2009 = vsel %vm532, %v512, 0.0
    %2010 = vadd.xlane.f32.xlu0 %v2009
    %v2011 = vpop.xlane.xlu0 %2010
    %v2012 = vsel %vm532, %v513, 0.0
    %2013 = vadd.xlane.f32.xlu0 %v2012
    %v2014 = vpop.xlane.xlu0 %2013
    %v2015 = vsel %vm532, %v514, 0.0
    %2016 = vadd.xlane.f32.xlu0 %v2015
    %v2017 = vpop.xlane.xlu0 %2016
    %v2018 = vsel %vm532, %v515, 0.0
    %2019 = vadd.xlane.f32.xlu0 %v2018
    %v2020 = vpop.xlane.xlu0 %2019
    %v2021 = vsel %vm532, %v516, 0.0
    %2022 = vadd.xlane.f32.xlu0 %v2021
    %v2023 = vpop.xlane.xlu0 %2022
    %v2024 = vsel %vm532, %v517, 0.0
    %2025 = vadd.xlane.f32.xlu0 %v2024
    %v2026 = vpop.xlane.xlu0 %2025
    %v2027 = vsel %vm532, %v518, 0.0
    %2028 = vadd.xlane.f32.xlu0 %v2027
    %v2029 = vpop.xlane.xlu0 %2028
    %v2030 = vsel %vm532, %v519, 0.0
    %2031 = vadd.xlane.f32.xlu0 %v2030
    %v2032 = vpop.xlane.xlu0 %2031
    %v2033 = vsel %vm532, %v520, 0.0
    %2034 = vadd.xlane.f32.xlu0 %v2033
    %v2035 = vpop.xlane.xlu0 %2034
    %v2036 = vsel %vm532, %v521, 0.0
    %2037 = vadd.xlane.f32.xlu0 %v2036
    %v2038 = vpop.xlane.xlu0 %2037
    %v2039 = vsel %vm532, %v522, 0.0
    %2040 = vadd.xlane.f32.xlu0 %v2039
    %v2041 = vpop.xlane.xlu0 %2040
    %v2042 = vsel %vm532, %v523, 0.0
    %2043 = vadd.xlane.f32.xlu0 %v2042
    %v2044 = vpop.xlane.xlu0 %2043
    %v2045 = vsel %vm532, %v524, 0.0
    %2046 = vadd.xlane.f32.xlu0 %v2045
    %v2047 = vpop.xlane.xlu0 %2046
    %v2048 = vsel %vm532, %v525, 0.0
    %2049 = vadd.xlane.f32.xlu0 %v2048
    %v2050 = vpop.xlane.xlu0 %2049
    %v2051 = vsel %vm532, %v526, 0.0
    %2052 = vadd.xlane.f32.xlu0 %v2051
    %v2053 = vpop.xlane.xlu0 %2052
    %v2054 = vsel %vm532, %v527, 0.0
    %2055 = vadd.xlane.f32.xlu0 %v2054
    %v2056 = vpop.xlane.xlu0 %2055
    %v2057 = vsel %vm532, %v528, 0.0
    %2058 = vadd.xlane.f32.xlu0 %v2057
    %v2059 = vpop.xlane.xlu0 %2058
    %v2060 = vsel %vm532, %v529, 0.0
    %2061 = vadd.xlane.f32.xlu0 %v2060
    %v2062 = vpop.xlane.xlu0 %2061
    %v2063 = vsel %vm532, %v530, 0.0
    %2064 = vadd.xlane.f32.xlu0 %v2063
    %v2065 = vpop.xlane.xlu0 %2064
    %v2066 = vsel %vm532, %v531, 0.0
    %2067 = vadd.xlane.f32.xlu0 %v2066
    %v2068 = vpop.xlane.xlu0 %2067
    %v2069 = vld [vmem:[#allocation2] sm:$0x3]
    %v2070 = vld [vmem:[%s1] sm:$0xff]
    %v2071 = vld [vmem:[%s1 + $0x8] sm:$0xff]
    %v2072 = vld [vmem:[%s1 + $0x10] sm:$0xff]
    %v2073 = vld [vmem:[%s1 + $0x18] sm:$0xff]
    %v2074 = vld [vmem:[%s1 + $0x20] sm:$0xff]
    %v2075 = vld [vmem:[%s1 + $0x28] sm:$0xff]
    %v2076 = vld [vmem:[%s1 + $0x30] sm:$0xff]
    %v2077 = vld [vmem:[%s1 + $0x38] sm:$0xff]
    %v2078 = vld [vmem:[%s1 + $0x40] sm:$0xff]
    %v2079 = vld [vmem:[%s1 + $0x48] sm:$0xff]
    %v2080 = vld [vmem:[%s1 + $0x50] sm:$0xff]
    %v2081 = vld [vmem:[%s1 + $0x58] sm:$0xff]
    %v2082 = vld [vmem:[%s1 + $0x60] sm:$0xff]
    %v2083 = vld [vmem:[%s1 + $0x68] sm:$0xff]
    %v2084 = vld [vmem:[%s1 + $0x70] sm:$0xff]
    %v2085 = vld [vmem:[%s1 + $0x78] sm:$0xff]
    %v2086 = vld [vmem:[%s1 + $0x80] sm:$0xff]
    %v2087 = vld [vmem:[%s1 + $0x88] sm:$0xff]
    %v2088 = vld [vmem:[%s1 + $0x90] sm:$0xff]
    %v2089 = vld [vmem:[%s1 + $0x98] sm:$0xff]
    %v2090 = vld [vmem:[%s1 + $0xa0] sm:$0xff]
    %v2091 = vld [vmem:[%s1 + $0xa8] sm:$0xff]
    %v2092 = vld [vmem:[%s1 + $0xb0] sm:$0xff]
    %v2093 = vld [vmem:[%s1 + $0xb8] sm:$0xff]
    %v2094 = vld [vmem:[%s1 + $0xc0] sm:$0xff]
    %v2095 = vld [vmem:[%s1 + $0xc8] sm:$0xff]
    %v2096 = vld [vmem:[%s1 + $0xd0] sm:$0xff]
    %v2097 = vld [vmem:[%s1 + $0xd8] sm:$0xff]
    %v2098 = vld [vmem:[%s1 + $0xe0] sm:$0xff]
    %v2099 = vld [vmem:[%s1 + $0xe8] sm:$0xff]
    %v2100 = vld [vmem:[%s1 + $0xf0] sm:$0xff]
    %v2101 = vld [vmem:[%s1 + $0xf8] sm:$0xff]
    %v2102 = vld [vmem:[%s1 + $0x100] sm:$0xff]
    %v2103 = vld [vmem:[%s1 + $0x108] sm:$0xff]
    %v2104 = vld [vmem:[%s1 + $0x110] sm:$0xff]
    %v2105 = vld [vmem:[%s1 + $0x118] sm:$0xff]
    %v2106 = vld [vmem:[%s1 + $0x120] sm:$0xff]
    %v2107 = vld [vmem:[%s1 + $0x128] sm:$0xff]
    %v2108 = vld [vmem:[%s1 + $0x130] sm:$0xff]
    %v2109 = vld [vmem:[%s1 + $0x138] sm:$0xff]
    %v2110 = vld [vmem:[%s1 + $0x140] sm:$0xff]
    %v2111 = vld [vmem:[%s1 + $0x148] sm:$0xff]
    %v2112 = vld [vmem:[%s1 + $0x150] sm:$0xff]
    %v2113 = vld [vmem:[%s1 + $0x158] sm:$0xff]
    %v2114 = vld [vmem:[%s1 + $0x160] sm:$0xff]
    %v2115 = vld [vmem:[%s1 + $0x168] sm:$0xff]
    %v2116 = vld [vmem:[%s1 + $0x170] sm:$0xff]
    %v2117 = vld [vmem:[%s1 + $0x178] sm:$0xff]
    %v2118 = vld [vmem:[%s1 + $0x180] sm:$0xff]
    %v2119 = vld [vmem:[%s1 + $0x188] sm:$0xff]
    %v2120 = vld [vmem:[%s1 + $0x190] sm:$0xff]
    %v2121 = vld [vmem:[%s1 + $0x198] sm:$0xff]
    %v2122 = vld [vmem:[%s1 + $0x1a0] sm:$0xff]
    %v2123 = vld [vmem:[%s1 + $0x1a8] sm:$0xff]
    %v2124 = vld [vmem:[%s1 + $0x1b0] sm:$0xff]
    %v2125 = vld [vmem:[%s1 + $0x1b8] sm:$0xff]
    %v2126 = vld [vmem:[%s1 + $0x1c0] sm:$0xff]
    %v2127 = vld [vmem:[%s1 + $0x1c8] sm:$0xff]
    %v2128 = vld [vmem:[%s1 + $0x1d0] sm:$0xff]
    %v2129 = vld [vmem:[%s1 + $0x1d8] sm:$0xff]
    %v2130 = vld [vmem:[%s1 + $0x1e0] sm:$0xff]
    %v2131 = vld [vmem:[%s1 + $0x1e8] sm:$0xff]
    %v2132 = vld [vmem:[%s1 + $0x1f0] sm:$0xff]
    %v2133 = vld [vmem:[%s1 + $0x1f8] sm:$0xff]
    %v2134 = vld [vmem:[%s1 + $0x200] sm:$0xff]
    %v2135 = vld [vmem:[%s1 + $0x208] sm:$0xff]
    %v2136 = vld [vmem:[%s1 + $0x210] sm:$0xff]
    %v2137 = vld [vmem:[%s1 + $0x218] sm:$0xff]
    %v2138 = vld [vmem:[%s1 + $0x220] sm:$0xff]
    %v2139 = vld [vmem:[%s1 + $0x228] sm:$0xff]
    %v2140 = vld [vmem:[%s1 + $0x230] sm:$0xff]
    %v2141 = vld [vmem:[%s1 + $0x238] sm:$0xff]
    %v2142 = vld [vmem:[%s1 + $0x240] sm:$0xff]
    %v2143 = vld [vmem:[%s1 + $0x248] sm:$0xff]
    %v2144 = vld [vmem:[%s1 + $0x250] sm:$0xff]
    %v2145 = vld [vmem:[%s1 + $0x258] sm:$0xff]
    %v2146 = vld [vmem:[%s1 + $0x260] sm:$0xff]
    %v2147 = vld [vmem:[%s1 + $0x268] sm:$0xff]
    %v2148 = vld [vmem:[%s1 + $0x270] sm:$0xff]
    %v2149 = vld [vmem:[%s1 + $0x278] sm:$0xff]
    %v2150 = vld [vmem:[%s1 + $0x280] sm:$0xff]
    %v2151 = vld [vmem:[%s1 + $0x288] sm:$0xff]
    %v2152 = vld [vmem:[%s1 + $0x290] sm:$0xff]
    %v2153 = vld [vmem:[%s1 + $0x298] sm:$0xff]
    %v2154 = vld [vmem:[%s1 + $0x2a0] sm:$0xff]
    %v2155 = vld [vmem:[%s1 + $0x2a8] sm:$0xff]
    %v2156 = vld [vmem:[%s1 + $0x2b0] sm:$0xff]
    %v2157 = vld [vmem:[%s1 + $0x2b8] sm:$0xff]
    %v2158 = vld [vmem:[%s1 + $0x2c0] sm:$0xff]
    %v2159 = vld [vmem:[%s1 + $0x2c8] sm:$0xff]
    %v2160 = vld [vmem:[%s1 + $0x2d0] sm:$0xff]
    %v2161 = vld [vmem:[%s1 + $0x2d8] sm:$0xff]
    %v2162 = vld [vmem:[%s1 + $0x2e0] sm:$0xff]
    %v2163 = vld [vmem:[%s1 + $0x2e8] sm:$0xff]
    %v2164 = vld [vmem:[%s1 + $0x2f0] sm:$0xff]
    %v2165 = vld [vmem:[%s1 + $0x2f8] sm:$0xff]
    %v2166 = vld [vmem:[%s1 + $0x300] sm:$0xff]
    %v2167 = vld [vmem:[%s1 + $0x308] sm:$0xff]
    %v2168 = vld [vmem:[%s1 + $0x310] sm:$0xff]
    %v2169 = vld [vmem:[%s1 + $0x318] sm:$0xff]
    %v2170 = vld [vmem:[%s1 + $0x320] sm:$0xff]
    %v2171 = vld [vmem:[%s1 + $0x328] sm:$0xff]
    %v2172 = vld [vmem:[%s1 + $0x330] sm:$0xff]
    %v2173 = vld [vmem:[%s1 + $0x338] sm:$0xff]
    %v2174 = vld [vmem:[%s1 + $0x340] sm:$0xff]
    %v2175 = vld [vmem:[%s1 + $0x348] sm:$0xff]
    %v2176 = vld [vmem:[%s1 + $0x350] sm:$0xff]
    %v2177 = vld [vmem:[%s1 + $0x358] sm:$0xff]
    %v2178 = vld [vmem:[%s1 + $0x360] sm:$0xff]
    %v2179 = vld [vmem:[%s1 + $0x368] sm:$0xff]
    %v2180 = vld [vmem:[%s1 + $0x370] sm:$0xff]
    %v2181 = vld [vmem:[%s1 + $0x378] sm:$0xff]
    %v2182 = vld [vmem:[%s1 + $0x380] sm:$0xff]
    %v2183 = vld [vmem:[%s1 + $0x388] sm:$0xff]
    %v2184 = vld [vmem:[%s1 + $0x390] sm:$0xff]
    %v2185 = vld [vmem:[%s1 + $0x398] sm:$0xff]
    %v2186 = vld [vmem:[%s1 + $0x3a0] sm:$0xff]
    %v2187 = vld [vmem:[%s1 + $0x3a8] sm:$0xff]
    %v2188 = vld [vmem:[%s1 + $0x3b0] sm:$0xff]
    %v2189 = vld [vmem:[%s1 + $0x3b8] sm:$0xff]
    %v2190 = vld [vmem:[%s1 + $0x3c0] sm:$0xff]
    %v2191 = vld [vmem:[%s1 + $0x3c8] sm:$0xff]
    %v2192 = vld [vmem:[%s1 + $0x3d0] sm:$0xff]
    %v2193 = vld [vmem:[%s1 + $0x3d8] sm:$0xff]
    %v2194 = vld [vmem:[%s1 + $0x3e0] sm:$0xff]
    %v2195 = vld [vmem:[%s1 + $0x3e8] sm:$0xff]
    %v2196 = vld [vmem:[%s1 + $0x3f0] sm:$0xff]
    %v2197 = vld [vmem:[%s1 + $0x3f8] sm:$0xff]
    %v2198 = vld [vmem:[%s1 + $0x400] sm:$0xff]
    %v2199 = vld [vmem:[%s1 + $0x408] sm:$0xff]
    %v2200 = vld [vmem:[%s1 + $0x410] sm:$0xff]
    %v2201 = vld [vmem:[%s1 + $0x418] sm:$0xff]
    %v2202 = vld [vmem:[%s1 + $0x420] sm:$0xff]
    %v2203 = vld [vmem:[%s1 + $0x428] sm:$0xff]
    %v2204 = vld [vmem:[%s1 + $0x430] sm:$0xff]
    %v2205 = vld [vmem:[%s1 + $0x438] sm:$0xff]
    %v2206 = vld [vmem:[%s1 + $0x440] sm:$0xff]
    %v2207 = vld [vmem:[%s1 + $0x448] sm:$0xff]
    %v2208 = vld [vmem:[%s1 + $0x450] sm:$0xff]
    %v2209 = vld [vmem:[%s1 + $0x458] sm:$0xff]
    %v2210 = vld [vmem:[%s1 + $0x460] sm:$0xff]
    %v2211 = vld [vmem:[%s1 + $0x468] sm:$0xff]
    %v2212 = vld [vmem:[%s1 + $0x470] sm:$0xff]
    %v2213 = vld [vmem:[%s1 + $0x478] sm:$0xff]
    %v2214 = vld [vmem:[%s1 + $0x480] sm:$0xff]
    %v2215 = vld [vmem:[%s1 + $0x488] sm:$0xff]
    %v2216 = vld [vmem:[%s1 + $0x490] sm:$0xff]
    %v2217 = vld [vmem:[%s1 + $0x498] sm:$0xff]
    %v2218 = vld [vmem:[%s1 + $0x4a0] sm:$0xff]
    %v2219 = vld [vmem:[%s1 + $0x4a8] sm:$0xff]
    %v2220 = vld [vmem:[%s1 + $0x4b0] sm:$0xff]
    %v2221 = vld [vmem:[%s1 + $0x4b8] sm:$0xff]
    %v2222 = vld [vmem:[%s1 + $0x4c0] sm:$0xff]
    %v2223 = vld [vmem:[%s1 + $0x4c8] sm:$0xff]
    %v2224 = vld [vmem:[%s1 + $0x4d0] sm:$0xff]
    %v2225 = vld [vmem:[%s1 + $0x4d8] sm:$0xff]
    %v2226 = vld [vmem:[%s1 + $0x4e0] sm:$0xff]
    %v2227 = vld [vmem:[%s1 + $0x4e8] sm:$0xff]
    %v2228 = vld [vmem:[%s1 + $0x4f0] sm:$0xff]
    %v2229 = vld [vmem:[%s1 + $0x4f8] sm:$0xff]
    %v2230 = vld [vmem:[%s1 + $0x500] sm:$0xff]
    %v2231 = vld [vmem:[%s1 + $0x508] sm:$0xff]
    %v2232 = vld [vmem:[%s1 + $0x510] sm:$0xff]
    %v2233 = vld [vmem:[%s1 + $0x518] sm:$0xff]
    %v2234 = vld [vmem:[%s1 + $0x520] sm:$0xff]
    %v2235 = vld [vmem:[%s1 + $0x528] sm:$0xff]
    %v2236 = vld [vmem:[%s1 + $0x530] sm:$0xff]
    %v2237 = vld [vmem:[%s1 + $0x538] sm:$0xff]
    %v2238 = vld [vmem:[%s1 + $0x540] sm:$0xff]
    %v2239 = vld [vmem:[%s1 + $0x548] sm:$0xff]
    %v2240 = vld [vmem:[%s1 + $0x550] sm:$0xff]
    %v2241 = vld [vmem:[%s1 + $0x558] sm:$0xff]
    %v2242 = vld [vmem:[%s1 + $0x560] sm:$0xff]
    %v2243 = vld [vmem:[%s1 + $0x568] sm:$0xff]
    %v2244 = vld [vmem:[%s1 + $0x570] sm:$0xff]
    %v2245 = vld [vmem:[%s1 + $0x578] sm:$0xff]
    %v2246 = vld [vmem:[%s1 + $0x580] sm:$0xff]
    %v2247 = vld [vmem:[%s1 + $0x588] sm:$0xff]
    %v2248 = vld [vmem:[%s1 + $0x590] sm:$0xff]
    %v2249 = vld [vmem:[%s1 + $0x598] sm:$0xff]
    %v2250 = vld [vmem:[%s1 + $0x5a0] sm:$0xff]
    %v2251 = vld [vmem:[%s1 + $0x5a8] sm:$0xff]
    %v2252 = vld [vmem:[%s1 + $0x5b0] sm:$0xff]
    %v2253 = vld [vmem:[%s1 + $0x5b8] sm:$0xff]
    %v2254 = vld [vmem:[%s1 + $0x5c0] sm:$0xff]
    %v2255 = vld [vmem:[%s1 + $0x5c8] sm:$0xff]
    %v2256 = vld [vmem:[%s1 + $0x5d0] sm:$0xff]
    %v2257 = vld [vmem:[%s1 + $0x5d8] sm:$0xff]
    %v2258 = vld [vmem:[%s1 + $0x5e0] sm:$0xff]
    %v2259 = vld [vmem:[%s1 + $0x5e8] sm:$0xff]
    %v2260 = vld [vmem:[%s1 + $0x5f0] sm:$0xff]
    %v2261 = vld [vmem:[%s1 + $0x5f8] sm:$0xff]
    %v2262 = vld [vmem:[%s1 + $0x600] sm:$0xff]
    %v2263 = vld [vmem:[%s1 + $0x608] sm:$0xff]
    %v2264 = vld [vmem:[%s1 + $0x610] sm:$0xff]
    %v2265 = vld [vmem:[%s1 + $0x618] sm:$0xff]
    %v2266 = vld [vmem:[%s1 + $0x620] sm:$0xff]
    %v2267 = vld [vmem:[%s1 + $0x628] sm:$0xff]
    %v2268 = vld [vmem:[%s1 + $0x630] sm:$0xff]
    %v2269 = vld [vmem:[%s1 + $0x638] sm:$0xff]
    %v2270 = vld [vmem:[%s1 + $0x640] sm:$0xff]
    %v2271 = vld [vmem:[%s1 + $0x648] sm:$0xff]
    %v2272 = vld [vmem:[%s1 + $0x650] sm:$0xff]
    %v2273 = vld [vmem:[%s1 + $0x658] sm:$0xff]
    %v2274 = vld [vmem:[%s1 + $0x660] sm:$0xff]
    %v2275 = vld [vmem:[%s1 + $0x668] sm:$0xff]
    %v2276 = vld [vmem:[%s1 + $0x670] sm:$0xff]
    %v2277 = vld [vmem:[%s1 + $0x678] sm:$0xff]
    %v2278 = vld [vmem:[%s1 + $0x680] sm:$0xff]
    %v2279 = vld [vmem:[%s1 + $0x688] sm:$0xff]
    %v2280 = vld [vmem:[%s1 + $0x690] sm:$0xff]
    %v2281 = vld [vmem:[%s1 + $0x698] sm:$0xff]
    %v2282 = vld [vmem:[%s1 + $0x6a0] sm:$0xff]
    %v2283 = vld [vmem:[%s1 + $0x6a8] sm:$0xff]
    %v2284 = vld [vmem:[%s1 + $0x6b0] sm:$0xff]
    %v2285 = vld [vmem:[%s1 + $0x6b8] sm:$0xff]
    %v2286 = vld [vmem:[%s1 + $0x6c0] sm:$0xff]
    %v2287 = vld [vmem:[%s1 + $0x6c8] sm:$0xff]
    %v2288 = vld [vmem:[%s1 + $0x6d0] sm:$0xff]
    %v2289 = vld [vmem:[%s1 + $0x6d8] sm:$0xff]
    %v2290 = vld [vmem:[%s1 + $0x6e0] sm:$0xff]
    %v2291 = vld [vmem:[%s1 + $0x6e8] sm:$0xff]
    %v2292 = vld [vmem:[%s1 + $0x6f0] sm:$0xff]
    %v2293 = vld [vmem:[%s1 + $0x6f8] sm:$0xff]
    %v2294 = vld [vmem:[%s1 + $0x700] sm:$0xff]
    %v2295 = vld [vmem:[%s1 + $0x708] sm:$0xff]
    %v2296 = vld [vmem:[%s1 + $0x710] sm:$0xff]
    %v2297 = vld [vmem:[%s1 + $0x718] sm:$0xff]
    %v2298 = vld [vmem:[%s1 + $0x720] sm:$0xff]
    %v2299 = vld [vmem:[%s1 + $0x728] sm:$0xff]
    %v2300 = vld [vmem:[%s1 + $0x730] sm:$0xff]
    %v2301 = vld [vmem:[%s1 + $0x738] sm:$0xff]
    %v2302 = vld [vmem:[%s1 + $0x740] sm:$0xff]
    %v2303 = vld [vmem:[%s1 + $0x748] sm:$0xff]
    %v2304 = vld [vmem:[%s1 + $0x750] sm:$0xff]
    %v2305 = vld [vmem:[%s1 + $0x758] sm:$0xff]
    %v2306 = vld [vmem:[%s1 + $0x760] sm:$0xff]
    %v2307 = vld [vmem:[%s1 + $0x768] sm:$0xff]
    %v2308 = vld [vmem:[%s1 + $0x770] sm:$0xff]
    %v2309 = vld [vmem:[%s1 + $0x778] sm:$0xff]
    %v2310 = vld [vmem:[%s1 + $0x780] sm:$0xff]
    %v2311 = vld [vmem:[%s1 + $0x788] sm:$0xff]
    %v2312 = vld [vmem:[%s1 + $0x790] sm:$0xff]
    %v2313 = vld [vmem:[%s1 + $0x798] sm:$0xff]
    %v2314 = vld [vmem:[%s1 + $0x7a0] sm:$0xff]
    %v2315 = vld [vmem:[%s1 + $0x7a8] sm:$0xff]
    %v2316 = vld [vmem:[%s1 + $0x7b0] sm:$0xff]
    %v2317 = vld [vmem:[%s1 + $0x7b8] sm:$0xff]
    %v2318 = vld [vmem:[%s1 + $0x7c0] sm:$0xff]
    %v2319 = vld [vmem:[%s1 + $0x7c8] sm:$0xff]
    %v2320 = vld [vmem:[%s1 + $0x7d0] sm:$0xff]
    %v2321 = vld [vmem:[%s1 + $0x7d8] sm:$0xff]
    %v2322 = vld [vmem:[%s1 + $0x7e0] sm:$0xff]
    %v2323 = vld [vmem:[%s1 + $0x7e8] sm:$0xff]
    %v2324 = vld [vmem:[%s1 + $0x7f0] sm:$0xff]
    %v2325 = vld [vmem:[%s1 + $0x7f8] sm:$0xff]
    %v2838 = vlaneseq
    %v2839 = vand.u32 %v2838, 127
    %v2840 = vlaneseq
    %v2841 = vshrl.u32 %v2840, 7
    %v2842 = vsub.s32 %v2839, %v2841
    %v2843 = vrot.slane %v535, %v2842
    %v2844 = vadd.s32 %v2839, 4294967288
    %v2845 = vlaneseq
    %v2846 = vshrl.u32 %v2845, 7
    %v2847 = vsub.s32 %v2844, %v2846
    %v2848 = vrot.slane %v538, %v2847
    %vm2849 = vcmask 130112
    %v2850 = vsel %vm2849, %v2848, %v2843
    %v2851 = vadd.s32 %v2839, 4294967280
    %v2852 = vlaneseq
    %v2853 = vshrl.u32 %v2852, 7
    %v2854 = vsub.s32 %v2851, %v2853
    %v2855 = vrot.slane %v541, %v2854
    %vm2856 = vcmask 195712
    %v2857 = vsel %vm2856, %v2855, %v2850
    %v2858 = vadd.s32 %v2839, 4294967272
    %v2859 = vlaneseq
    %v2860 = vshrl.u32 %v2859, 7
    %v2861 = vsub.s32 %v2858, %v2860
    %v2862 = vrot.slane %v544, %v2861
    %vm2863 = vcmask 261312
    %v2864 = vsel %vm2863, %v2862, %v2857
    %v2865 = vadd.s32 %v2839, 4294967264
    %v2866 = vlaneseq
    %v2867 = vshrl.u32 %v2866, 7
    %v2868 = vsub.s32 %v2865, %v2867
    %v2869 = vrot.slane %v547, %v2868
    %vm2870 = vcmask 326912
    %v2871 = vsel %vm2870, %v2869, %v2864
    %v2872 = vadd.s32 %v2839, 4294967256
    %v2873 = vlaneseq
    %v2874 = vshrl.u32 %v2873, 7
    %v2875 = vsub.s32 %v2872, %v2874
    %v2876 = vrot.slane %v550, %v2875
    %vm2877 = vcmask 392512
    %v2878 = vsel %vm2877, %v2876, %v2871
    %v2879 = vadd.s32 %v2839, 4294967248
    %v2880 = vlaneseq
    %v2881 = vshrl.u32 %v2880, 7
    %v2882 = vsub.s32 %v2879, %v2881
    %v2883 = vrot.slane %v553, %v2882
    %vm2884 = vcmask 458112
    %v2885 = vsel %vm2884, %v2883, %v2878
    %v2886 = vadd.s32 %v2839, 4294967240
    %v2887 = vlaneseq
    %v2888 = vshrl.u32 %v2887, 7
    %v2889 = vsub.s32 %v2886, %v2888
    %v2890 = vrot.slane %v556, %v2889
    %vm2891 = vcmask 523712
    %v2892 = vsel %vm2891, %v2890, %v2885
    %v2893 = vadd.s32 %v2839, 4294967232
    %v2894 = vlaneseq
    %v2895 = vshrl.u32 %v2894, 7
    %v2896 = vsub.s32 %v2893, %v2895
    %v2897 = vrot.slane %v559, %v2896
    %vm2898 = vcmask 589312
    %v2899 = vsel %vm2898, %v2897, %v2892
    %v2900 = vadd.s32 %v2839, 4294967224
    %v2901 = vlaneseq
    %v2902 = vshrl.u32 %v2901, 7
    %v2903 = vsub.s32 %v2900, %v2902
    %v2904 = vrot.slane %v562, %v2903
    %vm2905 = vcmask 654912
    %v2906 = vsel %vm2905, %v2904, %v2899
    %v2907 = vadd.s32 %v2839, 4294967216
    %v2908 = vlaneseq
    %v2909 = vshrl.u32 %v2908, 7
    %v2910 = vsub.s32 %v2907, %v2909
    %v2911 = vrot.slane %v565, %v2910
    %vm2912 = vcmask 720512
    %v2913 = vsel %vm2912, %v2911, %v2906
    %v2914 = vadd.s32 %v2839, 4294967208
    %v2915 = vlaneseq
    %v2916 = vshrl.u32 %v2915, 7
    %v2917 = vsub.s32 %v2914, %v2916
    %v2918 = vrot.slane %v568, %v2917
    %vm2919 = vcmask 786112
    %v2920 = vsel %vm2919, %v2918, %v2913
    %v2921 = vadd.s32 %v2839, 4294967200
    %v2922 = vlaneseq
    %v2923 = vshrl.u32 %v2922, 7
    %v2924 = vsub.s32 %v2921, %v2923
    %v2925 = vrot.slane %v571, %v2924
    %vm2926 = vcmask 851712
    %v2927 = vsel %vm2926, %v2925, %v2920
    %v2928 = vadd.s32 %v2839, 4294967192
    %v2929 = vlaneseq
    %v2930 = vshrl.u32 %v2929, 7
    %v2931 = vsub.s32 %v2928, %v2930
    %v2932 = vrot.slane %v574, %v2931
    %vm2933 = vcmask 917312
    %v2934 = vsel %vm2933, %v2932, %v2927
    %v2935 = vadd.s32 %v2839, 4294967184
    %v2936 = vlaneseq
    %v2937 = vshrl.u32 %v2936, 7
    %v2938 = vsub.s32 %v2935, %v2937
    %v2939 = vrot.slane %v577, %v2938
    %vm2940 = vcmask 982912
    %v2941 = vsel %vm2940, %v2939, %v2934
    %v2942 = vadd.s32 %v2839, 4294967176
    %v2943 = vlaneseq
    %v2944 = vshrl.u32 %v2943, 7
    %v2945 = vsub.s32 %v2942, %v2944
    %v2946 = vrot.slane %v580, %v2945
    %vm2947 = vcmask 1048512
    %v2948 = vsel %vm2947, %v2946, %v2941
    %v2949 = vlaneseq
    %v2950 = vshrl.u32 %v2949, 7
    %v2951 = vsub.s32 %v2839, %v2950
    %v2952 = vrot.slane %v583, %v2951
    %v2953 = vlaneseq
    %v2954 = vshrl.u32 %v2953, 7
    %v2955 = vsub.s32 %v2844, %v2954
    %v2956 = vrot.slane %v586, %v2955
    %v2957 = vsel %vm2849, %v2956, %v2952
    %v2958 = vlaneseq
    %v2959 = vshrl.u32 %v2958, 7
    %v2960 = vsub.s32 %v2851, %v2959
    %v2961 = vrot.slane %v589, %v2960
    %v2962 = vsel %vm2856, %v2961, %v2957
    %v2963 = vlaneseq
    %v2964 = vshrl.u32 %v2963, 7
    %v2965 = vsub.s32 %v2858, %v2964
    %v2966 = vrot.slane %v592, %v2965
    %v2967 = vsel %vm2863, %v2966, %v2962
    %v2968 = vlaneseq
    %v2969 = vshrl.u32 %v2968, 7
    %v2970 = vsub.s32 %v2865, %v2969
    %v2971 = vrot.slane %v595, %v2970
    %v2972 = vsel %vm2870, %v2971, %v2967
    %v2973 = vlaneseq
    %v2974 = vshrl.u32 %v2973, 7
    %v2975 = vsub.s32 %v2872, %v2974
    %v2976 = vrot.slane %v598, %v2975
    %v2977 = vsel %vm2877, %v2976, %v2972
    %v2978 = vlaneseq
    %v2979 = vshrl.u32 %v2978, 7
    %v2980 = vsub.s32 %v2879, %v2979
    %v2981 = vrot.slane %v601, %v2980
    %v2982 = vsel %vm2884, %v2981, %v2977
    %v2983 = vlaneseq
    %v2984 = vshrl.u32 %v2983, 7
    %v2985 = vsub.s32 %v2886, %v2984
    %v2986 = vrot.slane %v604, %v2985
    %v2987 = vsel %vm2891, %v2986, %v2982
    %v2988 = vlaneseq
    %v2989 = vshrl.u32 %v2988, 7
    %v2990 = vsub.s32 %v2893, %v2989
    %v2991 = vrot.slane %v607, %v2990
    %v2992 = vsel %vm2898, %v2991, %v2987
    %v2993 = vlaneseq
    %v2994 = vshrl.u32 %v2993, 7
    %v2995 = vsub.s32 %v2900, %v2994
    %v2996 = vrot.slane %v610, %v2995
    %v2997 = vsel %vm2905, %v2996, %v2992
    %v2998 = vlaneseq
    %v2999 = vshrl.u32 %v2998, 7
    %v3000 = vsub.s32 %v2907, %v2999
    %v3001 = vrot.slane %v613, %v3000
    %v3002 = vsel %vm2912, %v3001, %v2997
    %v3003 = vlaneseq
    %v3004 = vshrl.u32 %v3003, 7
    %v3005 = vsub.s32 %v2914, %v3004
    %v3006 = vrot.slane %v616, %v3005
    %v3007 = vsel %vm2919, %v3006, %v3002
    %v3008 = vlaneseq
    %v3009 = vshrl.u32 %v3008, 7
    %v3010 = vsub.s32 %v2921, %v3009
    %v3011 = vrot.slane %v619, %v3010
    %v3012 = vsel %vm2926, %v3011, %v3007
    %v3013 = vlaneseq
    %v3014 = vshrl.u32 %v3013, 7
    %v3015 = vsub.s32 %v2928, %v3014
    %v3016 = vrot.slane %v622, %v3015
    %v3017 = vsel %vm2933, %v3016, %v3012
    %v3018 = vlaneseq
    %v3019 = vshrl.u32 %v3018, 7
    %v3020 = vsub.s32 %v2935, %v3019
    %v3021 = vrot.slane %v625, %v3020
    %v3022 = vsel %vm2940, %v3021, %v3017
    %v3023 = vlaneseq
    %v3024 = vshrl.u32 %v3023, 7
    %v3025 = vsub.s32 %v2942, %v3024
    %v3026 = vrot.slane %v628, %v3025
    %v3027 = vsel %vm2947, %v3026, %v3022
    %v3028 = vlaneseq
    %v3029 = vshrl.u32 %v3028, 7
    %v3030 = vsub.s32 %v2839, %v3029
    %v3031 = vrot.slane %v631, %v3030
    %v3032 = vlaneseq
    %v3033 = vshrl.u32 %v3032, 7
    %v3034 = vsub.s32 %v2844, %v3033
    %v3035 = vrot.slane %v634, %v3034
    %v3036 = vsel %vm2849, %v3035, %v3031
    %v3037 = vlaneseq
    %v3038 = vshrl.u32 %v3037, 7
    %v3039 = vsub.s32 %v2851, %v3038
    %v3040 = vrot.slane %v637, %v3039
    %v3041 = vsel %vm2856, %v3040, %v3036
    %v3042 = vlaneseq
    %v3043 = vshrl.u32 %v3042, 7
    %v3044 = vsub.s32 %v2858, %v3043
    %v3045 = vrot.slane %v640, %v3044
    %v3046 = vsel %vm2863, %v3045, %v3041
    %v3047 = vlaneseq
    %v3048 = vshrl.u32 %v3047, 7
    %v3049 = vsub.s32 %v2865, %v3048
    %v3050 = vrot.slane %v643, %v3049
    %v3051 = vsel %vm2870, %v3050, %v3046
    %v3052 = vlaneseq
    %v3053 = vshrl.u32 %v3052, 7
    %v3054 = vsub.s32 %v2872, %v3053
    %v3055 = vrot.slane %v646, %v3054
    %v3056 = vsel %vm2877, %v3055, %v3051
    %v3057 = vlaneseq
    %v3058 = vshrl.u32 %v3057, 7
    %v3059 = vsub.s32 %v2879, %v3058
    %v3060 = vrot.slane %v649, %v3059
    %v3061 = vsel %vm2884, %v3060, %v3056
    %v3062 = vlaneseq
    %v3063 = vshrl.u32 %v3062, 7
    %v3064 = vsub.s32 %v2886, %v3063
    %v3065 = vrot.slane %v652, %v3064
    %v3066 = vsel %vm2891, %v3065, %v3061
    %v3067 = vlaneseq
    %v3068 = vshrl.u32 %v3067, 7
    %v3069 = vsub.s32 %v2893, %v3068
    %v3070 = vrot.slane %v655, %v3069
    %v3071 = vsel %vm2898, %v3070, %v3066
    %v3072 = vlaneseq
    %v3073 = vshrl.u32 %v3072, 7
    %v3074 = vsub.s32 %v2900, %v3073
    %v3075 = vrot.slane %v658, %v3074
    %v3076 = vsel %vm2905, %v3075, %v3071
    %v3077 = vlaneseq
    %v3078 = vshrl.u32 %v3077, 7
    %v3079 = vsub.s32 %v2907, %v3078
    %v3080 = vrot.slane %v661, %v3079
    %v3081 = vsel %vm2912, %v3080, %v3076
    %v3082 = vlaneseq
    %v3083 = vshrl.u32 %v3082, 7
    %v3084 = vsub.s32 %v2914, %v3083
    %v3085 = vrot.slane %v664, %v3084
    %v3086 = vsel %vm2919, %v3085, %v3081
    %v3087 = vlaneseq
    %v3088 = vshrl.u32 %v3087, 7
    %v3089 = vsub.s32 %v2921, %v3088
    %v3090 = vrot.slane %v667, %v3089
    %v3091 = vsel %vm2926, %v3090, %v3086
    %v3092 = vlaneseq
    %v3093 = vshrl.u32 %v3092, 7
    %v3094 = vsub.s32 %v2928, %v3093
    %v3095 = vrot.slane %v670, %v3094
    %v3096 = vsel %vm2933, %v3095, %v3091
    %v3097 = vlaneseq
    %v3098 = vshrl.u32 %v3097, 7
    %v3099 = vsub.s32 %v2935, %v3098
    %v3100 = vrot.slane %v673, %v3099
    %v3101 = vsel %vm2940, %v3100, %v3096
    %v3102 = vlaneseq
    %v3103 = vshrl.u32 %v3102, 7
    %v3104 = vsub.s32 %v2942, %v3103
    %v3105 = vrot.slane %v676, %v3104
    %v3106 = vsel %vm2947, %v3105, %v3101
    %v3107 = vlaneseq
    %v3108 = vshrl.u32 %v3107, 7
    %v3109 = vsub.s32 %v2839, %v3108
    %v3110 = vrot.slane %v679, %v3109
    %v3111 = vlaneseq
    %v3112 = vshrl.u32 %v3111, 7
    %v3113 = vsub.s32 %v2844, %v3112
    %v3114 = vrot.slane %v682, %v3113
    %v3115 = vsel %vm2849, %v3114, %v3110
    %v3116 = vlaneseq
    %v3117 = vshrl.u32 %v3116, 7
    %v3118 = vsub.s32 %v2851, %v3117
    %v3119 = vrot.slane %v685, %v3118
    %v3120 = vsel %vm2856, %v3119, %v3115
    %v3121 = vlaneseq
    %v3122 = vshrl.u32 %v3121, 7
    %v3123 = vsub.s32 %v2858, %v3122
    %v3124 = vrot.slane %v688, %v3123
    %v3125 = vsel %vm2863, %v3124, %v3120
    %v3126 = vlaneseq
    %v3127 = vshrl.u32 %v3126, 7
    %v3128 = vsub.s32 %v2865, %v3127
    %v3129 = vrot.slane %v691, %v3128
    %v3130 = vsel %vm2870, %v3129, %v3125
    %v3131 = vlaneseq
    %v3132 = vshrl.u32 %v3131, 7
    %v3133 = vsub.s32 %v2872, %v3132
    %v3134 = vrot.slane %v694, %v3133
    %v3135 = vsel %vm2877, %v3134, %v3130
    %v3136 = vlaneseq
    %v3137 = vshrl.u32 %v3136, 7
    %v3138 = vsub.s32 %v2879, %v3137
    %v3139 = vrot.slane %v697, %v3138
    %v3140 = vsel %vm2884, %v3139, %v3135
    %v3141 = vlaneseq
    %v3142 = vshrl.u32 %v3141, 7
    %v3143 = vsub.s32 %v2886, %v3142
    %v3144 = vrot.slane %v700, %v3143
    %v3145 = vsel %vm2891, %v3144, %v3140
    %v3146 = vlaneseq
    %v3147 = vshrl.u32 %v3146, 7
    %v3148 = vsub.s32 %v2893, %v3147
    %v3149 = vrot.slane %v703, %v3148
    %v3150 = vsel %vm2898, %v3149, %v3145
    %v3151 = vlaneseq
    %v3152 = vshrl.u32 %v3151, 7
    %v3153 = vsub.s32 %v2900, %v3152
    %v3154 = vrot.slane %v706, %v3153
    %v3155 = vsel %vm2905, %v3154, %v3150
    %v3156 = vlaneseq
    %v3157 = vshrl.u32 %v3156, 7
    %v3158 = vsub.s32 %v2907, %v3157
    %v3159 = vrot.slane %v709, %v3158
    %v3160 = vsel %vm2912, %v3159, %v3155
    %v3161 = vlaneseq
    %v3162 = vshrl.u32 %v3161, 7
    %v3163 = vsub.s32 %v2914, %v3162
    %v3164 = vrot.slane %v712, %v3163
    %v3165 = vsel %vm2919, %v3164, %v3160
    %v3166 = vlaneseq
    %v3167 = vshrl.u32 %v3166, 7
    %v3168 = vsub.s32 %v2921, %v3167
    %v3169 = vrot.slane %v715, %v3168
    %v3170 = vsel %vm2926, %v3169, %v3165
    %v3171 = vlaneseq
    %v3172 = vshrl.u32 %v3171, 7
    %v3173 = vsub.s32 %v2928, %v3172
    %v3174 = vrot.slane %v718, %v3173
    %v3175 = vsel %vm2933, %v3174, %v3170
    %v3176 = vlaneseq
    %v3177 = vshrl.u32 %v3176, 7
    %v3178 = vsub.s32 %v2935, %v3177
    %v3179 = vrot.slane %v721, %v3178
    %v3180 = vsel %vm2940, %v3179, %v3175
    %v3181 = vlaneseq
    %v3182 = vshrl.u32 %v3181, 7
    %v3183 = vsub.s32 %v2942, %v3182
    %v3184 = vrot.slane %v724, %v3183
    %v3185 = vsel %vm2947, %v3184, %v3180
    %v3186 = vlaneseq
    %v3187 = vshrl.u32 %v3186, 7
    %v3188 = vsub.s32 %v2839, %v3187
    %v3189 = vrot.slane %v727, %v3188
    %v3190 = vlaneseq
    %v3191 = vshrl.u32 %v3190, 7
    %v3192 = vsub.s32 %v2844, %v3191
    %v3193 = vrot.slane %v730, %v3192
    %v3194 = vsel %vm2849, %v3193, %v3189
    %v3195 = vlaneseq
    %v3196 = vshrl.u32 %v3195, 7
    %v3197 = vsub.s32 %v2851, %v3196
    %v3198 = vrot.slane %v733, %v3197
    %v3199 = vsel %vm2856, %v3198, %v3194
    %v3200 = vlaneseq
    %v3201 = vshrl.u32 %v3200, 7
    %v3202 = vsub.s32 %v2858, %v3201
    %v3203 = vrot.slane %v736, %v3202
    %v3204 = vsel %vm2863, %v3203, %v3199
    %v3205 = vlaneseq
    %v3206 = vshrl.u32 %v3205, 7
    %v3207 = vsub.s32 %v2865, %v3206
    %v3208 = vrot.slane %v739, %v3207
    %v3209 = vsel %vm2870, %v3208, %v3204
    %v3210 = vlaneseq
    %v3211 = vshrl.u32 %v3210, 7
    %v3212 = vsub.s32 %v2872, %v3211
    %v3213 = vrot.slane %v742, %v3212
    %v3214 = vsel %vm2877, %v3213, %v3209
    %v3215 = vlaneseq
    %v3216 = vshrl.u32 %v3215, 7
    %v3217 = vsub.s32 %v2879, %v3216
    %v3218 = vrot.slane %v745, %v3217
    %v3219 = vsel %vm2884, %v3218, %v3214
    %v3220 = vlaneseq
    %v3221 = vshrl.u32 %v3220, 7
    %v3222 = vsub.s32 %v2886, %v3221
    %v3223 = vrot.slane %v748, %v3222
    %v3224 = vsel %vm2891, %v3223, %v3219
    %v3225 = vlaneseq
    %v3226 = vshrl.u32 %v3225, 7
    %v3227 = vsub.s32 %v2893, %v3226
    %v3228 = vrot.slane %v751, %v3227
    %v3229 = vsel %vm2898, %v3228, %v3224
    %v3230 = vlaneseq
    %v3231 = vshrl.u32 %v3230, 7
    %v3232 = vsub.s32 %v2900, %v3231
    %v3233 = vrot.slane %v754, %v3232
    %v3234 = vsel %vm2905, %v3233, %v3229
    %v3235 = vlaneseq
    %v3236 = vshrl.u32 %v3235, 7
    %v3237 = vsub.s32 %v2907, %v3236
    %v3238 = vrot.slane %v757, %v3237
    %v3239 = vsel %vm2912, %v3238, %v3234
    %v3240 = vlaneseq
    %v3241 = vshrl.u32 %v3240, 7
    %v3242 = vsub.s32 %v2914, %v3241
    %v3243 = vrot.slane %v760, %v3242
    %v3244 = vsel %vm2919, %v3243, %v3239
    %v3245 = vlaneseq
    %v3246 = vshrl.u32 %v3245, 7
    %v3247 = vsub.s32 %v2921, %v3246
    %v3248 = vrot.slane %v763, %v3247
    %v3249 = vsel %vm2926, %v3248, %v3244
    %v3250 = vlaneseq
    %v3251 = vshrl.u32 %v3250, 7
    %v3252 = vsub.s32 %v2928, %v3251
    %v3253 = vrot.slane %v766, %v3252
    %v3254 = vsel %vm2933, %v3253, %v3249
    %v3255 = vlaneseq
    %v3256 = vshrl.u32 %v3255, 7
    %v3257 = vsub.s32 %v2935, %v3256
    %v3258 = vrot.slane %v769, %v3257
    %v3259 = vsel %vm2940, %v3258, %v3254
    %v3260 = vlaneseq
    %v3261 = vshrl.u32 %v3260, 7
    %v3262 = vsub.s32 %v2942, %v3261
    %v3263 = vrot.slane %v772, %v3262
    %v3264 = vsel %vm2947, %v3263, %v3259
    %v3265 = vlaneseq
    %v3266 = vshrl.u32 %v3265, 7
    %v3267 = vsub.s32 %v2839, %v3266
    %v3268 = vrot.slane %v775, %v3267
    %v3269 = vlaneseq
    %v3270 = vshrl.u32 %v3269, 7
    %v3271 = vsub.s32 %v2844, %v3270
    %v3272 = vrot.slane %v778, %v3271
    %v3273 = vsel %vm2849, %v3272, %v3268
    %v3274 = vlaneseq
    %v3275 = vshrl.u32 %v3274, 7
    %v3276 = vsub.s32 %v2851, %v3275
    %v3277 = vrot.slane %v781, %v3276
    %v3278 = vsel %vm2856, %v3277, %v3273
    %v3279 = vlaneseq
    %v3280 = vshrl.u32 %v3279, 7
    %v3281 = vsub.s32 %v2858, %v3280
    %v3282 = vrot.slane %v784, %v3281
    %v3283 = vsel %vm2863, %v3282, %v3278
    %v3284 = vlaneseq
    %v3285 = vshrl.u32 %v3284, 7
    %v3286 = vsub.s32 %v2865, %v3285
    %v3287 = vrot.slane %v787, %v3286
    %v3288 = vsel %vm2870, %v3287, %v3283
    %v3289 = vlaneseq
    %v3290 = vshrl.u32 %v3289, 7
    %v3291 = vsub.s32 %v2872, %v3290
    %v3292 = vrot.slane %v790, %v3291
    %v3293 = vsel %vm2877, %v3292, %v3288
    %v3294 = vlaneseq
    %v3295 = vshrl.u32 %v3294, 7
    %v3296 = vsub.s32 %v2879, %v3295
    %v3297 = vrot.slane %v793, %v3296
    %v3298 = vsel %vm2884, %v3297, %v3293
    %v3299 = vlaneseq
    %v3300 = vshrl.u32 %v3299, 7
    %v3301 = vsub.s32 %v2886, %v3300
    %v3302 = vrot.slane %v796, %v3301
    %v3303 = vsel %vm2891, %v3302, %v3298
    %v3304 = vlaneseq
    %v3305 = vshrl.u32 %v3304, 7
    %v3306 = vsub.s32 %v2893, %v3305
    %v3307 = vrot.slane %v799, %v3306
    %v3308 = vsel %vm2898, %v3307, %v3303
    %v3309 = vlaneseq
    %v3310 = vshrl.u32 %v3309, 7
    %v3311 = vsub.s32 %v2900, %v3310
    %v3312 = vrot.slane %v802, %v3311
    %v3313 = vsel %vm2905, %v3312, %v3308
    %v3314 = vlaneseq
    %v3315 = vshrl.u32 %v3314, 7
    %v3316 = vsub.s32 %v2907, %v3315
    %v3317 = vrot.slane %v805, %v3316
    %v3318 = vsel %vm2912, %v3317, %v3313
    %v3319 = vlaneseq
    %v3320 = vshrl.u32 %v3319, 7
    %v3321 = vsub.s32 %v2914, %v3320
    %v3322 = vrot.slane %v808, %v3321
    %v3323 = vsel %vm2919, %v3322, %v3318
    %v3324 = vlaneseq
    %v3325 = vshrl.u32 %v3324, 7
    %v3326 = vsub.s32 %v2921, %v3325
    %v3327 = vrot.slane %v811, %v3326
    %v3328 = vsel %vm2926, %v3327, %v3323
    %v3329 = vlaneseq
    %v3330 = vshrl.u32 %v3329, 7
    %v3331 = vsub.s32 %v2928, %v3330
    %v3332 = vrot.slane %v814, %v3331
    %v3333 = vsel %vm2933, %v3332, %v3328
    %v3334 = vlaneseq
    %v3335 = vshrl.u32 %v3334, 7
    %v3336 = vsub.s32 %v2935, %v3335
    %v3337 = vrot.slane %v817, %v3336
    %v3338 = vsel %vm2940, %v3337, %v3333
    %v3339 = vlaneseq
    %v3340 = vshrl.u32 %v3339, 7
    %v3341 = vsub.s32 %v2942, %v3340
    %v3342 = vrot.slane %v820, %v3341
    %v3343 = vsel %vm2947, %v3342, %v3338
    %v3344 = vlaneseq
    %v3345 = vshrl.u32 %v3344, 7
    %v3346 = vsub.s32 %v2839, %v3345
    %v3347 = vrot.slane %v823, %v3346
    %v3348 = vlaneseq
    %v3349 = vshrl.u32 %v3348, 7
    %v3350 = vsub.s32 %v2844, %v3349
    %v3351 = vrot.slane %v826, %v3350
    %v3352 = vsel %vm2849, %v3351, %v3347
    %v3353 = vlaneseq
    %v3354 = vshrl.u32 %v3353, 7
    %v3355 = vsub.s32 %v2851, %v3354
    %v3356 = vrot.slane %v829, %v3355
    %v3357 = vsel %vm2856, %v3356, %v3352
    %v3358 = vlaneseq
    %v3359 = vshrl.u32 %v3358, 7
    %v3360 = vsub.s32 %v2858, %v3359
    %v3361 = vrot.slane %v832, %v3360
    %v3362 = vsel %vm2863, %v3361, %v3357
    %v3363 = vlaneseq
    %v3364 = vshrl.u32 %v3363, 7
    %v3365 = vsub.s32 %v2865, %v3364
    %v3366 = vrot.slane %v835, %v3365
    %v3367 = vsel %vm2870, %v3366, %v3362
    %v3368 = vlaneseq
    %v3369 = vshrl.u32 %v3368, 7
    %v3370 = vsub.s32 %v2872, %v3369
    %v3371 = vrot.slane %v838, %v3370
    %v3372 = vsel %vm2877, %v3371, %v3367
    %v3373 = vlaneseq
    %v3374 = vshrl.u32 %v3373, 7
    %v3375 = vsub.s32 %v2879, %v3374
    %v3376 = vrot.slane %v841, %v3375
    %v3377 = vsel %vm2884, %v3376, %v3372
    %v3378 = vlaneseq
    %v3379 = vshrl.u32 %v3378, 7
    %v3380 = vsub.s32 %v2886, %v3379
    %v3381 = vrot.slane %v844, %v3380
    %v3382 = vsel %vm2891, %v3381, %v3377
    %v3383 = vlaneseq
    %v3384 = vshrl.u32 %v3383, 7
    %v3385 = vsub.s32 %v2893, %v3384
    %v3386 = vrot.slane %v847, %v3385
    %v3387 = vsel %vm2898, %v3386, %v3382
    %v3388 = vlaneseq
    %v3389 = vshrl.u32 %v3388, 7
    %v3390 = vsub.s32 %v2900, %v3389
    %v3391 = vrot.slane %v850, %v3390
    %v3392 = vsel %vm2905, %v3391, %v3387
    %v3393 = vlaneseq
    %v3394 = vshrl.u32 %v3393, 7
    %v3395 = vsub.s32 %v2907, %v3394
    %v3396 = vrot.slane %v853, %v3395
    %v3397 = vsel %vm2912, %v3396, %v3392
    %v3398 = vlaneseq
    %v3399 = vshrl.u32 %v3398, 7
    %v3400 = vsub.s32 %v2914, %v3399
    %v3401 = vrot.slane %v856, %v3400
    %v3402 = vsel %vm2919, %v3401, %v3397
    %v3403 = vlaneseq
    %v3404 = vshrl.u32 %v3403, 7
    %v3405 = vsub.s32 %v2921, %v3404
    %v3406 = vrot.slane %v859, %v3405
    %v3407 = vsel %vm2926, %v3406, %v3402
    %v3408 = vlaneseq
    %v3409 = vshrl.u32 %v3408, 7
    %v3410 = vsub.s32 %v2928, %v3409
    %v3411 = vrot.slane %v862, %v3410
    %v3412 = vsel %vm2933, %v3411, %v3407
    %v3413 = vlaneseq
    %v3414 = vshrl.u32 %v3413, 7
    %v3415 = vsub.s32 %v2935, %v3414
    %v3416 = vrot.slane %v865, %v3415
    %v3417 = vsel %vm2940, %v3416, %v3412
    %v3418 = vlaneseq
    %v3419 = vshrl.u32 %v3418, 7
    %v3420 = vsub.s32 %v2942, %v3419
    %v3421 = vrot.slane %v868, %v3420
    %v3422 = vsel %vm2947, %v3421, %v3417
    %v3423 = vlaneseq
    %v3424 = vshrl.u32 %v3423, 7
    %v3425 = vsub.s32 %v2839, %v3424
    %v3426 = vrot.slane %v871, %v3425
    %v3427 = vlaneseq
    %v3428 = vshrl.u32 %v3427, 7
    %v3429 = vsub.s32 %v2844, %v3428
    %v3430 = vrot.slane %v874, %v3429
    %v3431 = vsel %vm2849, %v3430, %v3426
    %v3432 = vlaneseq
    %v3433 = vshrl.u32 %v3432, 7
    %v3434 = vsub.s32 %v2851, %v3433
    %v3435 = vrot.slane %v877, %v3434
    %v3436 = vsel %vm2856, %v3435, %v3431
    %v3437 = vlaneseq
    %v3438 = vshrl.u32 %v3437, 7
    %v3439 = vsub.s32 %v2858, %v3438
    %v3440 = vrot.slane %v880, %v3439
    %v3441 = vsel %vm2863, %v3440, %v3436
    %v3442 = vlaneseq
    %v3443 = vshrl.u32 %v3442, 7
    %v3444 = vsub.s32 %v2865, %v3443
    %v3445 = vrot.slane %v883, %v3444
    %v3446 = vsel %vm2870, %v3445, %v3441
    %v3447 = vlaneseq
    %v3448 = vshrl.u32 %v3447, 7
    %v3449 = vsub.s32 %v2872, %v3448
    %v3450 = vrot.slane %v886, %v3449
    %v3451 = vsel %vm2877, %v3450, %v3446
    %v3452 = vlaneseq
    %v3453 = vshrl.u32 %v3452, 7
    %v3454 = vsub.s32 %v2879, %v3453
    %v3455 = vrot.slane %v889, %v3454
    %v3456 = vsel %vm2884, %v3455, %v3451
    %v3457 = vlaneseq
    %v3458 = vshrl.u32 %v3457, 7
    %v3459 = vsub.s32 %v2886, %v3458
    %v3460 = vrot.slane %v892, %v3459
    %v3461 = vsel %vm2891, %v3460, %v3456
    %v3462 = vlaneseq
    %v3463 = vshrl.u32 %v3462, 7
    %v3464 = vsub.s32 %v2893, %v3463
    %v3465 = vrot.slane %v895, %v3464
    %v3466 = vsel %vm2898, %v3465, %v3461
    %v3467 = vlaneseq
    %v3468 = vshrl.u32 %v3467, 7
    %v3469 = vsub.s32 %v2900, %v3468
    %v3470 = vrot.slane %v898, %v3469
    %v3471 = vsel %vm2905, %v3470, %v3466
    %v3472 = vlaneseq
    %v3473 = vshrl.u32 %v3472, 7
    %v3474 = vsub.s32 %v2907, %v3473
    %v3475 = vrot.slane %v901, %v3474
    %v3476 = vsel %vm2912, %v3475, %v3471
    %v3477 = vlaneseq
    %v3478 = vshrl.u32 %v3477, 7
    %v3479 = vsub.s32 %v2914, %v3478
    %v3480 = vrot.slane %v904, %v3479
    %v3481 = vsel %vm2919, %v3480, %v3476
    %v3482 = vlaneseq
    %v3483 = vshrl.u32 %v3482, 7
    %v3484 = vsub.s32 %v2921, %v3483
    %v3485 = vrot.slane %v907, %v3484
    %v3486 = vsel %vm2926, %v3485, %v3481
    %v3487 = vlaneseq
    %v3488 = vshrl.u32 %v3487, 7
    %v3489 = vsub.s32 %v2928, %v3488
    %v3490 = vrot.slane %v910, %v3489
    %v3491 = vsel %vm2933, %v3490, %v3486
    %v3492 = vlaneseq
    %v3493 = vshrl.u32 %v3492, 7
    %v3494 = vsub.s32 %v2935, %v3493
    %v3495 = vrot.slane %v913, %v3494
    %v3496 = vsel %vm2940, %v3495, %v3491
    %v3497 = vlaneseq
    %v3498 = vshrl.u32 %v3497, 7
    %v3499 = vsub.s32 %v2942, %v3498
    %v3500 = vrot.slane %v916, %v3499
    %v3501 = vsel %vm2947, %v3500, %v3496
    %v3502 = vlaneseq
    %v3503 = vshrl.u32 %v3502, 7
    %v3504 = vsub.s32 %v2839, %v3503
    %v3505 = vrot.slane %v919, %v3504
    %v3506 = vlaneseq
    %v3507 = vshrl.u32 %v3506, 7
    %v3508 = vsub.s32 %v2844, %v3507
    %v3509 = vrot.slane %v922, %v3508
    %v3510 = vsel %vm2849, %v3509, %v3505
    %v3511 = vlaneseq
    %v3512 = vshrl.u32 %v3511, 7
    %v3513 = vsub.s32 %v2851, %v3512
    %v3514 = vrot.slane %v925, %v3513
    %v3515 = vsel %vm2856, %v3514, %v3510
    %v3516 = vlaneseq
    %v3517 = vshrl.u32 %v3516, 7
    %v3518 = vsub.s32 %v2858, %v3517
    %v3519 = vrot.slane %v928, %v3518
    %v3520 = vsel %vm2863, %v3519, %v3515
    %v3521 = vlaneseq
    %v3522 = vshrl.u32 %v3521, 7
    %v3523 = vsub.s32 %v2865, %v3522
    %v3524 = vrot.slane %v931, %v3523
    %v3525 = vsel %vm2870, %v3524, %v3520
    %v3526 = vlaneseq
    %v3527 = vshrl.u32 %v3526, 7
    %v3528 = vsub.s32 %v2872, %v3527
    %v3529 = vrot.slane %v934, %v3528
    %v3530 = vsel %vm2877, %v3529, %v3525
    %v3531 = vlaneseq
    %v3532 = vshrl.u32 %v3531, 7
    %v3533 = vsub.s32 %v2879, %v3532
    %v3534 = vrot.slane %v937, %v3533
    %v3535 = vsel %vm2884, %v3534, %v3530
    %v3536 = vlaneseq
    %v3537 = vshrl.u32 %v3536, 7
    %v3538 = vsub.s32 %v2886, %v3537
    %v3539 = vrot.slane %v940, %v3538
    %v3540 = vsel %vm2891, %v3539, %v3535
    %v3541 = vlaneseq
    %v3542 = vshrl.u32 %v3541, 7
    %v3543 = vsub.s32 %v2893, %v3542
    %v3544 = vrot.slane %v943, %v3543
    %v3545 = vsel %vm2898, %v3544, %v3540
    %v3546 = vlaneseq
    %v3547 = vshrl.u32 %v3546, 7
    %v3548 = vsub.s32 %v2900, %v3547
    %v3549 = vrot.slane %v946, %v3548
    %v3550 = vsel %vm2905, %v3549, %v3545
    %v3551 = vlaneseq
    %v3552 = vshrl.u32 %v3551, 7
    %v3553 = vsub.s32 %v2907, %v3552
    %v3554 = vrot.slane %v949, %v3553
    %v3555 = vsel %vm2912, %v3554, %v3550
    %v3556 = vlaneseq
    %v3557 = vshrl.u32 %v3556, 7
    %v3558 = vsub.s32 %v2914, %v3557
    %v3559 = vrot.slane %v952, %v3558
    %v3560 = vsel %vm2919, %v3559, %v3555
    %v3561 = vlaneseq
    %v3562 = vshrl.u32 %v3561, 7
    %v3563 = vsub.s32 %v2921, %v3562
    %v3564 = vrot.slane %v955, %v3563
    %v3565 = vsel %vm2926, %v3564, %v3560
    %v3566 = vlaneseq
    %v3567 = vshrl.u32 %v3566, 7
    %v3568 = vsub.s32 %v2928, %v3567
    %v3569 = vrot.slane %v958, %v3568
    %v3570 = vsel %vm2933, %v3569, %v3565
    %v3571 = vlaneseq
    %v3572 = vshrl.u32 %v3571, 7
    %v3573 = vsub.s32 %v2935, %v3572
    %v3574 = vrot.slane %v961, %v3573
    %v3575 = vsel %vm2940, %v3574, %v3570
    %v3576 = vlaneseq
    %v3577 = vshrl.u32 %v3576, 7
    %v3578 = vsub.s32 %v2942, %v3577
    %v3579 = vrot.slane %v964, %v3578
    %v3580 = vsel %vm2947, %v3579, %v3575
    %v3581 = vlaneseq
    %v3582 = vshrl.u32 %v3581, 7
    %v3583 = vsub.s32 %v2839, %v3582
    %v3584 = vrot.slane %v967, %v3583
    %v3585 = vlaneseq
    %v3586 = vshrl.u32 %v3585, 7
    %v3587 = vsub.s32 %v2844, %v3586
    %v3588 = vrot.slane %v970, %v3587
    %v3589 = vsel %vm2849, %v3588, %v3584
    %v3590 = vlaneseq
    %v3591 = vshrl.u32 %v3590, 7
    %v3592 = vsub.s32 %v2851, %v3591
    %v3593 = vrot.slane %v973, %v3592
    %v3594 = vsel %vm2856, %v3593, %v3589
    %v3595 = vlaneseq
    %v3596 = vshrl.u32 %v3595, 7
    %v3597 = vsub.s32 %v2858, %v3596
    %v3598 = vrot.slane %v976, %v3597
    %v3599 = vsel %vm2863, %v3598, %v3594
    %v3600 = vlaneseq
    %v3601 = vshrl.u32 %v3600, 7
    %v3602 = vsub.s32 %v2865, %v3601
    %v3603 = vrot.slane %v979, %v3602
    %v3604 = vsel %vm2870, %v3603, %v3599
    %v3605 = vlaneseq
    %v3606 = vshrl.u32 %v3605, 7
    %v3607 = vsub.s32 %v2872, %v3606
    %v3608 = vrot.slane %v982, %v3607
    %v3609 = vsel %vm2877, %v3608, %v3604
    %v3610 = vlaneseq
    %v3611 = vshrl.u32 %v3610, 7
    %v3612 = vsub.s32 %v2879, %v3611
    %v3613 = vrot.slane %v985, %v3612
    %v3614 = vsel %vm2884, %v3613, %v3609
    %v3615 = vlaneseq
    %v3616 = vshrl.u32 %v3615, 7
    %v3617 = vsub.s32 %v2886, %v3616
    %v3618 = vrot.slane %v988, %v3617
    %v3619 = vsel %vm2891, %v3618, %v3614
    %v3620 = vlaneseq
    %v3621 = vshrl.u32 %v3620, 7
    %v3622 = vsub.s32 %v2893, %v3621
    %v3623 = vrot.slane %v991, %v3622
    %v3624 = vsel %vm2898, %v3623, %v3619
    %v3625 = vlaneseq
    %v3626 = vshrl.u32 %v3625, 7
    %v3627 = vsub.s32 %v2900, %v3626
    %v3628 = vrot.slane %v994, %v3627
    %v3629 = vsel %vm2905, %v3628, %v3624
    %v3630 = vlaneseq
    %v3631 = vshrl.u32 %v3630, 7
    %v3632 = vsub.s32 %v2907, %v3631
    %v3633 = vrot.slane %v997, %v3632
    %v3634 = vsel %vm2912, %v3633, %v3629
    %v3635 = vlaneseq
    %v3636 = vshrl.u32 %v3635, 7
    %v3637 = vsub.s32 %v2914, %v3636
    %v3638 = vrot.slane %v1000, %v3637
    %v3639 = vsel %vm2919, %v3638, %v3634
    %v3640 = vlaneseq
    %v3641 = vshrl.u32 %v3640, 7
    %v3642 = vsub.s32 %v2921, %v3641
    %v3643 = vrot.slane %v1003, %v3642
    %v3644 = vsel %vm2926, %v3643, %v3639
    %v3645 = vlaneseq
    %v3646 = vshrl.u32 %v3645, 7
    %v3647 = vsub.s32 %v2928, %v3646
    %v3648 = vrot.slane %v1006, %v3647
    %v3649 = vsel %vm2933, %v3648, %v3644
    %v3650 = vlaneseq
    %v3651 = vshrl.u32 %v3650, 7
    %v3652 = vsub.s32 %v2935, %v3651
    %v3653 = vrot.slane %v1009, %v3652
    %v3654 = vsel %vm2940, %v3653, %v3649
    %v3655 = vlaneseq
    %v3656 = vshrl.u32 %v3655, 7
    %v3657 = vsub.s32 %v2942, %v3656
    %v3658 = vrot.slane %v1012, %v3657
    %v3659 = vsel %vm2947, %v3658, %v3654
    %v3660 = vlaneseq
    %v3661 = vshrl.u32 %v3660, 7
    %v3662 = vsub.s32 %v2839, %v3661
    %v3663 = vrot.slane %v1015, %v3662
    %v3664 = vlaneseq
    %v3665 = vshrl.u32 %v3664, 7
    %v3666 = vsub.s32 %v2844, %v3665
    %v3667 = vrot.slane %v1018, %v3666
    %v3668 = vsel %vm2849, %v3667, %v3663
    %v3669 = vlaneseq
    %v3670 = vshrl.u32 %v3669, 7
    %v3671 = vsub.s32 %v2851, %v3670
    %v3672 = vrot.slane %v1021, %v3671
    %v3673 = vsel %vm2856, %v3672, %v3668
    %v3674 = vlaneseq
    %v3675 = vshrl.u32 %v3674, 7
    %v3676 = vsub.s32 %v2858, %v3675
    %v3677 = vrot.slane %v1024, %v3676
    %v3678 = vsel %vm2863, %v3677, %v3673
    %v3679 = vlaneseq
    %v3680 = vshrl.u32 %v3679, 7
    %v3681 = vsub.s32 %v2865, %v3680
    %v3682 = vrot.slane %v1027, %v3681
    %v3683 = vsel %vm2870, %v3682, %v3678
    %v3684 = vlaneseq
    %v3685 = vshrl.u32 %v3684, 7
    %v3686 = vsub.s32 %v2872, %v3685
    %v3687 = vrot.slane %v1030, %v3686
    %v3688 = vsel %vm2877, %v3687, %v3683
    %v3689 = vlaneseq
    %v3690 = vshrl.u32 %v3689, 7
    %v3691 = vsub.s32 %v2879, %v3690
    %v3692 = vrot.slane %v1033, %v3691
    %v3693 = vsel %vm2884, %v3692, %v3688
    %v3694 = vlaneseq
    %v3695 = vshrl.u32 %v3694, 7
    %v3696 = vsub.s32 %v2886, %v3695
    %v3697 = vrot.slane %v1036, %v3696
    %v3698 = vsel %vm2891, %v3697, %v3693
    %v3699 = vlaneseq
    %v3700 = vshrl.u32 %v3699, 7
    %v3701 = vsub.s32 %v2893, %v3700
    %v3702 = vrot.slane %v1039, %v3701
    %v3703 = vsel %vm2898, %v3702, %v3698
    %v3704 = vlaneseq
    %v3705 = vshrl.u32 %v3704, 7
    %v3706 = vsub.s32 %v2900, %v3705
    %v3707 = vrot.slane %v1042, %v3706
    %v3708 = vsel %vm2905, %v3707, %v3703
    %v3709 = vlaneseq
    %v3710 = vshrl.u32 %v3709, 7
    %v3711 = vsub.s32 %v2907, %v3710
    %v3712 = vrot.slane %v1045, %v3711
    %v3713 = vsel %vm2912, %v3712, %v3708
    %v3714 = vlaneseq
    %v3715 = vshrl.u32 %v3714, 7
    %v3716 = vsub.s32 %v2914, %v3715
    %v3717 = vrot.slane %v1048, %v3716
    %v3718 = vsel %vm2919, %v3717, %v3713
    %v3719 = vlaneseq
    %v3720 = vshrl.u32 %v3719, 7
    %v3721 = vsub.s32 %v2921, %v3720
    %v3722 = vrot.slane %v1051, %v3721
    %v3723 = vsel %vm2926, %v3722, %v3718
    %v3724 = vlaneseq
    %v3725 = vshrl.u32 %v3724, 7
    %v3726 = vsub.s32 %v2928, %v3725
    %v3727 = vrot.slane %v1054, %v3726
    %v3728 = vsel %vm2933, %v3727, %v3723
    %v3729 = vlaneseq
    %v3730 = vshrl.u32 %v3729, 7
    %v3731 = vsub.s32 %v2935, %v3730
    %v3732 = vrot.slane %v1057, %v3731
    %v3733 = vsel %vm2940, %v3732, %v3728
    %v3734 = vlaneseq
    %v3735 = vshrl.u32 %v3734, 7
    %v3736 = vsub.s32 %v2942, %v3735
    %v3737 = vrot.slane %v1060, %v3736
    %v3738 = vsel %vm2947, %v3737, %v3733
    %v3739 = vlaneseq
    %v3740 = vshrl.u32 %v3739, 7
    %v3741 = vsub.s32 %v2839, %v3740
    %v3742 = vrot.slane %v1063, %v3741
    %v3743 = vlaneseq
    %v3744 = vshrl.u32 %v3743, 7
    %v3745 = vsub.s32 %v2844, %v3744
    %v3746 = vrot.slane %v1066, %v3745
    %v3747 = vsel %vm2849, %v3746, %v3742
    %v3748 = vlaneseq
    %v3749 = vshrl.u32 %v3748, 7
    %v3750 = vsub.s32 %v2851, %v3749
    %v3751 = vrot.slane %v1069, %v3750
    %v3752 = vsel %vm2856, %v3751, %v3747
    %v3753 = vlaneseq
    %v3754 = vshrl.u32 %v3753, 7
    %v3755 = vsub.s32 %v2858, %v3754
    %v3756 = vrot.slane %v1072, %v3755
    %v3757 = vsel %vm2863, %v3756, %v3752
    %v3758 = vlaneseq
    %v3759 = vshrl.u32 %v3758, 7
    %v3760 = vsub.s32 %v2865, %v3759
    %v3761 = vrot.slane %v1075, %v3760
    %v3762 = vsel %vm2870, %v3761, %v3757
    %v3763 = vlaneseq
    %v3764 = vshrl.u32 %v3763, 7
    %v3765 = vsub.s32 %v2872, %v3764
    %v3766 = vrot.slane %v1078, %v3765
    %v3767 = vsel %vm2877, %v3766, %v3762
    %v3768 = vlaneseq
    %v3769 = vshrl.u32 %v3768, 7
    %v3770 = vsub.s32 %v2879, %v3769
    %v3771 = vrot.slane %v1081, %v3770
    %v3772 = vsel %vm2884, %v3771, %v3767
    %v3773 = vlaneseq
    %v3774 = vshrl.u32 %v3773, 7
    %v3775 = vsub.s32 %v2886, %v3774
    %v3776 = vrot.slane %v1084, %v3775
    %v3777 = vsel %vm2891, %v3776, %v3772
    %v3778 = vlaneseq
    %v3779 = vshrl.u32 %v3778, 7
    %v3780 = vsub.s32 %v2893, %v3779
    %v3781 = vrot.slane %v1087, %v3780
    %v3782 = vsel %vm2898, %v3781, %v3777
    %v3783 = vlaneseq
    %v3784 = vshrl.u32 %v3783, 7
    %v3785 = vsub.s32 %v2900, %v3784
    %v3786 = vrot.slane %v1090, %v3785
    %v3787 = vsel %vm2905, %v3786, %v3782
    %v3788 = vlaneseq
    %v3789 = vshrl.u32 %v3788, 7
    %v3790 = vsub.s32 %v2907, %v3789
    %v3791 = vrot.slane %v1093, %v3790
    %v3792 = vsel %vm2912, %v3791, %v3787
    %v3793 = vlaneseq
    %v3794 = vshrl.u32 %v3793, 7
    %v3795 = vsub.s32 %v2914, %v3794
    %v3796 = vrot.slane %v1096, %v3795
    %v3797 = vsel %vm2919, %v3796, %v3792
    %v3798 = vlaneseq
    %v3799 = vshrl.u32 %v3798, 7
    %v3800 = vsub.s32 %v2921, %v3799
    %v3801 = vrot.slane %v1099, %v3800
    %v3802 = vsel %vm2926, %v3801, %v3797
    %v3803 = vlaneseq
    %v3804 = vshrl.u32 %v3803, 7
    %v3805 = vsub.s32 %v2928, %v3804
    %v3806 = vrot.slane %v1102, %v3805
    %v3807 = vsel %vm2933, %v3806, %v3802
    %v3808 = vlaneseq
    %v3809 = vshrl.u32 %v3808, 7
    %v3810 = vsub.s32 %v2935, %v3809
    %v3811 = vrot.slane %v1105, %v3810
    %v3812 = vsel %vm2940, %v3811, %v3807
    %v3813 = vlaneseq
    %v3814 = vshrl.u32 %v3813, 7
    %v3815 = vsub.s32 %v2942, %v3814
    %v3816 = vrot.slane %v1108, %v3815
    %v3817 = vsel %vm2947, %v3816, %v3812
    %v3818 = vlaneseq
    %v3819 = vshrl.u32 %v3818, 7
    %v3820 = vsub.s32 %v2839, %v3819
    %v3821 = vrot.slane %v1111, %v3820
    %v3822 = vlaneseq
    %v3823 = vshrl.u32 %v3822, 7
    %v3824 = vsub.s32 %v2844, %v3823
    %v3825 = vrot.slane %v1114, %v3824
    %v3826 = vsel %vm2849, %v3825, %v3821
    %v3827 = vlaneseq
    %v3828 = vshrl.u32 %v3827, 7
    %v3829 = vsub.s32 %v2851, %v3828
    %v3830 = vrot.slane %v1117, %v3829
    %v3831 = vsel %vm2856, %v3830, %v3826
    %v3832 = vlaneseq
    %v3833 = vshrl.u32 %v3832, 7
    %v3834 = vsub.s32 %v2858, %v3833
    %v3835 = vrot.slane %v1120, %v3834
    %v3836 = vsel %vm2863, %v3835, %v3831
    %v3837 = vlaneseq
    %v3838 = vshrl.u32 %v3837, 7
    %v3839 = vsub.s32 %v2865, %v3838
    %v3840 = vrot.slane %v1123, %v3839
    %v3841 = vsel %vm2870, %v3840, %v3836
    %v3842 = vlaneseq
    %v3843 = vshrl.u32 %v3842, 7
    %v3844 = vsub.s32 %v2872, %v3843
    %v3845 = vrot.slane %v1126, %v3844
    %v3846 = vsel %vm2877, %v3845, %v3841
    %v3847 = vlaneseq
    %v3848 = vshrl.u32 %v3847, 7
    %v3849 = vsub.s32 %v2879, %v3848
    %v3850 = vrot.slane %v1129, %v3849
    %v3851 = vsel %vm2884, %v3850, %v3846
    %v3852 = vlaneseq
    %v3853 = vshrl.u32 %v3852, 7
    %v3854 = vsub.s32 %v2886, %v3853
    %v3855 = vrot.slane %v1132, %v3854
    %v3856 = vsel %vm2891, %v3855, %v3851
    %v3857 = vlaneseq
    %v3858 = vshrl.u32 %v3857, 7
    %v3859 = vsub.s32 %v2893, %v3858
    %v3860 = vrot.slane %v1135, %v3859
    %v3861 = vsel %vm2898, %v3860, %v3856
    %v3862 = vlaneseq
    %v3863 = vshrl.u32 %v3862, 7
    %v3864 = vsub.s32 %v2900, %v3863
    %v3865 = vrot.slane %v1138, %v3864
    %v3866 = vsel %vm2905, %v3865, %v3861
    %v3867 = vlaneseq
    %v3868 = vshrl.u32 %v3867, 7
    %v3869 = vsub.s32 %v2907, %v3868
    %v3870 = vrot.slane %v1141, %v3869
    %v3871 = vsel %vm2912, %v3870, %v3866
    %v3872 = vlaneseq
    %v3873 = vshrl.u32 %v3872, 7
    %v3874 = vsub.s32 %v2914, %v3873
    %v3875 = vrot.slane %v1144, %v3874
    %v3876 = vsel %vm2919, %v3875, %v3871
    %v3877 = vlaneseq
    %v3878 = vshrl.u32 %v3877, 7
    %v3879 = vsub.s32 %v2921, %v3878
    %v3880 = vrot.slane %v1147, %v3879
    %v3881 = vsel %vm2926, %v3880, %v3876
    %v3882 = vlaneseq
    %v3883 = vshrl.u32 %v3882, 7
    %v3884 = vsub.s32 %v2928, %v3883
    %v3885 = vrot.slane %v1150, %v3884
    %v3886 = vsel %vm2933, %v3885, %v3881
    %v3887 = vlaneseq
    %v3888 = vshrl.u32 %v3887, 7
    %v3889 = vsub.s32 %v2935, %v3888
    %v3890 = vrot.slane %v1153, %v3889
    %v3891 = vsel %vm2940, %v3890, %v3886
    %v3892 = vlaneseq
    %v3893 = vshrl.u32 %v3892, 7
    %v3894 = vsub.s32 %v2942, %v3893
    %v3895 = vrot.slane %v1156, %v3894
    %v3896 = vsel %vm2947, %v3895, %v3891
    %v3897 = vlaneseq
    %v3898 = vshrl.u32 %v3897, 7
    %v3899 = vsub.s32 %v2839, %v3898
    %v3900 = vrot.slane %v1159, %v3899
    %v3901 = vlaneseq
    %v3902 = vshrl.u32 %v3901, 7
    %v3903 = vsub.s32 %v2844, %v3902
    %v3904 = vrot.slane %v1162, %v3903
    %v3905 = vsel %vm2849, %v3904, %v3900
    %v3906 = vlaneseq
    %v3907 = vshrl.u32 %v3906, 7
    %v3908 = vsub.s32 %v2851, %v3907
    %v3909 = vrot.slane %v1165, %v3908
    %v3910 = vsel %vm2856, %v3909, %v3905
    %v3911 = vlaneseq
    %v3912 = vshrl.u32 %v3911, 7
    %v3913 = vsub.s32 %v2858, %v3912
    %v3914 = vrot.slane %v1168, %v3913
    %v3915 = vsel %vm2863, %v3914, %v3910
    %v3916 = vlaneseq
    %v3917 = vshrl.u32 %v3916, 7
    %v3918 = vsub.s32 %v2865, %v3917
    %v3919 = vrot.slane %v1171, %v3918
    %v3920 = vsel %vm2870, %v3919, %v3915
    %v3921 = vlaneseq
    %v3922 = vshrl.u32 %v3921, 7
    %v3923 = vsub.s32 %v2872, %v3922
    %v3924 = vrot.slane %v1174, %v3923
    %v3925 = vsel %vm2877, %v3924, %v3920
    %v3926 = vlaneseq
    %v3927 = vshrl.u32 %v3926, 7
    %v3928 = vsub.s32 %v2879, %v3927
    %v3929 = vrot.slane %v1177, %v3928
    %v3930 = vsel %vm2884, %v3929, %v3925
    %v3931 = vlaneseq
    %v3932 = vshrl.u32 %v3931, 7
    %v3933 = vsub.s32 %v2886, %v3932
    %v3934 = vrot.slane %v1180, %v3933
    %v3935 = vsel %vm2891, %v3934, %v3930
    %v3936 = vlaneseq
    %v3937 = vshrl.u32 %v3936, 7
    %v3938 = vsub.s32 %v2893, %v3937
    %v3939 = vrot.slane %v1183, %v3938
    %v3940 = vsel %vm2898, %v3939, %v3935
    %v3941 = vlaneseq
    %v3942 = vshrl.u32 %v3941, 7
    %v3943 = vsub.s32 %v2900, %v3942
    %v3944 = vrot.slane %v1186, %v3943
    %v3945 = vsel %vm2905, %v3944, %v3940
    %v3946 = vlaneseq
    %v3947 = vshrl.u32 %v3946, 7
    %v3948 = vsub.s32 %v2907, %v3947
    %v3949 = vrot.slane %v1189, %v3948
    %v3950 = vsel %vm2912, %v3949, %v3945
    %v3951 = vlaneseq
    %v3952 = vshrl.u32 %v3951, 7
    %v3953 = vsub.s32 %v2914, %v3952
    %v3954 = vrot.slane %v1192, %v3953
    %v3955 = vsel %vm2919, %v3954, %v3950
    %v3956 = vlaneseq
    %v3957 = vshrl.u32 %v3956, 7
    %v3958 = vsub.s32 %v2921, %v3957
    %v3959 = vrot.slane %v1195, %v3958
    %v3960 = vsel %vm2926, %v3959, %v3955
    %v3961 = vlaneseq
    %v3962 = vshrl.u32 %v3961, 7
    %v3963 = vsub.s32 %v2928, %v3962
    %v3964 = vrot.slane %v1198, %v3963
    %v3965 = vsel %vm2933, %v3964, %v3960
    %v3966 = vlaneseq
    %v3967 = vshrl.u32 %v3966, 7
    %v3968 = vsub.s32 %v2935, %v3967
    %v3969 = vrot.slane %v1201, %v3968
    %v3970 = vsel %vm2940, %v3969, %v3965
    %v3971 = vlaneseq
    %v3972 = vshrl.u32 %v3971, 7
    %v3973 = vsub.s32 %v2942, %v3972
    %v3974 = vrot.slane %v1204, %v3973
    %v3975 = vsel %vm2947, %v3974, %v3970
    %v3976 = vlaneseq
    %v3977 = vshrl.u32 %v3976, 7
    %v3978 = vsub.s32 %v2839, %v3977
    %v3979 = vrot.slane %v1207, %v3978
    %v3980 = vlaneseq
    %v3981 = vshrl.u32 %v3980, 7
    %v3982 = vsub.s32 %v2844, %v3981
    %v3983 = vrot.slane %v1210, %v3982
    %v3984 = vsel %vm2849, %v3983, %v3979
    %v3985 = vlaneseq
    %v3986 = vshrl.u32 %v3985, 7
    %v3987 = vsub.s32 %v2851, %v3986
    %v3988 = vrot.slane %v1213, %v3987
    %v3989 = vsel %vm2856, %v3988, %v3984
    %v3990 = vlaneseq
    %v3991 = vshrl.u32 %v3990, 7
    %v3992 = vsub.s32 %v2858, %v3991
    %v3993 = vrot.slane %v1216, %v3992
    %v3994 = vsel %vm2863, %v3993, %v3989
    %v3995 = vlaneseq
    %v3996 = vshrl.u32 %v3995, 7
    %v3997 = vsub.s32 %v2865, %v3996
    %v3998 = vrot.slane %v1219, %v3997
    %v3999 = vsel %vm2870, %v3998, %v3994
    %v4000 = vlaneseq
    %v4001 = vshrl.u32 %v4000, 7
    %v4002 = vsub.s32 %v2872, %v4001
    %v4003 = vrot.slane %v1222, %v4002
    %v4004 = vsel %vm2877, %v4003, %v3999
    %v4005 = vlaneseq
    %v4006 = vshrl.u32 %v4005, 7
    %v4007 = vsub.s32 %v2879, %v4006
    %v4008 = vrot.slane %v1225, %v4007
    %v4009 = vsel %vm2884, %v4008, %v4004
    %v4010 = vlaneseq
    %v4011 = vshrl.u32 %v4010, 7
    %v4012 = vsub.s32 %v2886, %v4011
    %v4013 = vrot.slane %v1228, %v4012
    %v4014 = vsel %vm2891, %v4013, %v4009
    %v4015 = vlaneseq
    %v4016 = vshrl.u32 %v4015, 7
    %v4017 = vsub.s32 %v2893, %v4016
    %v4018 = vrot.slane %v1231, %v4017
    %v4019 = vsel %vm2898, %v4018, %v4014
    %v4020 = vlaneseq
    %v4021 = vshrl.u32 %v4020, 7
    %v4022 = vsub.s32 %v2900, %v4021
    %v4023 = vrot.slane %v1234, %v4022
    %v4024 = vsel %vm2905, %v4023, %v4019
    %v4025 = vlaneseq
    %v4026 = vshrl.u32 %v4025, 7
    %v4027 = vsub.s32 %v2907, %v4026
    %v4028 = vrot.slane %v1237, %v4027
    %v4029 = vsel %vm2912, %v4028, %v4024
    %v4030 = vlaneseq
    %v4031 = vshrl.u32 %v4030, 7
    %v4032 = vsub.s32 %v2914, %v4031
    %v4033 = vrot.slane %v1240, %v4032
    %v4034 = vsel %vm2919, %v4033, %v4029
    %v4035 = vlaneseq
    %v4036 = vshrl.u32 %v4035, 7
    %v4037 = vsub.s32 %v2921, %v4036
    %v4038 = vrot.slane %v1243, %v4037
    %v4039 = vsel %vm2926, %v4038, %v4034
    %v4040 = vlaneseq
    %v4041 = vshrl.u32 %v4040, 7
    %v4042 = vsub.s32 %v2928, %v4041
    %v4043 = vrot.slane %v1246, %v4042
    %v4044 = vsel %vm2933, %v4043, %v4039
    %v4045 = vlaneseq
    %v4046 = vshrl.u32 %v4045, 7
    %v4047 = vsub.s32 %v2935, %v4046
    %v4048 = vrot.slane %v1249, %v4047
    %v4049 = vsel %vm2940, %v4048, %v4044
    %v4050 = vlaneseq
    %v4051 = vshrl.u32 %v4050, 7
    %v4052 = vsub.s32 %v2942, %v4051
    %v4053 = vrot.slane %v1252, %v4052
    %v4054 = vsel %vm2947, %v4053, %v4049
    %v4055 = vlaneseq
    %v4056 = vshrl.u32 %v4055, 7
    %v4057 = vsub.s32 %v2839, %v4056
    %v4058 = vrot.slane %v1255, %v4057
    %v4059 = vlaneseq
    %v4060 = vshrl.u32 %v4059, 7
    %v4061 = vsub.s32 %v2844, %v4060
    %v4062 = vrot.slane %v1258, %v4061
    %v4063 = vsel %vm2849, %v4062, %v4058
    %v4064 = vlaneseq
    %v4065 = vshrl.u32 %v4064, 7
    %v4066 = vsub.s32 %v2851, %v4065
    %v4067 = vrot.slane %v1261, %v4066
    %v4068 = vsel %vm2856, %v4067, %v4063
    %v4069 = vlaneseq
    %v4070 = vshrl.u32 %v4069, 7
    %v4071 = vsub.s32 %v2858, %v4070
    %v4072 = vrot.slane %v1264, %v4071
    %v4073 = vsel %vm2863, %v4072, %v4068
    %v4074 = vlaneseq
    %v4075 = vshrl.u32 %v4074, 7
    %v4076 = vsub.s32 %v2865, %v4075
    %v4077 = vrot.slane %v1267, %v4076
    %v4078 = vsel %vm2870, %v4077, %v4073
    %v4079 = vlaneseq
    %v4080 = vshrl.u32 %v4079, 7
    %v4081 = vsub.s32 %v2872, %v4080
    %v4082 = vrot.slane %v1270, %v4081
    %v4083 = vsel %vm2877, %v4082, %v4078
    %v4084 = vlaneseq
    %v4085 = vshrl.u32 %v4084, 7
    %v4086 = vsub.s32 %v2879, %v4085
    %v4087 = vrot.slane %v1273, %v4086
    %v4088 = vsel %vm2884, %v4087, %v4083
    %v4089 = vlaneseq
    %v4090 = vshrl.u32 %v4089, 7
    %v4091 = vsub.s32 %v2886, %v4090
    %v4092 = vrot.slane %v1276, %v4091
    %v4093 = vsel %vm2891, %v4092, %v4088
    %v4094 = vlaneseq
    %v4095 = vshrl.u32 %v4094, 7
    %v4096 = vsub.s32 %v2893, %v4095
    %v4097 = vrot.slane %v1279, %v4096
    %v4098 = vsel %vm2898, %v4097, %v4093
    %v4099 = vlaneseq
    %v4100 = vshrl.u32 %v4099, 7
    %v4101 = vsub.s32 %v2900, %v4100
    %v4102 = vrot.slane %v1282, %v4101
    %v4103 = vsel %vm2905, %v4102, %v4098
    %v4104 = vlaneseq
    %v4105 = vshrl.u32 %v4104, 7
    %v4106 = vsub.s32 %v2907, %v4105
    %v4107 = vrot.slane %v1285, %v4106
    %v4108 = vsel %vm2912, %v4107, %v4103
    %v4109 = vlaneseq
    %v4110 = vshrl.u32 %v4109, 7
    %v4111 = vsub.s32 %v2914, %v4110
    %v4112 = vrot.slane %v1288, %v4111
    %v4113 = vsel %vm2919, %v4112, %v4108
    %v4114 = vlaneseq
    %v4115 = vshrl.u32 %v4114, 7
    %v4116 = vsub.s32 %v2921, %v4115
    %v4117 = vrot.slane %v1291, %v4116
    %v4118 = vsel %vm2926, %v4117, %v4113
    %v4119 = vlaneseq
    %v4120 = vshrl.u32 %v4119, 7
    %v4121 = vsub.s32 %v2928, %v4120
    %v4122 = vrot.slane %v1294, %v4121
    %v4123 = vsel %vm2933, %v4122, %v4118
    %v4124 = vlaneseq
    %v4125 = vshrl.u32 %v4124, 7
    %v4126 = vsub.s32 %v2935, %v4125
    %v4127 = vrot.slane %v1297, %v4126
    %v4128 = vsel %vm2940, %v4127, %v4123
    %v4129 = vlaneseq
    %v4130 = vshrl.u32 %v4129, 7
    %v4131 = vsub.s32 %v2942, %v4130
    %v4132 = vrot.slane %v1300, %v4131
    %v4133 = vsel %vm2947, %v4132, %v4128
    %v4134 = vlaneseq
    %v4135 = vshrl.u32 %v4134, 7
    %v4136 = vsub.s32 %v2839, %v4135
    %v4137 = vrot.slane %v1303, %v4136
    %v4138 = vlaneseq
    %v4139 = vshrl.u32 %v4138, 7
    %v4140 = vsub.s32 %v2844, %v4139
    %v4141 = vrot.slane %v1306, %v4140
    %v4142 = vsel %vm2849, %v4141, %v4137
    %v4143 = vlaneseq
    %v4144 = vshrl.u32 %v4143, 7
    %v4145 = vsub.s32 %v2851, %v4144
    %v4146 = vrot.slane %v1309, %v4145
    %v4147 = vsel %vm2856, %v4146, %v4142
    %v4148 = vlaneseq
    %v4149 = vshrl.u32 %v4148, 7
    %v4150 = vsub.s32 %v2858, %v4149
    %v4151 = vrot.slane %v1312, %v4150
    %v4152 = vsel %vm2863, %v4151, %v4147
    %v4153 = vlaneseq
    %v4154 = vshrl.u32 %v4153, 7
    %v4155 = vsub.s32 %v2865, %v4154
    %v4156 = vrot.slane %v1315, %v4155
    %v4157 = vsel %vm2870, %v4156, %v4152
    %v4158 = vlaneseq
    %v4159 = vshrl.u32 %v4158, 7
    %v4160 = vsub.s32 %v2872, %v4159
    %v4161 = vrot.slane %v1318, %v4160
    %v4162 = vsel %vm2877, %v4161, %v4157
    %v4163 = vlaneseq
    %v4164 = vshrl.u32 %v4163, 7
    %v4165 = vsub.s32 %v2879, %v4164
    %v4166 = vrot.slane %v1321, %v4165
    %v4167 = vsel %vm2884, %v4166, %v4162
    %v4168 = vlaneseq
    %v4169 = vshrl.u32 %v4168, 7
    %v4170 = vsub.s32 %v2886, %v4169
    %v4171 = vrot.slane %v1324, %v4170
    %v4172 = vsel %vm2891, %v4171, %v4167
    %v4173 = vlaneseq
    %v4174 = vshrl.u32 %v4173, 7
    %v4175 = vsub.s32 %v2893, %v4174
    %v4176 = vrot.slane %v1327, %v4175
    %v4177 = vsel %vm2898, %v4176, %v4172
    %v4178 = vlaneseq
    %v4179 = vshrl.u32 %v4178, 7
    %v4180 = vsub.s32 %v2900, %v4179
    %v4181 = vrot.slane %v1330, %v4180
    %v4182 = vsel %vm2905, %v4181, %v4177
    %v4183 = vlaneseq
    %v4184 = vshrl.u32 %v4183, 7
    %v4185 = vsub.s32 %v2907, %v4184
    %v4186 = vrot.slane %v1333, %v4185
    %v4187 = vsel %vm2912, %v4186, %v4182
    %v4188 = vlaneseq
    %v4189 = vshrl.u32 %v4188, 7
    %v4190 = vsub.s32 %v2914, %v4189
    %v4191 = vrot.slane %v1336, %v4190
    %v4192 = vsel %vm2919, %v4191, %v4187
    %v4193 = vlaneseq
    %v4194 = vshrl.u32 %v4193, 7
    %v4195 = vsub.s32 %v2921, %v4194
    %v4196 = vrot.slane %v1339, %v4195
    %v4197 = vsel %vm2926, %v4196, %v4192
    %v4198 = vlaneseq
    %v4199 = vshrl.u32 %v4198, 7
    %v4200 = vsub.s32 %v2928, %v4199
    %v4201 = vrot.slane %v1342, %v4200
    %v4202 = vsel %vm2933, %v4201, %v4197
    %v4203 = vlaneseq
    %v4204 = vshrl.u32 %v4203, 7
    %v4205 = vsub.s32 %v2935, %v4204
    %v4206 = vrot.slane %v1345, %v4205
    %v4207 = vsel %vm2940, %v4206, %v4202
    %v4208 = vlaneseq
    %v4209 = vshrl.u32 %v4208, 7
    %v4210 = vsub.s32 %v2942, %v4209
    %v4211 = vrot.slane %v1348, %v4210
    %v4212 = vsel %vm2947, %v4211, %v4207
    %v4213 = vlaneseq
    %v4214 = vshrl.u32 %v4213, 7
    %v4215 = vsub.s32 %v2839, %v4214
    %v4216 = vrot.slane %v1351, %v4215
    %v4217 = vlaneseq
    %v4218 = vshrl.u32 %v4217, 7
    %v4219 = vsub.s32 %v2844, %v4218
    %v4220 = vrot.slane %v1354, %v4219
    %v4221 = vsel %vm2849, %v4220, %v4216
    %v4222 = vlaneseq
    %v4223 = vshrl.u32 %v4222, 7
    %v4224 = vsub.s32 %v2851, %v4223
    %v4225 = vrot.slane %v1357, %v4224
    %v4226 = vsel %vm2856, %v4225, %v4221
    %v4227 = vlaneseq
    %v4228 = vshrl.u32 %v4227, 7
    %v4229 = vsub.s32 %v2858, %v4228
    %v4230 = vrot.slane %v1360, %v4229
    %v4231 = vsel %vm2863, %v4230, %v4226
    %v4232 = vlaneseq
    %v4233 = vshrl.u32 %v4232, 7
    %v4234 = vsub.s32 %v2865, %v4233
    %v4235 = vrot.slane %v1363, %v4234
    %v4236 = vsel %vm2870, %v4235, %v4231
    %v4237 = vlaneseq
    %v4238 = vshrl.u32 %v4237, 7
    %v4239 = vsub.s32 %v2872, %v4238
    %v4240 = vrot.slane %v1366, %v4239
    %v4241 = vsel %vm2877, %v4240, %v4236
    %v4242 = vlaneseq
    %v4243 = vshrl.u32 %v4242, 7
    %v4244 = vsub.s32 %v2879, %v4243
    %v4245 = vrot.slane %v1369, %v4244
    %v4246 = vsel %vm2884, %v4245, %v4241
    %v4247 = vlaneseq
    %v4248 = vshrl.u32 %v4247, 7
    %v4249 = vsub.s32 %v2886, %v4248
    %v4250 = vrot.slane %v1372, %v4249
    %v4251 = vsel %vm2891, %v4250, %v4246
    %v4252 = vlaneseq
    %v4253 = vshrl.u32 %v4252, 7
    %v4254 = vsub.s32 %v2893, %v4253
    %v4255 = vrot.slane %v1375, %v4254
    %v4256 = vsel %vm2898, %v4255, %v4251
    %v4257 = vlaneseq
    %v4258 = vshrl.u32 %v4257, 7
    %v4259 = vsub.s32 %v2900, %v4258
    %v4260 = vrot.slane %v1378, %v4259
    %v4261 = vsel %vm2905, %v4260, %v4256
    %v4262 = vlaneseq
    %v4263 = vshrl.u32 %v4262, 7
    %v4264 = vsub.s32 %v2907, %v4263
    %v4265 = vrot.slane %v1381, %v4264
    %v4266 = vsel %vm2912, %v4265, %v4261
    %v4267 = vlaneseq
    %v4268 = vshrl.u32 %v4267, 7
    %v4269 = vsub.s32 %v2914, %v4268
    %v4270 = vrot.slane %v1384, %v4269
    %v4271 = vsel %vm2919, %v4270, %v4266
    %v4272 = vlaneseq
    %v4273 = vshrl.u32 %v4272, 7
    %v4274 = vsub.s32 %v2921, %v4273
    %v4275 = vrot.slane %v1387, %v4274
    %v4276 = vsel %vm2926, %v4275, %v4271
    %v4277 = vlaneseq
    %v4278 = vshrl.u32 %v4277, 7
    %v4279 = vsub.s32 %v2928, %v4278
    %v4280 = vrot.slane %v1390, %v4279
    %v4281 = vsel %vm2933, %v4280, %v4276
    %v4282 = vlaneseq
    %v4283 = vshrl.u32 %v4282, 7
    %v4284 = vsub.s32 %v2935, %v4283
    %v4285 = vrot.slane %v1393, %v4284
    %v4286 = vsel %vm2940, %v4285, %v4281
    %v4287 = vlaneseq
    %v4288 = vshrl.u32 %v4287, 7
    %v4289 = vsub.s32 %v2942, %v4288
    %v4290 = vrot.slane %v1396, %v4289
    %v4291 = vsel %vm2947, %v4290, %v4286
    %v4292 = vlaneseq
    %v4293 = vshrl.u32 %v4292, 7
    %v4294 = vsub.s32 %v2839, %v4293
    %v4295 = vrot.slane %v1399, %v4294
    %v4296 = vlaneseq
    %v4297 = vshrl.u32 %v4296, 7
    %v4298 = vsub.s32 %v2844, %v4297
    %v4299 = vrot.slane %v1402, %v4298
    %v4300 = vsel %vm2849, %v4299, %v4295
    %v4301 = vlaneseq
    %v4302 = vshrl.u32 %v4301, 7
    %v4303 = vsub.s32 %v2851, %v4302
    %v4304 = vrot.slane %v1405, %v4303
    %v4305 = vsel %vm2856, %v4304, %v4300
    %v4306 = vlaneseq
    %v4307 = vshrl.u32 %v4306, 7
    %v4308 = vsub.s32 %v2858, %v4307
    %v4309 = vrot.slane %v1408, %v4308
    %v4310 = vsel %vm2863, %v4309, %v4305
    %v4311 = vlaneseq
    %v4312 = vshrl.u32 %v4311, 7
    %v4313 = vsub.s32 %v2865, %v4312
    %v4314 = vrot.slane %v1411, %v4313
    %v4315 = vsel %vm2870, %v4314, %v4310
    %v4316 = vlaneseq
    %v4317 = vshrl.u32 %v4316, 7
    %v4318 = vsub.s32 %v2872, %v4317
    %v4319 = vrot.slane %v1414, %v4318
    %v4320 = vsel %vm2877, %v4319, %v4315
    %v4321 = vlaneseq
    %v4322 = vshrl.u32 %v4321, 7
    %v4323 = vsub.s32 %v2879, %v4322
    %v4324 = vrot.slane %v1417, %v4323
    %v4325 = vsel %vm2884, %v4324, %v4320
    %v4326 = vlaneseq
    %v4327 = vshrl.u32 %v4326, 7
    %v4328 = vsub.s32 %v2886, %v4327
    %v4329 = vrot.slane %v1420, %v4328
    %v4330 = vsel %vm2891, %v4329, %v4325
    %v4331 = vlaneseq
    %v4332 = vshrl.u32 %v4331, 7
    %v4333 = vsub.s32 %v2893, %v4332
    %v4334 = vrot.slane %v1423, %v4333
    %v4335 = vsel %vm2898, %v4334, %v4330
    %v4336 = vlaneseq
    %v4337 = vshrl.u32 %v4336, 7
    %v4338 = vsub.s32 %v2900, %v4337
    %v4339 = vrot.slane %v1426, %v4338
    %v4340 = vsel %vm2905, %v4339, %v4335
    %v4341 = vlaneseq
    %v4342 = vshrl.u32 %v4341, 7
    %v4343 = vsub.s32 %v2907, %v4342
    %v4344 = vrot.slane %v1429, %v4343
    %v4345 = vsel %vm2912, %v4344, %v4340
    %v4346 = vlaneseq
    %v4347 = vshrl.u32 %v4346, 7
    %v4348 = vsub.s32 %v2914, %v4347
    %v4349 = vrot.slane %v1432, %v4348
    %v4350 = vsel %vm2919, %v4349, %v4345
    %v4351 = vlaneseq
    %v4352 = vshrl.u32 %v4351, 7
    %v4353 = vsub.s32 %v2921, %v4352
    %v4354 = vrot.slane %v1435, %v4353
    %v4355 = vsel %vm2926, %v4354, %v4350
    %v4356 = vlaneseq
    %v4357 = vshrl.u32 %v4356, 7
    %v4358 = vsub.s32 %v2928, %v4357
    %v4359 = vrot.slane %v1438, %v4358
    %v4360 = vsel %vm2933, %v4359, %v4355
    %v4361 = vlaneseq
    %v4362 = vshrl.u32 %v4361, 7
    %v4363 = vsub.s32 %v2935, %v4362
    %v4364 = vrot.slane %v1441, %v4363
    %v4365 = vsel %vm2940, %v4364, %v4360
    %v4366 = vlaneseq
    %v4367 = vshrl.u32 %v4366, 7
    %v4368 = vsub.s32 %v2942, %v4367
    %v4369 = vrot.slane %v1444, %v4368
    %v4370 = vsel %vm2947, %v4369, %v4365
    %v4371 = vlaneseq
    %v4372 = vshrl.u32 %v4371, 7
    %v4373 = vsub.s32 %v2839, %v4372
    %v4374 = vrot.slane %v1447, %v4373
    %v4375 = vlaneseq
    %v4376 = vshrl.u32 %v4375, 7
    %v4377 = vsub.s32 %v2844, %v4376
    %v4378 = vrot.slane %v1450, %v4377
    %v4379 = vsel %vm2849, %v4378, %v4374
    %v4380 = vlaneseq
    %v4381 = vshrl.u32 %v4380, 7
    %v4382 = vsub.s32 %v2851, %v4381
    %v4383 = vrot.slane %v1453, %v4382
    %v4384 = vsel %vm2856, %v4383, %v4379
    %v4385 = vlaneseq
    %v4386 = vshrl.u32 %v4385, 7
    %v4387 = vsub.s32 %v2858, %v4386
    %v4388 = vrot.slane %v1456, %v4387
    %v4389 = vsel %vm2863, %v4388, %v4384
    %v4390 = vlaneseq
    %v4391 = vshrl.u32 %v4390, 7
    %v4392 = vsub.s32 %v2865, %v4391
    %v4393 = vrot.slane %v1459, %v4392
    %v4394 = vsel %vm2870, %v4393, %v4389
    %v4395 = vlaneseq
    %v4396 = vshrl.u32 %v4395, 7
    %v4397 = vsub.s32 %v2872, %v4396
    %v4398 = vrot.slane %v1462, %v4397
    %v4399 = vsel %vm2877, %v4398, %v4394
    %v4400 = vlaneseq
    %v4401 = vshrl.u32 %v4400, 7
    %v4402 = vsub.s32 %v2879, %v4401
    %v4403 = vrot.slane %v1465, %v4402
    %v4404 = vsel %vm2884, %v4403, %v4399
    %v4405 = vlaneseq
    %v4406 = vshrl.u32 %v4405, 7
    %v4407 = vsub.s32 %v2886, %v4406
    %v4408 = vrot.slane %v1468, %v4407
    %v4409 = vsel %vm2891, %v4408, %v4404
    %v4410 = vlaneseq
    %v4411 = vshrl.u32 %v4410, 7
    %v4412 = vsub.s32 %v2893, %v4411
    %v4413 = vrot.slane %v1471, %v4412
    %v4414 = vsel %vm2898, %v4413, %v4409
    %v4415 = vlaneseq
    %v4416 = vshrl.u32 %v4415, 7
    %v4417 = vsub.s32 %v2900, %v4416
    %v4418 = vrot.slane %v1474, %v4417
    %v4419 = vsel %vm2905, %v4418, %v4414
    %v4420 = vlaneseq
    %v4421 = vshrl.u32 %v4420, 7
    %v4422 = vsub.s32 %v2907, %v4421
    %v4423 = vrot.slane %v1477, %v4422
    %v4424 = vsel %vm2912, %v4423, %v4419
    %v4425 = vlaneseq
    %v4426 = vshrl.u32 %v4425, 7
    %v4427 = vsub.s32 %v2914, %v4426
    %v4428 = vrot.slane %v1480, %v4427
    %v4429 = vsel %vm2919, %v4428, %v4424
    %v4430 = vlaneseq
    %v4431 = vshrl.u32 %v4430, 7
    %v4432 = vsub.s32 %v2921, %v4431
    %v4433 = vrot.slane %v1483, %v4432
    %v4434 = vsel %vm2926, %v4433, %v4429
    %v4435 = vlaneseq
    %v4436 = vshrl.u32 %v4435, 7
    %v4437 = vsub.s32 %v2928, %v4436
    %v4438 = vrot.slane %v1486, %v4437
    %v4439 = vsel %vm2933, %v4438, %v4434
    %v4440 = vlaneseq
    %v4441 = vshrl.u32 %v4440, 7
    %v4442 = vsub.s32 %v2935, %v4441
    %v4443 = vrot.slane %v1489, %v4442
    %v4444 = vsel %vm2940, %v4443, %v4439
    %v4445 = vlaneseq
    %v4446 = vshrl.u32 %v4445, 7
    %v4447 = vsub.s32 %v2942, %v4446
    %v4448 = vrot.slane %v1492, %v4447
    %v4449 = vsel %vm2947, %v4448, %v4444
    %v4450 = vlaneseq
    %v4451 = vshrl.u32 %v4450, 7
    %v4452 = vsub.s32 %v2839, %v4451
    %v4453 = vrot.slane %v1495, %v4452
    %v4454 = vlaneseq
    %v4455 = vshrl.u32 %v4454, 7
    %v4456 = vsub.s32 %v2844, %v4455
    %v4457 = vrot.slane %v1498, %v4456
    %v4458 = vsel %vm2849, %v4457, %v4453
    %v4459 = vlaneseq
    %v4460 = vshrl.u32 %v4459, 7
    %v4461 = vsub.s32 %v2851, %v4460
    %v4462 = vrot.slane %v1501, %v4461
    %v4463 = vsel %vm2856, %v4462, %v4458
    %v4464 = vlaneseq
    %v4465 = vshrl.u32 %v4464, 7
    %v4466 = vsub.s32 %v2858, %v4465
    %v4467 = vrot.slane %v1504, %v4466
    %v4468 = vsel %vm2863, %v4467, %v4463
    %v4469 = vlaneseq
    %v4470 = vshrl.u32 %v4469, 7
    %v4471 = vsub.s32 %v2865, %v4470
    %v4472 = vrot.slane %v1507, %v4471
    %v4473 = vsel %vm2870, %v4472, %v4468
    %v4474 = vlaneseq
    %v4475 = vshrl.u32 %v4474, 7
    %v4476 = vsub.s32 %v2872, %v4475
    %v4477 = vrot.slane %v1510, %v4476
    %v4478 = vsel %vm2877, %v4477, %v4473
    %v4479 = vlaneseq
    %v4480 = vshrl.u32 %v4479, 7
    %v4481 = vsub.s32 %v2879, %v4480
    %v4482 = vrot.slane %v1513, %v4481
    %v4483 = vsel %vm2884, %v4482, %v4478
    %v4484 = vlaneseq
    %v4485 = vshrl.u32 %v4484, 7
    %v4486 = vsub.s32 %v2886, %v4485
    %v4487 = vrot.slane %v1516, %v4486
    %v4488 = vsel %vm2891, %v4487, %v4483
    %v4489 = vlaneseq
    %v4490 = vshrl.u32 %v4489, 7
    %v4491 = vsub.s32 %v2893, %v4490
    %v4492 = vrot.slane %v1519, %v4491
    %v4493 = vsel %vm2898, %v4492, %v4488
    %v4494 = vlaneseq
    %v4495 = vshrl.u32 %v4494, 7
    %v4496 = vsub.s32 %v2900, %v4495
    %v4497 = vrot.slane %v1522, %v4496
    %v4498 = vsel %vm2905, %v4497, %v4493
    %v4499 = vlaneseq
    %v4500 = vshrl.u32 %v4499, 7
    %v4501 = vsub.s32 %v2907, %v4500
    %v4502 = vrot.slane %v1525, %v4501
    %v4503 = vsel %vm2912, %v4502, %v4498
    %v4504 = vlaneseq
    %v4505 = vshrl.u32 %v4504, 7
    %v4506 = vsub.s32 %v2914, %v4505
    %v4507 = vrot.slane %v1528, %v4506
    %v4508 = vsel %vm2919, %v4507, %v4503
    %v4509 = vlaneseq
    %v4510 = vshrl.u32 %v4509, 7
    %v4511 = vsub.s32 %v2921, %v4510
    %v4512 = vrot.slane %v1531, %v4511
    %v4513 = vsel %vm2926, %v4512, %v4508
    %v4514 = vlaneseq
    %v4515 = vshrl.u32 %v4514, 7
    %v4516 = vsub.s32 %v2928, %v4515
    %v4517 = vrot.slane %v1534, %v4516
    %v4518 = vsel %vm2933, %v4517, %v4513
    %v4519 = vlaneseq
    %v4520 = vshrl.u32 %v4519, 7
    %v4521 = vsub.s32 %v2935, %v4520
    %v4522 = vrot.slane %v1537, %v4521
    %v4523 = vsel %vm2940, %v4522, %v4518
    %v4524 = vlaneseq
    %v4525 = vshrl.u32 %v4524, 7
    %v4526 = vsub.s32 %v2942, %v4525
    %v4527 = vrot.slane %v1540, %v4526
    %v4528 = vsel %vm2947, %v4527, %v4523
    %v4529 = vlaneseq
    %v4530 = vshrl.u32 %v4529, 7
    %v4531 = vsub.s32 %v2839, %v4530
    %v4532 = vrot.slane %v1543, %v4531
    %v4533 = vlaneseq
    %v4534 = vshrl.u32 %v4533, 7
    %v4535 = vsub.s32 %v2844, %v4534
    %v4536 = vrot.slane %v1546, %v4535
    %v4537 = vsel %vm2849, %v4536, %v4532
    %v4538 = vlaneseq
    %v4539 = vshrl.u32 %v4538, 7
    %v4540 = vsub.s32 %v2851, %v4539
    %v4541 = vrot.slane %v1549, %v4540
    %v4542 = vsel %vm2856, %v4541, %v4537
    %v4543 = vlaneseq
    %v4544 = vshrl.u32 %v4543, 7
    %v4545 = vsub.s32 %v2858, %v4544
    %v4546 = vrot.slane %v1552, %v4545
    %v4547 = vsel %vm2863, %v4546, %v4542
    %v4548 = vlaneseq
    %v4549 = vshrl.u32 %v4548, 7
    %v4550 = vsub.s32 %v2865, %v4549
    %v4551 = vrot.slane %v1555, %v4550
    %v4552 = vsel %vm2870, %v4551, %v4547
    %v4553 = vlaneseq
    %v4554 = vshrl.u32 %v4553, 7
    %v4555 = vsub.s32 %v2872, %v4554
    %v4556 = vrot.slane %v1558, %v4555
    %v4557 = vsel %vm2877, %v4556, %v4552
    %v4558 = vlaneseq
    %v4559 = vshrl.u32 %v4558, 7
    %v4560 = vsub.s32 %v2879, %v4559
    %v4561 = vrot.slane %v1561, %v4560
    %v4562 = vsel %vm2884, %v4561, %v4557
    %v4563 = vlaneseq
    %v4564 = vshrl.u32 %v4563, 7
    %v4565 = vsub.s32 %v2886, %v4564
    %v4566 = vrot.slane %v1564, %v4565
    %v4567 = vsel %vm2891, %v4566, %v4562
    %v4568 = vlaneseq
    %v4569 = vshrl.u32 %v4568, 7
    %v4570 = vsub.s32 %v2893, %v4569
    %v4571 = vrot.slane %v1567, %v4570
    %v4572 = vsel %vm2898, %v4571, %v4567
    %v4573 = vlaneseq
    %v4574 = vshrl.u32 %v4573, 7
    %v4575 = vsub.s32 %v2900, %v4574
    %v4576 = vrot.slane %v1570, %v4575
    %v4577 = vsel %vm2905, %v4576, %v4572
    %v4578 = vlaneseq
    %v4579 = vshrl.u32 %v4578, 7
    %v4580 = vsub.s32 %v2907, %v4579
    %v4581 = vrot.slane %v1573, %v4580
    %v4582 = vsel %vm2912, %v4581, %v4577
    %v4583 = vlaneseq
    %v4584 = vshrl.u32 %v4583, 7
    %v4585 = vsub.s32 %v2914, %v4584
    %v4586 = vrot.slane %v1576, %v4585
    %v4587 = vsel %vm2919, %v4586, %v4582
    %v4588 = vlaneseq
    %v4589 = vshrl.u32 %v4588, 7
    %v4590 = vsub.s32 %v2921, %v4589
    %v4591 = vrot.slane %v1579, %v4590
    %v4592 = vsel %vm2926, %v4591, %v4587
    %v4593 = vlaneseq
    %v4594 = vshrl.u32 %v4593, 7
    %v4595 = vsub.s32 %v2928, %v4594
    %v4596 = vrot.slane %v1582, %v4595
    %v4597 = vsel %vm2933, %v4596, %v4592
    %v4598 = vlaneseq
    %v4599 = vshrl.u32 %v4598, 7
    %v4600 = vsub.s32 %v2935, %v4599
    %v4601 = vrot.slane %v1585, %v4600
    %v4602 = vsel %vm2940, %v4601, %v4597
    %v4603 = vlaneseq
    %v4604 = vshrl.u32 %v4603, 7
    %v4605 = vsub.s32 %v2942, %v4604
    %v4606 = vrot.slane %v1588, %v4605
    %v4607 = vsel %vm2947, %v4606, %v4602
    %v4608 = vlaneseq
    %v4609 = vshrl.u32 %v4608, 7
    %v4610 = vsub.s32 %v2839, %v4609
    %v4611 = vrot.slane %v1591, %v4610
    %v4612 = vlaneseq
    %v4613 = vshrl.u32 %v4612, 7
    %v4614 = vsub.s32 %v2844, %v4613
    %v4615 = vrot.slane %v1594, %v4614
    %v4616 = vsel %vm2849, %v4615, %v4611
    %v4617 = vlaneseq
    %v4618 = vshrl.u32 %v4617, 7
    %v4619 = vsub.s32 %v2851, %v4618
    %v4620 = vrot.slane %v1597, %v4619
    %v4621 = vsel %vm2856, %v4620, %v4616
    %v4622 = vlaneseq
    %v4623 = vshrl.u32 %v4622, 7
    %v4624 = vsub.s32 %v2858, %v4623
    %v4625 = vrot.slane %v1600, %v4624
    %v4626 = vsel %vm2863, %v4625, %v4621
    %v4627 = vlaneseq
    %v4628 = vshrl.u32 %v4627, 7
    %v4629 = vsub.s32 %v2865, %v4628
    %v4630 = vrot.slane %v1603, %v4629
    %v4631 = vsel %vm2870, %v4630, %v4626
    %v4632 = vlaneseq
    %v4633 = vshrl.u32 %v4632, 7
    %v4634 = vsub.s32 %v2872, %v4633
    %v4635 = vrot.slane %v1606, %v4634
    %v4636 = vsel %vm2877, %v4635, %v4631
    %v4637 = vlaneseq
    %v4638 = vshrl.u32 %v4637, 7
    %v4639 = vsub.s32 %v2879, %v4638
    %v4640 = vrot.slane %v1609, %v4639
    %v4641 = vsel %vm2884, %v4640, %v4636
    %v4642 = vlaneseq
    %v4643 = vshrl.u32 %v4642, 7
    %v4644 = vsub.s32 %v2886, %v4643
    %v4645 = vrot.slane %v1612, %v4644
    %v4646 = vsel %vm2891, %v4645, %v4641
    %v4647 = vlaneseq
    %v4648 = vshrl.u32 %v4647, 7
    %v4649 = vsub.s32 %v2893, %v4648
    %v4650 = vrot.slane %v1615, %v4649
    %v4651 = vsel %vm2898, %v4650, %v4646
    %v4652 = vlaneseq
    %v4653 = vshrl.u32 %v4652, 7
    %v4654 = vsub.s32 %v2900, %v4653
    %v4655 = vrot.slane %v1618, %v4654
    %v4656 = vsel %vm2905, %v4655, %v4651
    %v4657 = vlaneseq
    %v4658 = vshrl.u32 %v4657, 7
    %v4659 = vsub.s32 %v2907, %v4658
    %v4660 = vrot.slane %v1621, %v4659
    %v4661 = vsel %vm2912, %v4660, %v4656
    %v4662 = vlaneseq
    %v4663 = vshrl.u32 %v4662, 7
    %v4664 = vsub.s32 %v2914, %v4663
    %v4665 = vrot.slane %v1624, %v4664
    %v4666 = vsel %vm2919, %v4665, %v4661
    %v4667 = vlaneseq
    %v4668 = vshrl.u32 %v4667, 7
    %v4669 = vsub.s32 %v2921, %v4668
    %v4670 = vrot.slane %v1627, %v4669
    %v4671 = vsel %vm2926, %v4670, %v4666
    %v4672 = vlaneseq
    %v4673 = vshrl.u32 %v4672, 7
    %v4674 = vsub.s32 %v2928, %v4673
    %v4675 = vrot.slane %v1630, %v4674
    %v4676 = vsel %vm2933, %v4675, %v4671
    %v4677 = vlaneseq
    %v4678 = vshrl.u32 %v4677, 7
    %v4679 = vsub.s32 %v2935, %v4678
    %v4680 = vrot.slane %v1633, %v4679
    %v4681 = vsel %vm2940, %v4680, %v4676
    %v4682 = vlaneseq
    %v4683 = vshrl.u32 %v4682, 7
    %v4684 = vsub.s32 %v2942, %v4683
    %v4685 = vrot.slane %v1636, %v4684
    %v4686 = vsel %vm2947, %v4685, %v4681
    %v4687 = vlaneseq
    %v4688 = vshrl.u32 %v4687, 7
    %v4689 = vsub.s32 %v2839, %v4688
    %v4690 = vrot.slane %v1639, %v4689
    %v4691 = vlaneseq
    %v4692 = vshrl.u32 %v4691, 7
    %v4693 = vsub.s32 %v2844, %v4692
    %v4694 = vrot.slane %v1642, %v4693
    %v4695 = vsel %vm2849, %v4694, %v4690
    %v4696 = vlaneseq
    %v4697 = vshrl.u32 %v4696, 7
    %v4698 = vsub.s32 %v2851, %v4697
    %v4699 = vrot.slane %v1645, %v4698
    %v4700 = vsel %vm2856, %v4699, %v4695
    %v4701 = vlaneseq
    %v4702 = vshrl.u32 %v4701, 7
    %v4703 = vsub.s32 %v2858, %v4702
    %v4704 = vrot.slane %v1648, %v4703
    %v4705 = vsel %vm2863, %v4704, %v4700
    %v4706 = vlaneseq
    %v4707 = vshrl.u32 %v4706, 7
    %v4708 = vsub.s32 %v2865, %v4707
    %v4709 = vrot.slane %v1651, %v4708
    %v4710 = vsel %vm2870, %v4709, %v4705
    %v4711 = vlaneseq
    %v4712 = vshrl.u32 %v4711, 7
    %v4713 = vsub.s32 %v2872, %v4712
    %v4714 = vrot.slane %v1654, %v4713
    %v4715 = vsel %vm2877, %v4714, %v4710
    %v4716 = vlaneseq
    %v4717 = vshrl.u32 %v4716, 7
    %v4718 = vsub.s32 %v2879, %v4717
    %v4719 = vrot.slane %v1657, %v4718
    %v4720 = vsel %vm2884, %v4719, %v4715
    %v4721 = vlaneseq
    %v4722 = vshrl.u32 %v4721, 7
    %v4723 = vsub.s32 %v2886, %v4722
    %v4724 = vrot.slane %v1660, %v4723
    %v4725 = vsel %vm2891, %v4724, %v4720
    %v4726 = vlaneseq
    %v4727 = vshrl.u32 %v4726, 7
    %v4728 = vsub.s32 %v2893, %v4727
    %v4729 = vrot.slane %v1663, %v4728
    %v4730 = vsel %vm2898, %v4729, %v4725
    %v4731 = vlaneseq
    %v4732 = vshrl.u32 %v4731, 7
    %v4733 = vsub.s32 %v2900, %v4732
    %v4734 = vrot.slane %v1666, %v4733
    %v4735 = vsel %vm2905, %v4734, %v4730
    %v4736 = vlaneseq
    %v4737 = vshrl.u32 %v4736, 7
    %v4738 = vsub.s32 %v2907, %v4737
    %v4739 = vrot.slane %v1669, %v4738
    %v4740 = vsel %vm2912, %v4739, %v4735
    %v4741 = vlaneseq
    %v4742 = vshrl.u32 %v4741, 7
    %v4743 = vsub.s32 %v2914, %v4742
    %v4744 = vrot.slane %v1672, %v4743
    %v4745 = vsel %vm2919, %v4744, %v4740
    %v4746 = vlaneseq
    %v4747 = vshrl.u32 %v4746, 7
    %v4748 = vsub.s32 %v2921, %v4747
    %v4749 = vrot.slane %v1675, %v4748
    %v4750 = vsel %vm2926, %v4749, %v4745
    %v4751 = vlaneseq
    %v4752 = vshrl.u32 %v4751, 7
    %v4753 = vsub.s32 %v2928, %v4752
    %v4754 = vrot.slane %v1678, %v4753
    %v4755 = vsel %vm2933, %v4754, %v4750
    %v4756 = vlaneseq
    %v4757 = vshrl.u32 %v4756, 7
    %v4758 = vsub.s32 %v2935, %v4757
    %v4759 = vrot.slane %v1681, %v4758
    %v4760 = vsel %vm2940, %v4759, %v4755
    %v4761 = vlaneseq
    %v4762 = vshrl.u32 %v4761, 7
    %v4763 = vsub.s32 %v2942, %v4762
    %v4764 = vrot.slane %v1684, %v4763
    %v4765 = vsel %vm2947, %v4764, %v4760
    %v4766 = vlaneseq
    %v4767 = vshrl.u32 %v4766, 7
    %v4768 = vsub.s32 %v2839, %v4767
    %v4769 = vrot.slane %v1687, %v4768
    %v4770 = vlaneseq
    %v4771 = vshrl.u32 %v4770, 7
    %v4772 = vsub.s32 %v2844, %v4771
    %v4773 = vrot.slane %v1690, %v4772
    %v4774 = vsel %vm2849, %v4773, %v4769
    %v4775 = vlaneseq
    %v4776 = vshrl.u32 %v4775, 7
    %v4777 = vsub.s32 %v2851, %v4776
    %v4778 = vrot.slane %v1693, %v4777
    %v4779 = vsel %vm2856, %v4778, %v4774
    %v4780 = vlaneseq
    %v4781 = vshrl.u32 %v4780, 7
    %v4782 = vsub.s32 %v2858, %v4781
    %v4783 = vrot.slane %v1696, %v4782
    %v4784 = vsel %vm2863, %v4783, %v4779
    %v4785 = vlaneseq
    %v4786 = vshrl.u32 %v4785, 7
    %v4787 = vsub.s32 %v2865, %v4786
    %v4788 = vrot.slane %v1699, %v4787
    %v4789 = vsel %vm2870, %v4788, %v4784
    %v4790 = vlaneseq
    %v4791 = vshrl.u32 %v4790, 7
    %v4792 = vsub.s32 %v2872, %v4791
    %v4793 = vrot.slane %v1702, %v4792
    %v4794 = vsel %vm2877, %v4793, %v4789
    %v4795 = vlaneseq
    %v4796 = vshrl.u32 %v4795, 7
    %v4797 = vsub.s32 %v2879, %v4796
    %v4798 = vrot.slane %v1705, %v4797
    %v4799 = vsel %vm2884, %v4798, %v4794
    %v4800 = vlaneseq
    %v4801 = vshrl.u32 %v4800, 7
    %v4802 = vsub.s32 %v2886, %v4801
    %v4803 = vrot.slane %v1708, %v4802
    %v4804 = vsel %vm2891, %v4803, %v4799
    %v4805 = vlaneseq
    %v4806 = vshrl.u32 %v4805, 7
    %v4807 = vsub.s32 %v2893, %v4806
    %v4808 = vrot.slane %v1711, %v4807
    %v4809 = vsel %vm2898, %v4808, %v4804
    %v4810 = vlaneseq
    %v4811 = vshrl.u32 %v4810, 7
    %v4812 = vsub.s32 %v2900, %v4811
    %v4813 = vrot.slane %v1714, %v4812
    %v4814 = vsel %vm2905, %v4813, %v4809
    %v4815 = vlaneseq
    %v4816 = vshrl.u32 %v4815, 7
    %v4817 = vsub.s32 %v2907, %v4816
    %v4818 = vrot.slane %v1717, %v4817
    %v4819 = vsel %vm2912, %v4818, %v4814
    %v4820 = vlaneseq
    %v4821 = vshrl.u32 %v4820, 7
    %v4822 = vsub.s32 %v2914, %v4821
    %v4823 = vrot.slane %v1720, %v4822
    %v4824 = vsel %vm2919, %v4823, %v4819
    %v4825 = vlaneseq
    %v4826 = vshrl.u32 %v4825, 7
    %v4827 = vsub.s32 %v2921, %v4826
    %v4828 = vrot.slane %v1723, %v4827
    %v4829 = vsel %vm2926, %v4828, %v4824
    %v4830 = vlaneseq
    %v4831 = vshrl.u32 %v4830, 7
    %v4832 = vsub.s32 %v2928, %v4831
    %v4833 = vrot.slane %v1726, %v4832
    %v4834 = vsel %vm2933, %v4833, %v4829
    %v4835 = vlaneseq
    %v4836 = vshrl.u32 %v4835, 7
    %v4837 = vsub.s32 %v2935, %v4836
    %v4838 = vrot.slane %v1729, %v4837
    %v4839 = vsel %vm2940, %v4838, %v4834
    %v4840 = vlaneseq
    %v4841 = vshrl.u32 %v4840, 7
    %v4842 = vsub.s32 %v2942, %v4841
    %v4843 = vrot.slane %v1732, %v4842
    %v4844 = vsel %vm2947, %v4843, %v4839
    %v4845 = vlaneseq
    %v4846 = vshrl.u32 %v4845, 7
    %v4847 = vsub.s32 %v2839, %v4846
    %v4848 = vrot.slane %v1735, %v4847
    %v4849 = vlaneseq
    %v4850 = vshrl.u32 %v4849, 7
    %v4851 = vsub.s32 %v2844, %v4850
    %v4852 = vrot.slane %v1738, %v4851
    %v4853 = vsel %vm2849, %v4852, %v4848
    %v4854 = vlaneseq
    %v4855 = vshrl.u32 %v4854, 7
    %v4856 = vsub.s32 %v2851, %v4855
    %v4857 = vrot.slane %v1741, %v4856
    %v4858 = vsel %vm2856, %v4857, %v4853
    %v4859 = vlaneseq
    %v4860 = vshrl.u32 %v4859, 7
    %v4861 = vsub.s32 %v2858, %v4860
    %v4862 = vrot.slane %v1744, %v4861
    %v4863 = vsel %vm2863, %v4862, %v4858
    %v4864 = vlaneseq
    %v4865 = vshrl.u32 %v4864, 7
    %v4866 = vsub.s32 %v2865, %v4865
    %v4867 = vrot.slane %v1747, %v4866
    %v4868 = vsel %vm2870, %v4867, %v4863
    %v4869 = vlaneseq
    %v4870 = vshrl.u32 %v4869, 7
    %v4871 = vsub.s32 %v2872, %v4870
    %v4872 = vrot.slane %v1750, %v4871
    %v4873 = vsel %vm2877, %v4872, %v4868
    %v4874 = vlaneseq
    %v4875 = vshrl.u32 %v4874, 7
    %v4876 = vsub.s32 %v2879, %v4875
    %v4877 = vrot.slane %v1753, %v4876
    %v4878 = vsel %vm2884, %v4877, %v4873
    %v4879 = vlaneseq
    %v4880 = vshrl.u32 %v4879, 7
    %v4881 = vsub.s32 %v2886, %v4880
    %v4882 = vrot.slane %v1756, %v4881
    %v4883 = vsel %vm2891, %v4882, %v4878
    %v4884 = vlaneseq
    %v4885 = vshrl.u32 %v4884, 7
    %v4886 = vsub.s32 %v2893, %v4885
    %v4887 = vrot.slane %v1759, %v4886
    %v4888 = vsel %vm2898, %v4887, %v4883
    %v4889 = vlaneseq
    %v4890 = vshrl.u32 %v4889, 7
    %v4891 = vsub.s32 %v2900, %v4890
    %v4892 = vrot.slane %v1762, %v4891
    %v4893 = vsel %vm2905, %v4892, %v4888
    %v4894 = vlaneseq
    %v4895 = vshrl.u32 %v4894, 7
    %v4896 = vsub.s32 %v2907, %v4895
    %v4897 = vrot.slane %v1765, %v4896
    %v4898 = vsel %vm2912, %v4897, %v4893
    %v4899 = vlaneseq
    %v4900 = vshrl.u32 %v4899, 7
    %v4901 = vsub.s32 %v2914, %v4900
    %v4902 = vrot.slane %v1768, %v4901
    %v4903 = vsel %vm2919, %v4902, %v4898
    %v4904 = vlaneseq
    %v4905 = vshrl.u32 %v4904, 7
    %v4906 = vsub.s32 %v2921, %v4905
    %v4907 = vrot.slane %v1771, %v4906
    %v4908 = vsel %vm2926, %v4907, %v4903
    %v4909 = vlaneseq
    %v4910 = vshrl.u32 %v4909, 7
    %v4911 = vsub.s32 %v2928, %v4910
    %v4912 = vrot.slane %v1774, %v4911
    %v4913 = vsel %vm2933, %v4912, %v4908
    %v4914 = vlaneseq
    %v4915 = vshrl.u32 %v4914, 7
    %v4916 = vsub.s32 %v2935, %v4915
    %v4917 = vrot.slane %v1777, %v4916
    %v4918 = vsel %vm2940, %v4917, %v4913
    %v4919 = vlaneseq
    %v4920 = vshrl.u32 %v4919, 7
    %v4921 = vsub.s32 %v2942, %v4920
    %v4922 = vrot.slane %v1780, %v4921
    %v4923 = vsel %vm2947, %v4922, %v4918
    %v4924 = vlaneseq
    %v4925 = vshrl.u32 %v4924, 7
    %v4926 = vsub.s32 %v2839, %v4925
    %v4927 = vrot.slane %v1783, %v4926
    %v4928 = vlaneseq
    %v4929 = vshrl.u32 %v4928, 7
    %v4930 = vsub.s32 %v2844, %v4929
    %v4931 = vrot.slane %v1786, %v4930
    %v4932 = vsel %vm2849, %v4931, %v4927
    %v4933 = vlaneseq
    %v4934 = vshrl.u32 %v4933, 7
    %v4935 = vsub.s32 %v2851, %v4934
    %v4936 = vrot.slane %v1789, %v4935
    %v4937 = vsel %vm2856, %v4936, %v4932
    %v4938 = vlaneseq
    %v4939 = vshrl.u32 %v4938, 7
    %v4940 = vsub.s32 %v2858, %v4939
    %v4941 = vrot.slane %v1792, %v4940
    %v4942 = vsel %vm2863, %v4941, %v4937
    %v4943 = vlaneseq
    %v4944 = vshrl.u32 %v4943, 7
    %v4945 = vsub.s32 %v2865, %v4944
    %v4946 = vrot.slane %v1795, %v4945
    %v4947 = vsel %vm2870, %v4946, %v4942
    %v4948 = vlaneseq
    %v4949 = vshrl.u32 %v4948, 7
    %v4950 = vsub.s32 %v2872, %v4949
    %v4951 = vrot.slane %v1798, %v4950
    %v4952 = vsel %vm2877, %v4951, %v4947
    %v4953 = vlaneseq
    %v4954 = vshrl.u32 %v4953, 7
    %v4955 = vsub.s32 %v2879, %v4954
    %v4956 = vrot.slane %v1801, %v4955
    %v4957 = vsel %vm2884, %v4956, %v4952
    %v4958 = vlaneseq
    %v4959 = vshrl.u32 %v4958, 7
    %v4960 = vsub.s32 %v2886, %v4959
    %v4961 = vrot.slane %v1804, %v4960
    %v4962 = vsel %vm2891, %v4961, %v4957
    %v4963 = vlaneseq
    %v4964 = vshrl.u32 %v4963, 7
    %v4965 = vsub.s32 %v2893, %v4964
    %v4966 = vrot.slane %v1807, %v4965
    %v4967 = vsel %vm2898, %v4966, %v4962
    %v4968 = vlaneseq
    %v4969 = vshrl.u32 %v4968, 7
    %v4970 = vsub.s32 %v2900, %v4969
    %v4971 = vrot.slane %v1810, %v4970
    %v4972 = vsel %vm2905, %v4971, %v4967
    %v4973 = vlaneseq
    %v4974 = vshrl.u32 %v4973, 7
    %v4975 = vsub.s32 %v2907, %v4974
    %v4976 = vrot.slane %v1813, %v4975
    %v4977 = vsel %vm2912, %v4976, %v4972
    %v4978 = vlaneseq
    %v4979 = vshrl.u32 %v4978, 7
    %v4980 = vsub.s32 %v2914, %v4979
    %v4981 = vrot.slane %v1816, %v4980
    %v4982 = vsel %vm2919, %v4981, %v4977
    %v4983 = vlaneseq
    %v4984 = vshrl.u32 %v4983, 7
    %v4985 = vsub.s32 %v2921, %v4984
    %v4986 = vrot.slane %v1819, %v4985
    %v4987 = vsel %vm2926, %v4986, %v4982
    %v4988 = vlaneseq
    %v4989 = vshrl.u32 %v4988, 7
    %v4990 = vsub.s32 %v2928, %v4989
    %v4991 = vrot.slane %v1822, %v4990
    %v4992 = vsel %vm2933, %v4991, %v4987
    %v4993 = vlaneseq
    %v4994 = vshrl.u32 %v4993, 7
    %v4995 = vsub.s32 %v2935, %v4994
    %v4996 = vrot.slane %v1825, %v4995
    %v4997 = vsel %vm2940, %v4996, %v4992
    %v4998 = vlaneseq
    %v4999 = vshrl.u32 %v4998, 7
    %v5000 = vsub.s32 %v2942, %v4999
    %v5001 = vrot.slane %v1828, %v5000
    %v5002 = vsel %vm2947, %v5001, %v4997
    %v5003 = vlaneseq
    %v5004 = vshrl.u32 %v5003, 7
    %v5005 = vsub.s32 %v2839, %v5004
    %v5006 = vrot.slane %v1831, %v5005
    %v5007 = vlaneseq
    %v5008 = vshrl.u32 %v5007, 7
    %v5009 = vsub.s32 %v2844, %v5008
    %v5010 = vrot.slane %v1834, %v5009
    %v5011 = vsel %vm2849, %v5010, %v5006
    %v5012 = vlaneseq
    %v5013 = vshrl.u32 %v5012, 7
    %v5014 = vsub.s32 %v2851, %v5013
    %v5015 = vrot.slane %v1837, %v5014
    %v5016 = vsel %vm2856, %v5015, %v5011
    %v5017 = vlaneseq
    %v5018 = vshrl.u32 %v5017, 7
    %v5019 = vsub.s32 %v2858, %v5018
    %v5020 = vrot.slane %v1840, %v5019
    %v5021 = vsel %vm2863, %v5020, %v5016
    %v5022 = vlaneseq
    %v5023 = vshrl.u32 %v5022, 7
    %v5024 = vsub.s32 %v2865, %v5023
    %v5025 = vrot.slane %v1843, %v5024
    %v5026 = vsel %vm2870, %v5025, %v5021
    %v5027 = vlaneseq
    %v5028 = vshrl.u32 %v5027, 7
    %v5029 = vsub.s32 %v2872, %v5028
    %v5030 = vrot.slane %v1846, %v5029
    %v5031 = vsel %vm2877, %v5030, %v5026
    %v5032 = vlaneseq
    %v5033 = vshrl.u32 %v5032, 7
    %v5034 = vsub.s32 %v2879, %v5033
    %v5035 = vrot.slane %v1849, %v5034
    %v5036 = vsel %vm2884, %v5035, %v5031
    %v5037 = vlaneseq
    %v5038 = vshrl.u32 %v5037, 7
    %v5039 = vsub.s32 %v2886, %v5038
    %v5040 = vrot.slane %v1852, %v5039
    %v5041 = vsel %vm2891, %v5040, %v5036
    %v5042 = vlaneseq
    %v5043 = vshrl.u32 %v5042, 7
    %v5044 = vsub.s32 %v2893, %v5043
    %v5045 = vrot.slane %v1855, %v5044
    %v5046 = vsel %vm2898, %v5045, %v5041
    %v5047 = vlaneseq
    %v5048 = vshrl.u32 %v5047, 7
    %v5049 = vsub.s32 %v2900, %v5048
    %v5050 = vrot.slane %v1858, %v5049
    %v5051 = vsel %vm2905, %v5050, %v5046
    %v5052 = vlaneseq
    %v5053 = vshrl.u32 %v5052, 7
    %v5054 = vsub.s32 %v2907, %v5053
    %v5055 = vrot.slane %v1861, %v5054
    %v5056 = vsel %vm2912, %v5055, %v5051
    %v5057 = vlaneseq
    %v5058 = vshrl.u32 %v5057, 7
    %v5059 = vsub.s32 %v2914, %v5058
    %v5060 = vrot.slane %v1864, %v5059
    %v5061 = vsel %vm2919, %v5060, %v5056
    %v5062 = vlaneseq
    %v5063 = vshrl.u32 %v5062, 7
    %v5064 = vsub.s32 %v2921, %v5063
    %v5065 = vrot.slane %v1867, %v5064
    %v5066 = vsel %vm2926, %v5065, %v5061
    %v5067 = vlaneseq
    %v5068 = vshrl.u32 %v5067, 7
    %v5069 = vsub.s32 %v2928, %v5068
    %v5070 = vrot.slane %v1870, %v5069
    %v5071 = vsel %vm2933, %v5070, %v5066
    %v5072 = vlaneseq
    %v5073 = vshrl.u32 %v5072, 7
    %v5074 = vsub.s32 %v2935, %v5073
    %v5075 = vrot.slane %v1873, %v5074
    %v5076 = vsel %vm2940, %v5075, %v5071
    %v5077 = vlaneseq
    %v5078 = vshrl.u32 %v5077, 7
    %v5079 = vsub.s32 %v2942, %v5078
    %v5080 = vrot.slane %v1876, %v5079
    %v5081 = vsel %vm2947, %v5080, %v5076
    %v5082 = vlaneseq
    %v5083 = vshrl.u32 %v5082, 7
    %v5084 = vsub.s32 %v2839, %v5083
    %v5085 = vrot.slane %v1879, %v5084
    %v5086 = vlaneseq
    %v5087 = vshrl.u32 %v5086, 7
    %v5088 = vsub.s32 %v2844, %v5087
    %v5089 = vrot.slane %v1882, %v5088
    %v5090 = vsel %vm2849, %v5089, %v5085
    %v5091 = vlaneseq
    %v5092 = vshrl.u32 %v5091, 7
    %v5093 = vsub.s32 %v2851, %v5092
    %v5094 = vrot.slane %v1885, %v5093
    %v5095 = vsel %vm2856, %v5094, %v5090
    %v5096 = vlaneseq
    %v5097 = vshrl.u32 %v5096, 7
    %v5098 = vsub.s32 %v2858, %v5097
    %v5099 = vrot.slane %v1888, %v5098
    %v5100 = vsel %vm2863, %v5099, %v5095
    %v5101 = vlaneseq
    %v5102 = vshrl.u32 %v5101, 7
    %v5103 = vsub.s32 %v2865, %v5102
    %v5104 = vrot.slane %v1891, %v5103
    %v5105 = vsel %vm2870, %v5104, %v5100
    %v5106 = vlaneseq
    %v5107 = vshrl.u32 %v5106, 7
    %v5108 = vsub.s32 %v2872, %v5107
    %v5109 = vrot.slane %v1894, %v5108
    %v5110 = vsel %vm2877, %v5109, %v5105
    %v5111 = vlaneseq
    %v5112 = vshrl.u32 %v5111, 7
    %v5113 = vsub.s32 %v2879, %v5112
    %v5114 = vrot.slane %v1897, %v5113
    %v5115 = vsel %vm2884, %v5114, %v5110
    %v5116 = vlaneseq
    %v5117 = vshrl.u32 %v5116, 7
    %v5118 = vsub.s32 %v2886, %v5117
    %v5119 = vrot.slane %v1900, %v5118
    %v5120 = vsel %vm2891, %v5119, %v5115
    %v5121 = vlaneseq
    %v5122 = vshrl.u32 %v5121, 7
    %v5123 = vsub.s32 %v2893, %v5122
    %v5124 = vrot.slane %v1903, %v5123
    %v5125 = vsel %vm2898, %v5124, %v5120
    %v5126 = vlaneseq
    %v5127 = vshrl.u32 %v5126, 7
    %v5128 = vsub.s32 %v2900, %v5127
    %v5129 = vrot.slane %v1906, %v5128
    %v5130 = vsel %vm2905, %v5129, %v5125
    %v5131 = vlaneseq
    %v5132 = vshrl.u32 %v5131, 7
    %v5133 = vsub.s32 %v2907, %v5132
    %v5134 = vrot.slane %v1909, %v5133
    %v5135 = vsel %vm2912, %v5134, %v5130
    %v5136 = vlaneseq
    %v5137 = vshrl.u32 %v5136, 7
    %v5138 = vsub.s32 %v2914, %v5137
    %v5139 = vrot.slane %v1912, %v5138
    %v5140 = vsel %vm2919, %v5139, %v5135
    %v5141 = vlaneseq
    %v5142 = vshrl.u32 %v5141, 7
    %v5143 = vsub.s32 %v2921, %v5142
    %v5144 = vrot.slane %v1915, %v5143
    %v5145 = vsel %vm2926, %v5144, %v5140
    %v5146 = vlaneseq
    %v5147 = vshrl.u32 %v5146, 7
    %v5148 = vsub.s32 %v2928, %v5147
    %v5149 = vrot.slane %v1918, %v5148
    %v5150 = vsel %vm2933, %v5149, %v5145
    %v5151 = vlaneseq
    %v5152 = vshrl.u32 %v5151, 7
    %v5153 = vsub.s32 %v2935, %v5152
    %v5154 = vrot.slane %v1921, %v5153
    %v5155 = vsel %vm2940, %v5154, %v5150
    %v5156 = vlaneseq
    %v5157 = vshrl.u32 %v5156, 7
    %v5158 = vsub.s32 %v2942, %v5157
    %v5159 = vrot.slane %v1924, %v5158
    %v5160 = vsel %vm2947, %v5159, %v5155
    %v5161 = vlaneseq
    %v5162 = vshrl.u32 %v5161, 7
    %v5163 = vsub.s32 %v2839, %v5162
    %v5164 = vrot.slane %v1927, %v5163
    %v5165 = vlaneseq
    %v5166 = vshrl.u32 %v5165, 7
    %v5167 = vsub.s32 %v2844, %v5166
    %v5168 = vrot.slane %v1930, %v5167
    %v5169 = vsel %vm2849, %v5168, %v5164
    %v5170 = vlaneseq
    %v5171 = vshrl.u32 %v5170, 7
    %v5172 = vsub.s32 %v2851, %v5171
    %v5173 = vrot.slane %v1933, %v5172
    %v5174 = vsel %vm2856, %v5173, %v5169
    %v5175 = vlaneseq
    %v5176 = vshrl.u32 %v5175, 7
    %v5177 = vsub.s32 %v2858, %v5176
    %v5178 = vrot.slane %v1936, %v5177
    %v5179 = vsel %vm2863, %v5178, %v5174
    %v5180 = vlaneseq
    %v5181 = vshrl.u32 %v5180, 7
    %v5182 = vsub.s32 %v2865, %v5181
    %v5183 = vrot.slane %v1939, %v5182
    %v5184 = vsel %vm2870, %v5183, %v5179
    %v5185 = vlaneseq
    %v5186 = vshrl.u32 %v5185, 7
    %v5187 = vsub.s32 %v2872, %v5186
    %v5188 = vrot.slane %v1942, %v5187
    %v5189 = vsel %vm2877, %v5188, %v5184
    %v5190 = vlaneseq
    %v5191 = vshrl.u32 %v5190, 7
    %v5192 = vsub.s32 %v2879, %v5191
    %v5193 = vrot.slane %v1945, %v5192
    %v5194 = vsel %vm2884, %v5193, %v5189
    %v5195 = vlaneseq
    %v5196 = vshrl.u32 %v5195, 7
    %v5197 = vsub.s32 %v2886, %v5196
    %v5198 = vrot.slane %v1948, %v5197
    %v5199 = vsel %vm2891, %v5198, %v5194
    %v5200 = vlaneseq
    %v5201 = vshrl.u32 %v5200, 7
    %v5202 = vsub.s32 %v2893, %v5201
    %v5203 = vrot.slane %v1951, %v5202
    %v5204 = vsel %vm2898, %v5203, %v5199
    %v5205 = vlaneseq
    %v5206 = vshrl.u32 %v5205, 7
    %v5207 = vsub.s32 %v2900, %v5206
    %v5208 = vrot.slane %v1954, %v5207
    %v5209 = vsel %vm2905, %v5208, %v5204
    %v5210 = vlaneseq
    %v5211 = vshrl.u32 %v5210, 7
    %v5212 = vsub.s32 %v2907, %v5211
    %v5213 = vrot.slane %v1957, %v5212
    %v5214 = vsel %vm2912, %v5213, %v5209
    %v5215 = vlaneseq
    %v5216 = vshrl.u32 %v5215, 7
    %v5217 = vsub.s32 %v2914, %v5216
    %v5218 = vrot.slane %v1960, %v5217
    %v5219 = vsel %vm2919, %v5218, %v5214
    %v5220 = vlaneseq
    %v5221 = vshrl.u32 %v5220, 7
    %v5222 = vsub.s32 %v2921, %v5221
    %v5223 = vrot.slane %v1963, %v5222
    %v5224 = vsel %vm2926, %v5223, %v5219
    %v5225 = vlaneseq
    %v5226 = vshrl.u32 %v5225, 7
    %v5227 = vsub.s32 %v2928, %v5226
    %v5228 = vrot.slane %v1966, %v5227
    %v5229 = vsel %vm2933, %v5228, %v5224
    %v5230 = vlaneseq
    %v5231 = vshrl.u32 %v5230, 7
    %v5232 = vsub.s32 %v2935, %v5231
    %v5233 = vrot.slane %v1969, %v5232
    %v5234 = vsel %vm2940, %v5233, %v5229
    %v5235 = vlaneseq
    %v5236 = vshrl.u32 %v5235, 7
    %v5237 = vsub.s32 %v2942, %v5236
    %v5238 = vrot.slane %v1972, %v5237
    %v5239 = vsel %vm2947, %v5238, %v5234
    %v5240 = vlaneseq
    %v5241 = vshrl.u32 %v5240, 7
    %v5242 = vsub.s32 %v2839, %v5241
    %v5243 = vrot.slane %v1975, %v5242
    %v5244 = vlaneseq
    %v5245 = vshrl.u32 %v5244, 7
    %v5246 = vsub.s32 %v2844, %v5245
    %v5247 = vrot.slane %v1978, %v5246
    %v5248 = vsel %vm2849, %v5247, %v5243
    %v5249 = vlaneseq
    %v5250 = vshrl.u32 %v5249, 7
    %v5251 = vsub.s32 %v2851, %v5250
    %v5252 = vrot.slane %v1981, %v5251
    %v5253 = vsel %vm2856, %v5252, %v5248
    %v5254 = vlaneseq
    %v5255 = vshrl.u32 %v5254, 7
    %v5256 = vsub.s32 %v2858, %v5255
    %v5257 = vrot.slane %v1984, %v5256
    %v5258 = vsel %vm2863, %v5257, %v5253
    %v5259 = vlaneseq
    %v5260 = vshrl.u32 %v5259, 7
    %v5261 = vsub.s32 %v2865, %v5260
    %v5262 = vrot.slane %v1987, %v5261
    %v5263 = vsel %vm2870, %v5262, %v5258
    %v5264 = vlaneseq
    %v5265 = vshrl.u32 %v5264, 7
    %v5266 = vsub.s32 %v2872, %v5265
    %v5267 = vrot.slane %v1990, %v5266
    %v5268 = vsel %vm2877, %v5267, %v5263
    %v5269 = vlaneseq
    %v5270 = vshrl.u32 %v5269, 7
    %v5271 = vsub.s32 %v2879, %v5270
    %v5272 = vrot.slane %v1993, %v5271
    %v5273 = vsel %vm2884, %v5272, %v5268
    %v5274 = vlaneseq
    %v5275 = vshrl.u32 %v5274, 7
    %v5276 = vsub.s32 %v2886, %v5275
    %v5277 = vrot.slane %v1996, %v5276
    %v5278 = vsel %vm2891, %v5277, %v5273
    %v5279 = vlaneseq
    %v5280 = vshrl.u32 %v5279, 7
    %v5281 = vsub.s32 %v2893, %v5280
    %v5282 = vrot.slane %v1999, %v5281
    %v5283 = vsel %vm2898, %v5282, %v5278
    %v5284 = vlaneseq
    %v5285 = vshrl.u32 %v5284, 7
    %v5286 = vsub.s32 %v2900, %v5285
    %v5287 = vrot.slane %v2002, %v5286
    %v5288 = vsel %vm2905, %v5287, %v5283
    %v5289 = vlaneseq
    %v5290 = vshrl.u32 %v5289, 7
    %v5291 = vsub.s32 %v2907, %v5290
    %v5292 = vrot.slane %v2005, %v5291
    %v5293 = vsel %vm2912, %v5292, %v5288
    %v5294 = vlaneseq
    %v5295 = vshrl.u32 %v5294, 7
    %v5296 = vsub.s32 %v2914, %v5295
    %v5297 = vrot.slane %v2008, %v5296
    %v5298 = vsel %vm2919, %v5297, %v5293
    %v5299 = vlaneseq
    %v5300 = vshrl.u32 %v5299, 7
    %v5301 = vsub.s32 %v2921, %v5300
    %v5302 = vrot.slane %v2011, %v5301
    %v5303 = vsel %vm2926, %v5302, %v5298
    %v5304 = vlaneseq
    %v5305 = vshrl.u32 %v5304, 7
    %v5306 = vsub.s32 %v2928, %v5305
    %v5307 = vrot.slane %v2014, %v5306
    %v5308 = vsel %vm2933, %v5307, %v5303
    %v5309 = vlaneseq
    %v5310 = vshrl.u32 %v5309, 7
    %v5311 = vsub.s32 %v2935, %v5310
    %v5312 = vrot.slane %v2017, %v5311
    %v5313 = vsel %vm2940, %v5312, %v5308
    %v5314 = vlaneseq
    %v5315 = vshrl.u32 %v5314, 7
    %v5316 = vsub.s32 %v2942, %v5315
    %v5317 = vrot.slane %v2020, %v5316
    %v5318 = vsel %vm2947, %v5317, %v5313
    %v5319 = vlaneseq
    %v5320 = vshrl.u32 %v5319, 7
    %v5321 = vsub.s32 %v2839, %v5320
    %v5322 = vrot.slane %v2023, %v5321
    %v5323 = vlaneseq
    %v5324 = vshrl.u32 %v5323, 7
    %v5325 = vsub.s32 %v2844, %v5324
    %v5326 = vrot.slane %v2026, %v5325
    %v5327 = vsel %vm2849, %v5326, %v5322
    %v5328 = vlaneseq
    %v5329 = vshrl.u32 %v5328, 7
    %v5330 = vsub.s32 %v2851, %v5329
    %v5331 = vrot.slane %v2029, %v5330
    %v5332 = vsel %vm2856, %v5331, %v5327
    %v5333 = vlaneseq
    %v5334 = vshrl.u32 %v5333, 7
    %v5335 = vsub.s32 %v2858, %v5334
    %v5336 = vrot.slane %v2032, %v5335
    %v5337 = vsel %vm2863, %v5336, %v5332
    %v5338 = vlaneseq
    %v5339 = vshrl.u32 %v5338, 7
    %v5340 = vsub.s32 %v2865, %v5339
    %v5341 = vrot.slane %v2035, %v5340
    %v5342 = vsel %vm2870, %v5341, %v5337
    %v5343 = vlaneseq
    %v5344 = vshrl.u32 %v5343, 7
    %v5345 = vsub.s32 %v2872, %v5344
    %v5346 = vrot.slane %v2038, %v5345
    %v5347 = vsel %vm2877, %v5346, %v5342
    %v5348 = vlaneseq
    %v5349 = vshrl.u32 %v5348, 7
    %v5350 = vsub.s32 %v2879, %v5349
    %v5351 = vrot.slane %v2041, %v5350
    %v5352 = vsel %vm2884, %v5351, %v5347
    %v5353 = vlaneseq
    %v5354 = vshrl.u32 %v5353, 7
    %v5355 = vsub.s32 %v2886, %v5354
    %v5356 = vrot.slane %v2044, %v5355
    %v5357 = vsel %vm2891, %v5356, %v5352
    %v5358 = vlaneseq
    %v5359 = vshrl.u32 %v5358, 7
    %v5360 = vsub.s32 %v2893, %v5359
    %v5361 = vrot.slane %v2047, %v5360
    %v5362 = vsel %vm2898, %v5361, %v5357
    %v5363 = vlaneseq
    %v5364 = vshrl.u32 %v5363, 7
    %v5365 = vsub.s32 %v2900, %v5364
    %v5366 = vrot.slane %v2050, %v5365
    %v5367 = vsel %vm2905, %v5366, %v5362
    %v5368 = vlaneseq
    %v5369 = vshrl.u32 %v5368, 7
    %v5370 = vsub.s32 %v2907, %v5369
    %v5371 = vrot.slane %v2053, %v5370
    %v5372 = vsel %vm2912, %v5371, %v5367
    %v5373 = vlaneseq
    %v5374 = vshrl.u32 %v5373, 7
    %v5375 = vsub.s32 %v2914, %v5374
    %v5376 = vrot.slane %v2056, %v5375
    %v5377 = vsel %vm2919, %v5376, %v5372
    %v5378 = vlaneseq
    %v5379 = vshrl.u32 %v5378, 7
    %v5380 = vsub.s32 %v2921, %v5379
    %v5381 = vrot.slane %v2059, %v5380
    %v5382 = vsel %vm2926, %v5381, %v5377
    %v5383 = vlaneseq
    %v5384 = vshrl.u32 %v5383, 7
    %v5385 = vsub.s32 %v2928, %v5384
    %v5386 = vrot.slane %v2062, %v5385
    %v5387 = vsel %vm2933, %v5386, %v5382
    %v5388 = vlaneseq
    %v5389 = vshrl.u32 %v5388, 7
    %v5390 = vsub.s32 %v2935, %v5389
    %v5391 = vrot.slane %v2065, %v5390
    %v5392 = vsel %vm2940, %v5391, %v5387
    %v5393 = vlaneseq
    %v5394 = vshrl.u32 %v5393, 7
    %v5395 = vsub.s32 %v2942, %v5394
    %v5396 = vrot.slane %v2068, %v5395
    %v5397 = vsel %vm2947, %v5396, %v5392
    %vm5398 = vcmask 1041409
    %v5399 = vsel %vm5398, %v4212, %v2948
    %v5400 = vsel %vm5398, %v4291, %v3027
    %v5401 = vsel %vm5398, %v4370, %v3106
    %v5402 = vsel %vm5398, %v4449, %v3185
    %v5403 = vsel %vm5398, %v4528, %v3264
    %v5404 = vsel %vm5398, %v4607, %v3343
    %v5405 = vsel %vm5398, %v4686, %v3422
    %v5406 = vsel %vm5398, %v4765, %v3501
    %v5407 = vsel %vm5398, %v4844, %v3580
    %v5408 = vsel %vm5398, %v4923, %v3659
    %v5409 = vsel %vm5398, %v5002, %v3738
    %v5410 = vsel %vm5398, %v5081, %v3817
    %v5411 = vsel %vm5398, %v5160, %v3896
    %v5412 = vsel %vm5398, %v5239, %v3975
    %v5413 = vsel %vm5398, %v5318, %v4054
    %v5414 = vsel %vm5398, %v5397, %v4133
    %5431 = vmatprep.subr.mxu0 0.0
    %5432 = vmatpush1.msra.mxu0 %v2085
    %5433 = vmatprep.subr.mxu0 0.0
    %5434 = vmatpush1.msra.mxu0 %v2084
    %5435 = vmatprep.subr.mxu0 0.0
    %5436 = vmatpush1.msra.mxu0 %v2083
    %5437 = vmatprep.subr.mxu0 0.0
    %5438 = vmatpush1.msra.mxu0 %v2082
    %5439 = vmatprep.subr.mxu0 0.0
    %5440 = vmatpush1.msra.mxu0 %v2081
    %5441 = vmatprep.subr.mxu0 0.0
    %5442 = vmatpush1.msra.mxu0 %v2080
    %5443 = vmatprep.subr.mxu0 0.0
    %5444 = vmatpush1.msra.mxu0 %v2079
    %5445 = vmatprep.subr.mxu0 0.0
    %5446 = vmatpush1.msra.mxu0 %v2078
    %5447 = vmatprep.subr.mxu0 0.0
    %5448 = vmatpush1.msra.mxu0 %v2077
    %5449 = vmatprep.subr.mxu0 0.0
    %5450 = vmatpush1.msra.mxu0 %v2076
    %5451 = vmatprep.subr.mxu0 0.0
    %5452 = vmatpush1.msra.mxu0 %v2075
    %5453 = vmatprep.subr.mxu0 0.0
    %5454 = vmatpush1.msra.mxu0 %v2074
    %5455 = vmatprep.subr.mxu0 0.0
    %5456 = vmatpush1.msra.mxu0 %v2073
    %5457 = vmatprep.subr.mxu0 0.0
    %5458 = vmatpush1.msra.mxu0 %v2072
    %5459 = vmatprep.subr.mxu0 0.0
    %5460 = vmatpush1.msra.mxu0 %v2071
    %5461 = vmatprep.subr.mxu0 0.0
    %5462 = vmatpush1.msra.mxu0 %v2070
    %5463 = vmatprep.subr.mxu0 0.0
    %5464 = vmatpush2.msra.mxu0 %v2101
    %5465 = vmatprep.subr.mxu0 0.0
    %5466 = vmatpush2.msra.mxu0 %v2100
    %5467 = vmatprep.subr.mxu0 0.0
    %5468 = vmatpush2.msra.mxu0 %v2099
    %5469 = vmatprep.subr.mxu0 0.0
    %5470 = vmatpush2.msra.mxu0 %v2098
    %5471 = vmatprep.subr.mxu0 0.0
    %5472 = vmatpush2.msra.mxu0 %v2097
    %5473 = vmatprep.subr.mxu0 0.0
    %5474 = vmatpush2.msra.mxu0 %v2096
    %5475 = vmatprep.subr.mxu0 0.0
    %5476 = vmatpush2.msra.mxu0 %v2095
    %5477 = vmatprep.subr.mxu0 0.0
    %5478 = vmatpush2.msra.mxu0 %v2094
    %5479 = vmatprep.subr.mxu0 0.0
    %5480 = vmatpush2.msra.mxu0 %v2093
    %5481 = vmatprep.subr.mxu0 0.0
    %5482 = vmatpush2.msra.mxu0 %v2092
    %5483 = vmatprep.subr.mxu0 0.0
    %5484 = vmatpush2.msra.mxu0 %v2091
    %5485 = vmatprep.subr.mxu0 0.0
    %5486 = vmatpush2.msra.mxu0 %v2090
    %5487 = vmatprep.subr.mxu0 0.0
    %5488 = vmatpush2.msra.mxu0 %v2089
    %5489 = vmatprep.subr.mxu0 0.0
    %5490 = vmatpush2.msra.mxu0 %v2088
    %5491 = vmatprep.subr.mxu0 0.0
    %5492 = vmatpush2.msra.mxu0 %v2087
    %5493 = vmatprep.subr.mxu0 0.0
    %5494 = vmatpush2.msra.mxu0 %v2086
    %5495 = vmatprep.mubr.f32.mxu0 %v5400
    %5496 = vmatmul.mubr.f32.gmra.mxu0 %v5399
    %v5497 = vpop.f32.mrf.mxu0
    %v5498 = vadd.f32 0.0, %v5497
    %v5499 = vpop.f32.mrf.mxu0
    %5500 = vdwg.mxu0
    %5501 = vmatprep.subr.mxu0 0.0
    %5502 = vmatpush1.msra.mxu0 %v2117
    %5503 = vmatprep.subr.mxu0 0.0
    %5504 = vmatpush1.msra.mxu0 %v2116
    %5505 = vmatprep.subr.mxu0 0.0
    %5506 = vmatpush1.msra.mxu0 %v2115
    %5507 = vmatprep.subr.mxu0 0.0
    %5508 = vmatpush1.msra.mxu0 %v2114
    %5509 = vmatprep.subr.mxu0 0.0
    %5510 = vmatpush1.msra.mxu0 %v2113
    %5511 = vmatprep.subr.mxu0 0.0
    %5512 = vmatpush1.msra.mxu0 %v2112
    %5513 = vmatprep.subr.mxu0 0.0
    %5514 = vmatpush1.msra.mxu0 %v2111
    %5515 = vmatprep.subr.mxu0 0.0
    %5516 = vmatpush1.msra.mxu0 %v2110
    %5517 = vmatprep.subr.mxu0 0.0
    %5518 = vmatpush1.msra.mxu0 %v2109
    %5519 = vmatprep.subr.mxu0 0.0
    %5520 = vmatpush1.msra.mxu0 %v2108
    %5521 = vmatprep.subr.mxu0 0.0
    %5522 = vmatpush1.msra.mxu0 %v2107
    %5523 = vmatprep.subr.mxu0 0.0
    %5524 = vmatpush1.msra.mxu0 %v2106
    %5525 = vmatprep.subr.mxu0 0.0
    %5526 = vmatpush1.msra.mxu0 %v2105
    %5527 = vmatprep.subr.mxu0 0.0
    %5528 = vmatpush1.msra.mxu0 %v2104
    %5529 = vmatprep.subr.mxu0 0.0
    %5530 = vmatpush1.msra.mxu0 %v2103
    %5531 = vmatprep.subr.mxu0 0.0
    %5532 = vmatpush1.msra.mxu0 %v2102
    %5533 = vmatprep.subr.mxu0 0.0
    %5534 = vmatpush2.msra.mxu0 %v2133
    %5535 = vmatprep.subr.mxu0 0.0
    %5536 = vmatpush2.msra.mxu0 %v2132
    %5537 = vmatprep.subr.mxu0 0.0
    %5538 = vmatpush2.msra.mxu0 %v2131
    %5539 = vmatprep.subr.mxu0 0.0
    %5540 = vmatpush2.msra.mxu0 %v2130
    %5541 = vmatprep.subr.mxu0 0.0
    %5542 = vmatpush2.msra.mxu0 %v2129
    %5543 = vmatprep.subr.mxu0 0.0
    %5544 = vmatpush2.msra.mxu0 %v2128
    %5545 = vmatprep.subr.mxu0 0.0
    %5546 = vmatpush2.msra.mxu0 %v2127
    %5547 = vmatprep.subr.mxu0 0.0
    %5548 = vmatpush2.msra.mxu0 %v2126
    %5549 = vmatprep.subr.mxu0 0.0
    %5550 = vmatpush2.msra.mxu0 %v2125
    %5551 = vmatprep.subr.mxu0 0.0
    %5552 = vmatpush2.msra.mxu0 %v2124
    %5553 = vmatprep.subr.mxu0 0.0
    %5554 = vmatpush2.msra.mxu0 %v2123
    %5555 = vmatprep.subr.mxu0 0.0
    %5556 = vmatpush2.msra.mxu0 %v2122
    %5557 = vmatprep.subr.mxu0 0.0
    %5558 = vmatpush2.msra.mxu0 %v2121
    %5559 = vmatprep.subr.mxu0 0.0
    %5560 = vmatpush2.msra.mxu0 %v2120
    %5561 = vmatprep.subr.mxu0 0.0
    %5562 = vmatpush2.msra.mxu0 %v2119
    %5563 = vmatprep.subr.mxu0 0.0
    %5564 = vmatpush2.msra.mxu0 %v2118
    %5565 = vmatprep.mubr.f32.mxu0 %v5402
    %5566 = vmatmul.mubr.f32.gmra.mxu0 %v5401
    %v5567 = vpop.f32.mrf.mxu0
    %v5568 = vadd.f32 %v5498, %v5567
    %v5569 = vpop.f32.mrf.mxu0
    %5570 = vdwg.mxu0
    %5571 = vmatprep.subr.mxu0 0.0
    %5572 = vmatpush1.msra.mxu0 %v2149
    %5573 = vmatprep.subr.mxu0 0.0
    %5574 = vmatpush1.msra.mxu0 %v2148
    %5575 = vmatprep.subr.mxu0 0.0
    %5576 = vmatpush1.msra.mxu0 %v2147
    %5577 = vmatprep.subr.mxu0 0.0
    %5578 = vmatpush1.msra.mxu0 %v2146
    %5579 = vmatprep.subr.mxu0 0.0
    %5580 = vmatpush1.msra.mxu0 %v2145
    %5581 = vmatprep.subr.mxu0 0.0
    %5582 = vmatpush1.msra.mxu0 %v2144
    %5583 = vmatprep.subr.mxu0 0.0
    %5584 = vmatpush1.msra.mxu0 %v2143
    %5585 = vmatprep.subr.mxu0 0.0
    %5586 = vmatpush1.msra.mxu0 %v2142
    %5587 = vmatprep.subr.mxu0 0.0
    %5588 = vmatpush1.msra.mxu0 %v2141
    %5589 = vmatprep.subr.mxu0 0.0
    %5590 = vmatpush1.msra.mxu0 %v2140
    %5591 = vmatprep.subr.mxu0 0.0
    %5592 = vmatpush1.msra.mxu0 %v2139
    %5593 = vmatprep.subr.mxu0 0.0
    %5594 = vmatpush1.msra.mxu0 %v2138
    %5595 = vmatprep.subr.mxu0 0.0
    %5596 = vmatpush1.msra.mxu0 %v2137
    %5597 = vmatprep.subr.mxu0 0.0
    %5598 = vmatpush1.msra.mxu0 %v2136
    %5599 = vmatprep.subr.mxu0 0.0
    %5600 = vmatpush1.msra.mxu0 %v2135
    %5601 = vmatprep.subr.mxu0 0.0
    %5602 = vmatpush1.msra.mxu0 %v2134
    %5603 = vmatprep.subr.mxu0 0.0
    %5604 = vmatpush2.msra.mxu0 %v2165
    %5605 = vmatprep.subr.mxu0 0.0
    %5606 = vmatpush2.msra.mxu0 %v2164
    %5607 = vmatprep.subr.mxu0 0.0
    %5608 = vmatpush2.msra.mxu0 %v2163
    %5609 = vmatprep.subr.mxu0 0.0
    %5610 = vmatpush2.msra.mxu0 %v2162
    %5611 = vmatprep.subr.mxu0 0.0
    %5612 = vmatpush2.msra.mxu0 %v2161
    %5613 = vmatprep.subr.mxu0 0.0
    %5614 = vmatpush2.msra.mxu0 %v2160
    %5615 = vmatprep.subr.mxu0 0.0
    %5616 = vmatpush2.msra.mxu0 %v2159
    %5617 = vmatprep.subr.mxu0 0.0
    %5618 = vmatpush2.msra.mxu0 %v2158
    %5619 = vmatprep.subr.mxu0 0.0
    %5620 = vmatpush2.msra.mxu0 %v2157
    %5621 = vmatprep.subr.mxu0 0.0
    %5622 = vmatpush2.msra.mxu0 %v2156
    %5623 = vmatprep.subr.mxu0 0.0
    %5624 = vmatpush2.msra.mxu0 %v2155
    %5625 = vmatprep.subr.mxu0 0.0
    %5626 = vmatpush2.msra.mxu0 %v2154
    %5627 = vmatprep.subr.mxu0 0.0
    %5628 = vmatpush2.msra.mxu0 %v2153
    %5629 = vmatprep.subr.mxu0 0.0
    %5630 = vmatpush2.msra.mxu0 %v2152
    %5631 = vmatprep.subr.mxu0 0.0
    %5632 = vmatpush2.msra.mxu0 %v2151
    %5633 = vmatprep.subr.mxu0 0.0
    %5634 = vmatpush2.msra.mxu0 %v2150
    %5635 = vmatprep.mubr.f32.mxu0 %v5404
    %5636 = vmatmul.mubr.f32.gmra.mxu0 %v5403
    %v5637 = vpop.f32.mrf.mxu0
    %v5638 = vadd.f32 %v5568, %v5637
    %v5639 = vpop.f32.mrf.mxu0
    %5640 = vdwg.mxu0
    %5641 = vmatprep.subr.mxu0 0.0
    %5642 = vmatpush1.msra.mxu0 %v2181
    %5643 = vmatprep.subr.mxu0 0.0
    %5644 = vmatpush1.msra.mxu0 %v2180
    %5645 = vmatprep.subr.mxu0 0.0
    %5646 = vmatpush1.msra.mxu0 %v2179
    %5647 = vmatprep.subr.mxu0 0.0
    %5648 = vmatpush1.msra.mxu0 %v2178
    %5649 = vmatprep.subr.mxu0 0.0
    %5650 = vmatpush1.msra.mxu0 %v2177
    %5651 = vmatprep.subr.mxu0 0.0
    %5652 = vmatpush1.msra.mxu0 %v2176
    %5653 = vmatprep.subr.mxu0 0.0
    %5654 = vmatpush1.msra.mxu0 %v2175
    %5655 = vmatprep.subr.mxu0 0.0
    %5656 = vmatpush1.msra.mxu0 %v2174
    %5657 = vmatprep.subr.mxu0 0.0
    %5658 = vmatpush1.msra.mxu0 %v2173
    %5659 = vmatprep.subr.mxu0 0.0
    %5660 = vmatpush1.msra.mxu0 %v2172
    %5661 = vmatprep.subr.mxu0 0.0
    %5662 = vmatpush1.msra.mxu0 %v2171
    %5663 = vmatprep.subr.mxu0 0.0
    %5664 = vmatpush1.msra.mxu0 %v2170
    %5665 = vmatprep.subr.mxu0 0.0
    %5666 = vmatpush1.msra.mxu0 %v2169
    %5667 = vmatprep.subr.mxu0 0.0
    %5668 = vmatpush1.msra.mxu0 %v2168
    %5669 = vmatprep.subr.mxu0 0.0
    %5670 = vmatpush1.msra.mxu0 %v2167
    %5671 = vmatprep.subr.mxu0 0.0
    %5672 = vmatpush1.msra.mxu0 %v2166
    %5673 = vmatprep.subr.mxu0 0.0
    %5674 = vmatpush2.msra.mxu0 %v2197
    %5675 = vmatprep.subr.mxu0 0.0
    %5676 = vmatpush2.msra.mxu0 %v2196
    %5677 = vmatprep.subr.mxu0 0.0
    %5678 = vmatpush2.msra.mxu0 %v2195
    %5679 = vmatprep.subr.mxu0 0.0
    %5680 = vmatpush2.msra.mxu0 %v2194
    %5681 = vmatprep.subr.mxu0 0.0
    %5682 = vmatpush2.msra.mxu0 %v2193
    %5683 = vmatprep.subr.mxu0 0.0
    %5684 = vmatpush2.msra.mxu0 %v2192
    %5685 = vmatprep.subr.mxu0 0.0
    %5686 = vmatpush2.msra.mxu0 %v2191
    %5687 = vmatprep.subr.mxu0 0.0
    %5688 = vmatpush2.msra.mxu0 %v2190
    %5689 = vmatprep.subr.mxu0 0.0
    %5690 = vmatpush2.msra.mxu0 %v2189
    %5691 = vmatprep.subr.mxu0 0.0
    %5692 = vmatpush2.msra.mxu0 %v2188
    %5693 = vmatprep.subr.mxu0 0.0
    %5694 = vmatpush2.msra.mxu0 %v2187
    %5695 = vmatprep.subr.mxu0 0.0
    %5696 = vmatpush2.msra.mxu0 %v2186
    %5697 = vmatprep.subr.mxu0 0.0
    %5698 = vmatpush2.msra.mxu0 %v2185
    %5699 = vmatprep.subr.mxu0 0.0
    %5700 = vmatpush2.msra.mxu0 %v2184
    %5701 = vmatprep.subr.mxu0 0.0
    %5702 = vmatpush2.msra.mxu0 %v2183
    %5703 = vmatprep.subr.mxu0 0.0
    %5704 = vmatpush2.msra.mxu0 %v2182
    %5705 = vmatprep.mubr.f32.mxu0 %v5406
    %5706 = vmatmul.mubr.f32.gmra.mxu0 %v5405
    %v5707 = vpop.f32.mrf.mxu0
    %v5708 = vadd.f32 %v5638, %v5707
    %v5709 = vpop.f32.mrf.mxu0
    %5710 = vdwg.mxu0
    %5711 = vmatprep.subr.mxu0 0.0
    %5712 = vmatpush1.msra.mxu0 %v2213
    %5713 = vmatprep.subr.mxu0 0.0
    %5714 = vmatpush1.msra.mxu0 %v2212
    %5715 = vmatprep.subr.mxu0 0.0
    %5716 = vmatpush1.msra.mxu0 %v2211
    %5717 = vmatprep.subr.mxu0 0.0
    %5718 = vmatpush1.msra.mxu0 %v2210
    %5719 = vmatprep.subr.mxu0 0.0
    %5720 = vmatpush1.msra.mxu0 %v2209
    %5721 = vmatprep.subr.mxu0 0.0
    %5722 = vmatpush1.msra.mxu0 %v2208
    %5723 = vmatprep.subr.mxu0 0.0
    %5724 = vmatpush1.msra.mxu0 %v2207
    %5725 = vmatprep.subr.mxu0 0.0
    %5726 = vmatpush1.msra.mxu0 %v2206
    %5727 = vmatprep.subr.mxu0 0.0
    %5728 = vmatpush1.msra.mxu0 %v2205
    %5729 = vmatprep.subr.mxu0 0.0
    %5730 = vmatpush1.msra.mxu0 %v2204
    %5731 = vmatprep.subr.mxu0 0.0
    %5732 = vmatpush1.msra.mxu0 %v2203
    %5733 = vmatprep.subr.mxu0 0.0
    %5734 = vmatpush1.msra.mxu0 %v2202
    %5735 = vmatprep.subr.mxu0 0.0
    %5736 = vmatpush1.msra.mxu0 %v2201
    %5737 = vmatprep.subr.mxu0 0.0
    %5738 = vmatpush1.msra.mxu0 %v2200
    %5739 = vmatprep.subr.mxu0 0.0
    %5740 = vmatpush1.msra.mxu0 %v2199
    %5741 = vmatprep.subr.mxu0 0.0
    %5742 = vmatpush1.msra.mxu0 %v2198
    %5743 = vmatprep.subr.mxu0 0.0
    %5744 = vmatpush2.msra.mxu0 %v2229
    %5745 = vmatprep.subr.mxu0 0.0
    %5746 = vmatpush2.msra.mxu0 %v2228
    %5747 = vmatprep.subr.mxu0 0.0
    %5748 = vmatpush2.msra.mxu0 %v2227
    %5749 = vmatprep.subr.mxu0 0.0
    %5750 = vmatpush2.msra.mxu0 %v2226
    %5751 = vmatprep.subr.mxu0 0.0
    %5752 = vmatpush2.msra.mxu0 %v2225
    %5753 = vmatprep.subr.mxu0 0.0
    %5754 = vmatpush2.msra.mxu0 %v2224
    %5755 = vmatprep.subr.mxu0 0.0
    %5756 = vmatpush2.msra.mxu0 %v2223
    %5757 = vmatprep.subr.mxu0 0.0
    %5758 = vmatpush2.msra.mxu0 %v2222
    %5759 = vmatprep.subr.mxu0 0.0
    %5760 = vmatpush2.msra.mxu0 %v2221
    %5761 = vmatprep.subr.mxu0 0.0
    %5762 = vmatpush2.msra.mxu0 %v2220
    %5763 = vmatprep.subr.mxu0 0.0
    %5764 = vmatpush2.msra.mxu0 %v2219
    %5765 = vmatprep.subr.mxu0 0.0
    %5766 = vmatpush2.msra.mxu0 %v2218
    %5767 = vmatprep.subr.mxu0 0.0
    %5768 = vmatpush2.msra.mxu0 %v2217
    %5769 = vmatprep.subr.mxu0 0.0
    %5770 = vmatpush2.msra.mxu0 %v2216
    %5771 = vmatprep.subr.mxu0 0.0
    %5772 = vmatpush2.msra.mxu0 %v2215
    %5773 = vmatprep.subr.mxu0 0.0
    %5774 = vmatpush2.msra.mxu0 %v2214
    %5775 = vmatprep.mubr.f32.mxu0 %v5408
    %5776 = vmatmul.mubr.f32.gmra.mxu0 %v5407
    %v5777 = vpop.f32.mrf.mxu0
    %v5778 = vadd.f32 %v5708, %v5777
    %v5779 = vpop.f32.mrf.mxu0
    %5780 = vdwg.mxu0
    %5781 = vmatprep.subr.mxu0 0.0
    %5782 = vmatpush1.msra.mxu0 %v2245
    %5783 = vmatprep.subr.mxu0 0.0
    %5784 = vmatpush1.msra.mxu0 %v2244
    %5785 = vmatprep.subr.mxu0 0.0
    %5786 = vmatpush1.msra.mxu0 %v2243
    %5787 = vmatprep.subr.mxu0 0.0
    %5788 = vmatpush1.msra.mxu0 %v2242
    %5789 = vmatprep.subr.mxu0 0.0
    %5790 = vmatpush1.msra.mxu0 %v2241
    %5791 = vmatprep.subr.mxu0 0.0
    %5792 = vmatpush1.msra.mxu0 %v2240
    %5793 = vmatprep.subr.mxu0 0.0
    %5794 = vmatpush1.msra.mxu0 %v2239
    %5795 = vmatprep.subr.mxu0 0.0
    %5796 = vmatpush1.msra.mxu0 %v2238
    %5797 = vmatprep.subr.mxu0 0.0
    %5798 = vmatpush1.msra.mxu0 %v2237
    %5799 = vmatprep.subr.mxu0 0.0
    %5800 = vmatpush1.msra.mxu0 %v2236
    %5801 = vmatprep.subr.mxu0 0.0
    %5802 = vmatpush1.msra.mxu0 %v2235
    %5803 = vmatprep.subr.mxu0 0.0
    %5804 = vmatpush1.msra.mxu0 %v2234
    %5805 = vmatprep.subr.mxu0 0.0
    %5806 = vmatpush1.msra.mxu0 %v2233
    %5807 = vmatprep.subr.mxu0 0.0
    %5808 = vmatpush1.msra.mxu0 %v2232
    %5809 = vmatprep.subr.mxu0 0.0
    %5810 = vmatpush1.msra.mxu0 %v2231
    %5811 = vmatprep.subr.mxu0 0.0
    %5812 = vmatpush1.msra.mxu0 %v2230
    %5813 = vmatprep.subr.mxu0 0.0
    %5814 = vmatpush2.msra.mxu0 %v2261
    %5815 = vmatprep.subr.mxu0 0.0
    %5816 = vmatpush2.msra.mxu0 %v2260
    %5817 = vmatprep.subr.mxu0 0.0
    %5818 = vmatpush2.msra.mxu0 %v2259
    %5819 = vmatprep.subr.mxu0 0.0
    %5820 = vmatpush2.msra.mxu0 %v2258
    %5821 = vmatprep.subr.mxu0 0.0
    %5822 = vmatpush2.msra.mxu0 %v2257
    %5823 = vmatprep.subr.mxu0 0.0
    %5824 = vmatpush2.msra.mxu0 %v2256
    %5825 = vmatprep.subr.mxu0 0.0
    %5826 = vmatpush2.msra.mxu0 %v2255
    %5827 = vmatprep.subr.mxu0 0.0
    %5828 = vmatpush2.msra.mxu0 %v2254
    %5829 = vmatprep.subr.mxu0 0.0
    %5830 = vmatpush2.msra.mxu0 %v2253
    %5831 = vmatprep.subr.mxu0 0.0
    %5832 = vmatpush2.msra.mxu0 %v2252
    %5833 = vmatprep.subr.mxu0 0.0
    %5834 = vmatpush2.msra.mxu0 %v2251
    %5835 = vmatprep.subr.mxu0 0.0
    %5836 = vmatpush2.msra.mxu0 %v2250
    %5837 = vmatprep.subr.mxu0 0.0
    %5838 = vmatpush2.msra.mxu0 %v2249
    %5839 = vmatprep.subr.mxu0 0.0
    %5840 = vmatpush2.msra.mxu0 %v2248
    %5841 = vmatprep.subr.mxu0 0.0
    %5842 = vmatpush2.msra.mxu0 %v2247
    %5843 = vmatprep.subr.mxu0 0.0
    %5844 = vmatpush2.msra.mxu0 %v2246
    %5845 = vmatprep.mubr.f32.mxu0 %v5410
    %5846 = vmatmul.mubr.f32.gmra.mxu0 %v5409
    %v5847 = vpop.f32.mrf.mxu0
    %v5848 = vadd.f32 %v5778, %v5847
    %v5849 = vpop.f32.mrf.mxu0
    %5850 = vdwg.mxu0
    %5851 = vmatprep.subr.mxu0 0.0
    %5852 = vmatpush1.msra.mxu0 %v2277
    %5853 = vmatprep.subr.mxu0 0.0
    %5854 = vmatpush1.msra.mxu0 %v2276
    %5855 = vmatprep.subr.mxu0 0.0
    %5856 = vmatpush1.msra.mxu0 %v2275
    %5857 = vmatprep.subr.mxu0 0.0
    %5858 = vmatpush1.msra.mxu0 %v2274
    %5859 = vmatprep.subr.mxu0 0.0
    %5860 = vmatpush1.msra.mxu0 %v2273
    %5861 = vmatprep.subr.mxu0 0.0
    %5862 = vmatpush1.msra.mxu0 %v2272
    %5863 = vmatprep.subr.mxu0 0.0
    %5864 = vmatpush1.msra.mxu0 %v2271
    %5865 = vmatprep.subr.mxu0 0.0
    %5866 = vmatpush1.msra.mxu0 %v2270
    %5867 = vmatprep.subr.mxu0 0.0
    %5868 = vmatpush1.msra.mxu0 %v2269
    %5869 = vmatprep.subr.mxu0 0.0
    %5870 = vmatpush1.msra.mxu0 %v2268
    %5871 = vmatprep.subr.mxu0 0.0
    %5872 = vmatpush1.msra.mxu0 %v2267
    %5873 = vmatprep.subr.mxu0 0.0
    %5874 = vmatpush1.msra.mxu0 %v2266
    %5875 = vmatprep.subr.mxu0 0.0
    %5876 = vmatpush1.msra.mxu0 %v2265
    %5877 = vmatprep.subr.mxu0 0.0
    %5878 = vmatpush1.msra.mxu0 %v2264
    %5879 = vmatprep.subr.mxu0 0.0
    %5880 = vmatpush1.msra.mxu0 %v2263
    %5881 = vmatprep.subr.mxu0 0.0
    %5882 = vmatpush1.msra.mxu0 %v2262
    %5883 = vmatprep.subr.mxu0 0.0
    %5884 = vmatpush2.msra.mxu0 %v2293
    %5885 = vmatprep.subr.mxu0 0.0
    %5886 = vmatpush2.msra.mxu0 %v2292
    %5887 = vmatprep.subr.mxu0 0.0
    %5888 = vmatpush2.msra.mxu0 %v2291
    %5889 = vmatprep.subr.mxu0 0.0
    %5890 = vmatpush2.msra.mxu0 %v2290
    %5891 = vmatprep.subr.mxu0 0.0
    %5892 = vmatpush2.msra.mxu0 %v2289
    %5893 = vmatprep.subr.mxu0 0.0
    %5894 = vmatpush2.msra.mxu0 %v2288
    %5895 = vmatprep.subr.mxu0 0.0
    %5896 = vmatpush2.msra.mxu0 %v2287
    %5897 = vmatprep.subr.mxu0 0.0
    %5898 = vmatpush2.msra.mxu0 %v2286
    %5899 = vmatprep.subr.mxu0 0.0
    %5900 = vmatpush2.msra.mxu0 %v2285
    %5901 = vmatprep.subr.mxu0 0.0
    %5902 = vmatpush2.msra.mxu0 %v2284
    %5903 = vmatprep.subr.mxu0 0.0
    %5904 = vmatpush2.msra.mxu0 %v2283
    %5905 = vmatprep.subr.mxu0 0.0
    %5906 = vmatpush2.msra.mxu0 %v2282
    %5907 = vmatprep.subr.mxu0 0.0
    %5908 = vmatpush2.msra.mxu0 %v2281
    %5909 = vmatprep.subr.mxu0 0.0
    %5910 = vmatpush2.msra.mxu0 %v2280
    %5911 = vmatprep.subr.mxu0 0.0
    %5912 = vmatpush2.msra.mxu0 %v2279
    %5913 = vmatprep.subr.mxu0 0.0
    %5914 = vmatpush2.msra.mxu0 %v2278
    %5915 = vmatprep.mubr.f32.mxu0 %v5412
    %5916 = vmatmul.mubr.f32.gmra.mxu0 %v5411
    %v5917 = vpop.f32.mrf.mxu0
    %v5918 = vadd.f32 %v5848, %v5917
    %v5919 = vpop.f32.mrf.mxu0
    %5920 = vdwg.mxu0
    %5921 = vmatprep.subr.mxu0 0.0
    %5922 = vmatpush1.msra.mxu0 %v2309
    %5923 = vmatprep.subr.mxu0 0.0
    %5924 = vmatpush1.msra.mxu0 %v2308
    %5925 = vmatprep.subr.mxu0 0.0
    %5926 = vmatpush1.msra.mxu0 %v2307
    %5927 = vmatprep.subr.mxu0 0.0
    %5928 = vmatpush1.msra.mxu0 %v2306
    %5929 = vmatprep.subr.mxu0 0.0
    %5930 = vmatpush1.msra.mxu0 %v2305
    %5931 = vmatprep.subr.mxu0 0.0
    %5932 = vmatpush1.msra.mxu0 %v2304
    %5933 = vmatprep.subr.mxu0 0.0
    %5934 = vmatpush1.msra.mxu0 %v2303
    %5935 = vmatprep.subr.mxu0 0.0
    %5936 = vmatpush1.msra.mxu0 %v2302
    %5937 = vmatprep.subr.mxu0 0.0
    %5938 = vmatpush1.msra.mxu0 %v2301
    %5939 = vmatprep.subr.mxu0 0.0
    %5940 = vmatpush1.msra.mxu0 %v2300
    %5941 = vmatprep.subr.mxu0 0.0
    %5942 = vmatpush1.msra.mxu0 %v2299
    %5943 = vmatprep.subr.mxu0 0.0
    %5944 = vmatpush1.msra.mxu0 %v2298
    %5945 = vmatprep.subr.mxu0 0.0
    %5946 = vmatpush1.msra.mxu0 %v2297
    %5947 = vmatprep.subr.mxu0 0.0
    %5948 = vmatpush1.msra.mxu0 %v2296
    %5949 = vmatprep.subr.mxu0 0.0
    %5950 = vmatpush1.msra.mxu0 %v2295
    %5951 = vmatprep.subr.mxu0 0.0
    %5952 = vmatpush1.msra.mxu0 %v2294
    %5953 = vmatprep.subr.mxu0 0.0
    %5954 = vmatpush2.msra.mxu0 %v2325
    %5955 = vmatprep.subr.mxu0 0.0
    %5956 = vmatpush2.msra.mxu0 %v2324
    %5957 = vmatprep.subr.mxu0 0.0
    %5958 = vmatpush2.msra.mxu0 %v2323
    %5959 = vmatprep.subr.mxu0 0.0
    %5960 = vmatpush2.msra.mxu0 %v2322
    %5961 = vmatprep.subr.mxu0 0.0
    %5962 = vmatpush2.msra.mxu0 %v2321
    %5963 = vmatprep.subr.mxu0 0.0
    %5964 = vmatpush2.msra.mxu0 %v2320
    %5965 = vmatprep.subr.mxu0 0.0
    %5966 = vmatpush2.msra.mxu0 %v2319
    %5967 = vmatprep.subr.mxu0 0.0
    %5968 = vmatpush2.msra.mxu0 %v2318
    %5969 = vmatprep.subr.mxu0 0.0
    %5970 = vmatpush2.msra.mxu0 %v2317
    %5971 = vmatprep.subr.mxu0 0.0
    %5972 = vmatpush2.msra.mxu0 %v2316
    %5973 = vmatprep.subr.mxu0 0.0
    %5974 = vmatpush2.msra.mxu0 %v2315
    %5975 = vmatprep.subr.mxu0 0.0
    %5976 = vmatpush2.msra.mxu0 %v2314
    %5977 = vmatprep.subr.mxu0 0.0
    %5978 = vmatpush2.msra.mxu0 %v2313
    %5979 = vmatprep.subr.mxu0 0.0
    %5980 = vmatpush2.msra.mxu0 %v2312
    %5981 = vmatprep.subr.mxu0 0.0
    %5982 = vmatpush2.msra.mxu0 %v2311
    %5983 = vmatprep.subr.mxu0 0.0
    %5984 = vmatpush2.msra.mxu0 %v2310
    %5985 = vmatprep.mubr.f32.mxu0 %v5414
    %5986 = vmatmul.mubr.f32.gmra.mxu0 %v5413
    %v5987 = vpop.f32.mrf.mxu0
    %v5988 = vadd.f32 %v5918, %v5987
    %v5989 = vpop.f32.mrf.mxu0
    %5990 = vdwg.mxu0
    %v5991 = vadd.f32 %v2069, %v5988
    %5992 = vst [vmem:[#allocation2] sm:$0x3] %v5991
    // Predicated region
    $region18: #{tpu_custom_call.1} parent=1 // pred_check
      %p5993 = pneg %p15
    $region19: #{tpu_custom_call.1} parent=1 // pred_check_branch
      %5995 = sbr.rel (%p5993) target = $region21
    $region20: #{tpu_custom_call.1} parent=1 // pred_region
      %v5996 = vld [vmem:[#allocation2] sm:$0x3]
      %v5997 = vmul.f32 %v5996, 0.020408163
      %v5998 = vld [vmem:[%s2] sm:$0x1]
      %v6000 = vlaneseq
      %v6001 = vshrl.u32 %v6000, 7
      %v6002 = vsub.s32 0, %v6001
      %v6003 = vrot.slane %v5998, %v6002
      %v6005 = vadd.f32 %v5997, %v6003
      %v6006 = vxor.u32 %v6005, 2147483648
      %v6007 = vmul.f32 %v6006, 1.442695
      %v6008 = vpow.pop %v6007
      %v6009 = vadd.f32 %v6008, 1.0
      %v6010 = vrcp.pop %v6009
      %v6011 = vmul.f32 1.0, %v6010
      %6012 = vst [vmem:[#allocation3] sm:$0x3] %v6011
    $region21: #{tpu_custom_call.1} parent=1 // pred_fallthru
      _
    // Predicated region
    $region22: #{tpu_custom_call.1} parent=1 // pred_check
      _
    $region23: #{tpu_custom_call.1} parent=1 // pred_check_branch
      %6014 = sbr.rel (0) target = $region25
    $region24: #{tpu_custom_call.1} parent=1 // pred_region
      %s6016 = ssub.s32 32, 32
      %6017 = vsyncadd [#allocation4], %s6016
      %s6019 = sshll.u32 [#allocation3], 4
      %s6020 = int_to_ptr.vmem [resolvable:$true] %s6019
      %6022 = dma.vmem_to_hbm [thread:$0]  %s6020, 32, %s3, [#allocation4]
    $region25: #{tpu_custom_call.1} parent=1 // pred_fallthru
      _
    // Predicated region
    $region26: #{tpu_custom_call.1} parent=1 // pred_check
      _
    $region27: #{tpu_custom_call.1} parent=1 // pred_check_branch
      %6024 = sbr.rel (0) target = $region29
    $region28: #{tpu_custom_call.1} parent=1 // pred_region
      %6025 = dma.done [#allocation4], 32
    $region29: #{tpu_custom_call.1} parent=1 // pred_fallthru
      _
    %6026 = vsyncpa [#allocation4], 1

</llo_original>
